<compile_context>
chip_gen: v5e
topology: v5e:2x2
jax: 0.10.0
libtpu: 0.0.40
codegen_flags: <defaults>
</compile_context>

<pallas_src>
import functools

import jax
import jax.numpy as jnp
import numpy as np
from jax.experimental import pallas as pl
from jax.experimental.pallas import tpu as pltpu


# ---------------------------------------------------------------------------
# Hardware / tiling helpers
# ---------------------------------------------------------------------------
def _round_up(x, m):
    return -(-x // m) * m


@functools.lru_cache(maxsize=1)
def _vmem_capacity_bytes():
    try:
        return int(pltpu.get_tpu_info().vmem_capacity_bytes)
    except Exception:                    # unknown chip: assume v7x's 64 MiB
        return 64 * 1024 * 1024


def _estimate_vmem_bytes(th, W, Cin, Cout, comp_bytes, out_bytes, pooling):
    """Rough per-grid-step VMEM footprint (lane/sublane padding included)."""
    Wo = -(-W // 2)
    x_blk = _round_up(Cin, 128) * _round_up(W + 2, 8) * (th + 4) * comp_bytes
    cache_blk = _round_up(Cout, 128) * _round_up(W, 8) * th * out_bytes
    pool_blk = (_round_up(Cout, 128) * _round_up(Wo, 8) * (th // 2) * out_bytes
                if pooling else 0)
    w_blk = _round_up(Cout, 128) * (_round_up(9 * Cin, 8)
                                    + _round_up(9 * Cout, 8)) * comp_bytes
    m1, m2 = (th + 2) * W, th * W
    tmp = (_round_up(9 * Cin, 128) * _round_up(m1, 8) * comp_bytes    # im2col 1
           + _round_up(9 * Cout, 128) * _round_up(m2, 8) * comp_bytes  # im2col 2
           + _round_up(Cout, 128) * _round_up(m1, 8) * 4               # h (f32)
           + _round_up(Cout, 128) * _round_up(m2, 8) * 4               # conv2 acc
           + _round_up(Cout, 128) * _round_up(W + 2, 8) * (th + 2) * comp_bytes)
    # input/output blocks are double-buffered by the BlockSpec pipeline.
    return 2 * (x_blk + cache_blk + pool_blk) + w_blk + tmp


def _pick_row_tile(H, W, Cin, Cout, comp_bytes, out_bytes, pooling, budget):
    th = H + (H % 2)                     # whole image, rounded up to even
    while th > 2 and _estimate_vmem_bytes(th, W, Cin, Cout, comp_bytes,
                                          out_bytes, pooling) > budget:
        th -= 2
    return max(th, 2)


# ---------------------------------------------------------------------------
# Fused kernel: conv3x3+ReLU -> conv3x3+ReLU -> (optional) 2x2/2 maxpool
# One (image, row-tile) per grid step; everything stays in VMEM.
# ---------------------------------------------------------------------------
def _fused_down_conv_kernel(x_ref, w1_ref, b1_ref, w2_ref, b2_ref, *out_refs,
                            H, pooling):
    """x_ref : (1, TH+4, W+2, Cin) compute-dtype row window, zero-padded by the
               wrapper (2 halo rows each side, 1 halo col each side).
    w?_ref : (9*Cin?, Cout) compute-dtype weights, all 9 taps folded into K.
    b?_ref : (1, Cout) f32.
    outs   : [pooled (1, TH//2, Wo, Cout)], cache (1, TH, W, Cout)."""
    if pooling:
        pool_ref, cache_ref = out_refs
    else:
        (cache_ref,) = out_refs
        pool_ref = None

    t = pl.program_id(1)
    _, TH, W, Cout = cache_ref.shape
    Cin = x_ref.shape[3]
    cdt = w1_ref.dtype                          # MXU feed dtype (bf16 or f32)

    def im2col(src, rows, cin):
        # src: (rows+2, W+2, cin) with zero halo -> (rows*W, 9*cin)
        taps = [src[kh:kh + rows, kw:kw + W, :]
                for kh in range(3) for kw in range(3)]
        return jnp.concatenate(taps, axis=-1).reshape(rows * W, 9 * cin)

    # ---- conv1 + ReLU over TH+2 rows (1-row halo each side feeds conv2) ----
    patch1 = im2col(x_ref[0], TH + 2, Cin)                 # (M1, 9*Cin)
    h = jnp.dot(patch1, w1_ref[...], preferred_element_type=jnp.float32)
    h = jnp.maximum(h + b1_ref[...], 0.0).reshape(TH + 2, W, Cout)

    # conv1 pads by only ONE row: halo rows outside the image must be exactly
    # zero (not relu(bias) computed from the zero-padded input).
    g = t * TH - 1 + jax.lax.broadcasted_iota(jnp.int32, (TH + 2, 1, 1), 0)
    h = jnp.where((g >= 0) & (g < H), h, 0.0)

    # ---- conv2 + ReLU -------------------------------------------------------
    zcol = jnp.zeros((TH + 2, 1, Cout), jnp.float32)
    hp = jnp.concatenate([zcol, h, zcol], axis=1).astype(cdt)  # (TH+2, W+2, C)
    patch2 = im2col(hp, TH, Cout)                              # (M2, 9*Cout)
    cache = jnp.dot(patch2, w2_ref[...], preferred_element_type=jnp.float32)
    cache = jnp.maximum(cache + b2_ref[...], 0.0).reshape(TH, W, Cout)

    # Rows past the image bottom (last row tile only) -> 0 so the padded cache
    # store is clean and the pooling below stays exact.
    if H % TH != 0:
        gr = t * TH + jax.lax.broadcasted_iota(jnp.int32, (TH, 1, 1), 0)
        cache = jnp.where(gr < H, cache, 0.0)

    cache_ref[0] = cache.astype(cache_ref.dtype)

    # ---- fused MaxPool2d(2, stride=2, ceil_mode=True) ------------------------
    # cache is post-ReLU (>= 0), so padding the lone trailing row/col with 0
    # reproduces torch's -inf-padded ceil_mode pooling exactly.  If the
    # activation ever changes, this pad value must become -inf.
    if pooling:
        Wo = pool_ref.shape[2]
        if W < 2 * Wo:                                      # odd W (ceil_mode)
            cache_p = jnp.concatenate(
                [cache, jnp.zeros((TH, 2 * Wo - W, Cout), cache.dtype)], axis=1)
        else:
            cache_p = cache
        pr = cache_p.reshape(TH // 2, 2, 2 * Wo, Cout).max(axis=1)
        pooled = pr.reshape(TH // 2, Wo, 2, Cout).max(axis=2)
        pool_ref[0] = pooled.astype(pool_ref.dtype)


# ---------------------------------------------------------------------------
# Module wrapper (UnetDownConv.forward)
# ---------------------------------------------------------------------------
@functools.partial(jax.jit, static_argnames=("pooling", "compute_dtype",
                                             "row_tile", "out_dtype"))
def unet_down_conv(x_nchw, params, pooling=True, compute_dtype=jnp.bfloat16,
                   row_tile=None, out_dtype=None):
    """x_nchw: (N, Cin, H, W) -> (out, cache) in NCHW.
    `compute_dtype` feeds the MXU (bf16 fast path); accumulation is f32.
    `out_dtype` defaults to the input dtype.  `row_tile` (even) overrides the
    auto-chosen, VMEM-bounded row tile."""
    w1, b1, w2, b2 = params
    N, Cin, H, W = x_nchw.shape
    Cout = w1.shape[-1]
    Ho, Wo = -(-H // 2), -(-W // 2)
    out_dtype = x_nchw.dtype if out_dtype is None else out_dtype

    comp_bytes = jnp.dtype(compute_dtype).itemsize
    out_bytes = jnp.dtype(out_dtype).itemsize
    if row_tile is None:
        budget = int(0.55 * _vmem_capacity_bytes())
        TH = _pick_row_tile(H, W, Cin, Cout, comp_bytes, out_bytes, pooling,
                            budget)
    else:
        if row_tile % 2:
            raise ValueError("row_tile must be even (2x2 pooling windows)")
        TH = row_tile
    T = -(-H // TH)                                   # row tiles per image

    # NCHW -> NHWC in the MXU feed dtype, then cut overlapping row windows
    # (2-row conv halo each side, 1-col halo) so each grid step is an
    # independent auto-pipelined block: no VMEM staging copy, no zero fill.
    x = jnp.transpose(x_nchw, (0, 2, 3, 1)).astype(compute_dtype)
    xp = jnp.pad(x, ((0, 0), (2, 2 + T * TH - H), (1, 1), (0, 0)))
    x_tiles = jnp.concatenate(
        [xp[:, t * TH:t * TH + TH + 4][:, None] for t in range(T)], axis=1)
    x_tiles = x_tiles.reshape(N * T, TH + 4, W + 2, Cin)

    w1f = w1.reshape(9 * Cin, Cout).astype(compute_dtype)   # all 9 taps in K
    w2f = w2.reshape(9 * Cout, Cout).astype(compute_dtype)
    b1r = b1.reshape(1, Cout).astype(jnp.float32)
    b2r = b2.reshape(1, Cout).astype(jnp.float32)

    cache_spec = pl.BlockSpec((1, TH, W, Cout), lambda n, t: (n, t, 0, 0))
    cache_shape = jax.ShapeDtypeStruct((N, T * TH, W, Cout), out_dtype)
    if pooling:
        out_shape = (jax.ShapeDtypeStruct((N, T * (TH // 2), Wo, Cout),
                                          out_dtype), cache_shape)
        out_specs = (pl.BlockSpec((1, TH // 2, Wo, Cout),
                                  lambda n, t: (n, t, 0, 0)), cache_spec)
    else:
        out_shape = cache_shape
        out_specs = cache_spec

    outs = pl.pallas_call(
        functools.partial(_fused_down_conv_kernel, H=H, pooling=pooling),
        out_shape=out_shape,
        grid=(N, T),
        in_specs=[
            pl.BlockSpec((1, TH + 4, W + 2, Cin),
                         lambda n, t: (n * T + t, 0, 0, 0)),
            pl.BlockSpec((9 * Cin, Cout), lambda n, t: (0, 0)),
            pl.BlockSpec((1, Cout), lambda n, t: (0, 0)),
            pl.BlockSpec((9 * Cout, Cout), lambda n, t: (0, 0)),
            pl.BlockSpec((1, Cout), lambda n, t: (0, 0)),
        ],
        out_specs=out_specs,
        compiler_params=pltpu.CompilerParams(
            dimension_semantics=("parallel", "parallel"),
            vmem_limit_bytes=int(0.85 * _vmem_capacity_bytes())),
    )(x_tiles, w1f, b1r, w2f, b2r)

    if pooling:
        pooled_pad, cache_pad = outs
        pooled_nhwc = pooled_pad[:, :Ho]
        cache_nhwc = cache_pad[:, :H]
    else:
        cache_nhwc = outs[:, :H]
        pooled_nhwc = cache_nhwc                   # torch returns (cache, cache)
    return (jnp.transpose(pooled_nhwc, (0, 3, 1, 2)),   # back to NCHW
            jnp.transpose(cache_nhwc, (0, 3, 1, 2)))


def init_params(key, in_channels, out_channels):
    """Deterministic synthetic init (torch Conv2d-style uniform bounds)."""
    k1, k2, k3, k4 = jax.random.split(key, 4)
    s1 = 1.0 / np.sqrt(in_channels * 9)
    s2 = 1.0 / np.sqrt(out_channels * 9)
    w1 = jax.random.uniform(k1, (3, 3, in_channels, out_channels),
                            jnp.float32, -s1, s1)
    b1 = jax.random.uniform(k2, (out_channels,), jnp.float32, -s1, s1)
    w2 = jax.random.uniform(k3, (3, 3, out_channels, out_channels),
                            jnp.float32, -s2, s2)
    b2 = jax.random.uniform(k4, (out_channels,), jnp.float32, -s2, s2)
    return w1, b1, w2, b2


# ---------------------------------------------------------------------------
# Pure-JAX reference (for correctness check)
# ---------------------------------------------------------------------------
def ref_unet_down_conv(x_nchw, params, pooling=True):
    w1, b1, w2, b2 = params

    def conv(x, w, b):
        y = jax.lax.conv_general_dilated(
            x, w, window_strides=(1, 1), padding=((1, 1), (1, 1)),
            dimension_numbers=("NHWC", "HWIO", "NHWC"))
        return jax.nn.relu(y + b)

    def pool(x):
        N, H, W, C = x.shape
        Ho, Wo = -(-H // 2), -(-W // 2)
        xp = jnp.pad(x, ((0, 0), (0, 2 * Ho - H), (0, 2 * Wo - W), (0, 0)),
                     constant_values=-jnp.inf)
        return jax.lax.reduce_window(xp, -jnp.inf, jax.lax.max,
                                     (1, 2, 2, 1), (1, 2, 2, 1), "VALID")

    x = jnp.transpose(x_nchw, (0, 2, 3, 1))
    h = conv(x, w1, b1)
    cache = conv(h, w2, b2)
    out = pool(cache) if pooling else cache
    return (jnp.transpose(out, (0, 3, 1, 2)),
            jnp.transpose(cache, (0, 3, 1, 2)))


if __name__ == "__main__":
    key = jax.random.PRNGKey(0)
    kx, kp = jax.random.split(key)

    N, Cin, Cout, H, W = 2, 4, 8, 16, 16
    x = jax.random.normal(kx, (N, Cin, H, W), jnp.float32)   # NCHW like torch
    params = init_params(kp, Cin, Cout)

    ref_pooled, ref_cache = ref_unet_down_conv(x, params, pooling=True)

    # --- f32 path, auto row tile (whole image here) --------------------------
    pooled, cache = unet_down_conv(x, params, pooling=True,
                                   compute_dtype=jnp.float32)
    jax.block_until_ready((pooled, cache))
    np.testing.assert_allclose(np.asarray(cache), np.asarray(ref_cache),
                               rtol=1e-5, atol=1e-5)
    np.testing.assert_allclose(np.asarray(pooled), np.asarray(ref_pooled),
                               rtol=1e-5, atol=1e-5)
    assert pooled.shape == (N, Cout, H // 2, W // 2)
    assert cache.shape == (N, Cout, H, W)

    # --- f32 path, forced row tiling (T=2) exercises halo/masking ------------
    pooled_t, cache_t = unet_down_conv(x, params, pooling=True,
                                       compute_dtype=jnp.float32, row_tile=8)
    jax.block_until_ready((pooled_t, cache_t))
    np.testing.assert_allclose(np.asarray(cache_t), np.asarray(ref_cache),
                               rtol=1e-5, atol=1e-5)
    np.testing.assert_allclose(np.asarray(pooled_t), np.asarray(ref_pooled),
                               rtol=1e-5, atol=1e-5)

    # --- pooling=False path ---------------------------------------------------
    out_np, cache_np = unet_down_conv(x, params, pooling=False,
                                      compute_dtype=jnp.float32)
    jax.block_until_ready((out_np, cache_np))
    np.testing.assert_allclose(np.asarray(out_np), np.asarray(ref_cache),
                               rtol=1e-5, atol=1e-5)

    # --- bf16 MXU fast path (f32 accumulation); loose tolerance ---------------
    pooled_bf, cache_bf = unet_down_conv(x, params, pooling=True,
                                         compute_dtype=jnp.bfloat16)
    jax.block_until_ready((pooled_bf, cache_bf))
    np.testing.assert_allclose(np.asarray(cache_bf), np.asarray(ref_cache),
                               rtol=1e-1, atol=1e-1)
    np.testing.assert_allclose(np.asarray(pooled_bf), np.asarray(ref_pooled),
                               rtol=1e-1, atol=1e-1)

    # --- odd sizes + forced tiling: ceil_mode pool, partial last row tile -----
    x_odd = jax.random.normal(kx, (N, Cin, 15, 13), jnp.float32)
    p_odd, c_odd = unet_down_conv(x_odd, params, pooling=True,
                                  compute_dtype=jnp.float32, row_tile=8)
    jax.block_until_ready((p_odd, c_odd))
    rp_odd, rc_odd = ref_unet_down_conv(x_odd, params, pooling=True)
    np.testing.assert_allclose(np.asarray(c_odd), np.asarray(rc_odd),
                               rtol=1e-5, atol=1e-5)
    np.testing.assert_allclose(np.asarray(p_odd), np.asarray(rp_odd),
                               rtol=1e-5, atol=1e-5)
    assert p_odd.shape == (N, Cout, 8, 7)

    print("KERNEL_OK")
</pallas_src>

<mosaic_0001>
module attributes {stable_mosaic.version = 11 : i64} {
  func.func @_fused_down_conv_kernel(%arg0: i32, %arg1: i32, %arg2: memref<1x20x18x4xf32, #tpu.memory_space<vmem>>, %arg3: memref<36x8xf32, #tpu.memory_space<vmem>>, %arg4: memref<1x8xf32, #tpu.memory_space<vmem>>, %arg5: memref<72x8xf32, #tpu.memory_space<vmem>>, %arg6: memref<1x8xf32, #tpu.memory_space<vmem>>, %arg7: memref<1x8x8x8xf32, #tpu.memory_space<vmem>>, %arg8: memref<1x16x16x8xf32, #tpu.memory_space<vmem>>) attributes {dimension_semantics = [#tpu.dimension_semantics<parallel>, #tpu.dimension_semantics<parallel>], iteration_bounds = array<i64: 2, 1>, scalar_prefetch = 0 : i64, scratch_operands = 0 : i64, tpu.core_type = #tpu.core_type<tc>, window_params = [{transform_indices = @transform_0, window_bounds = array<i64: 1, 20, 18, 4>}, {pipeline_mode = #tpu.pipeline_mode<synchronous>, transform_indices = @transform_1, window_bounds = array<i64: 36, 8>}, {pipeline_mode = #tpu.pipeline_mode<synchronous>, transform_indices = @transform_2, window_bounds = array<i64: 1, 8>}, {pipeline_mode = #tpu.pipeline_mode<synchronous>, transform_indices = @transform_3, window_bounds = array<i64: 72, 8>}, {pipeline_mode = #tpu.pipeline_mode<synchronous>, transform_indices = @transform_4, window_bounds = array<i64: 1, 8>}, {transform_indices = @transform_5, window_bounds = array<i64: 1, 8, 8, 8>}, {transform_indices = @transform_6, window_bounds = array<i64: 1, 16, 16, 8>}]} {
    %c0 = arith.constant 0 : index
    %c0_0 = arith.constant 0 : index
    %c0_1 = arith.constant 0 : index
    %c0_2 = arith.constant 0 : index
    %0 = vector.load %arg2[%c0, %c0_0, %c0_1, %c0_2] : memref<1x20x18x4xf32, #tpu.memory_space<vmem>>, vector<1x20x18x4xf32>
    %1 = vector.shape_cast %0 : vector<1x20x18x4xf32> to vector<20x18x4xf32>
    %2 = vector.extract_strided_slice %1 {offsets = [0, 0, 0], sizes = [18, 16, 4], strides = [1, 1, 1]} : vector<20x18x4xf32> to vector<18x16x4xf32>
    %3 = vector.extract_strided_slice %1 {offsets = [0, 1, 0], sizes = [18, 16, 4], strides = [1, 1, 1]} : vector<20x18x4xf32> to vector<18x16x4xf32>
    %4 = vector.extract_strided_slice %1 {offsets = [0, 2, 0], sizes = [18, 16, 4], strides = [1, 1, 1]} : vector<20x18x4xf32> to vector<18x16x4xf32>
    %5 = vector.extract_strided_slice %1 {offsets = [1, 0, 0], sizes = [18, 16, 4], strides = [1, 1, 1]} : vector<20x18x4xf32> to vector<18x16x4xf32>
    %6 = vector.extract_strided_slice %1 {offsets = [1, 1, 0], sizes = [18, 16, 4], strides = [1, 1, 1]} : vector<20x18x4xf32> to vector<18x16x4xf32>
    %7 = vector.extract_strided_slice %1 {offsets = [1, 2, 0], sizes = [18, 16, 4], strides = [1, 1, 1]} : vector<20x18x4xf32> to vector<18x16x4xf32>
    %8 = vector.extract_strided_slice %1 {offsets = [2, 0, 0], sizes = [18, 16, 4], strides = [1, 1, 1]} : vector<20x18x4xf32> to vector<18x16x4xf32>
    %9 = vector.extract_strided_slice %1 {offsets = [2, 1, 0], sizes = [18, 16, 4], strides = [1, 1, 1]} : vector<20x18x4xf32> to vector<18x16x4xf32>
    %10 = vector.extract_strided_slice %1 {offsets = [2, 2, 0], sizes = [18, 16, 4], strides = [1, 1, 1]} : vector<20x18x4xf32> to vector<18x16x4xf32>
    %11 = tpu.concatenate %2, %3, %4, %5, %6, %7, %8, %9, %10 in 2 : vector<18x16x4xf32>, vector<18x16x4xf32>, vector<18x16x4xf32>, vector<18x16x4xf32>, vector<18x16x4xf32>, vector<18x16x4xf32>, vector<18x16x4xf32>, vector<18x16x4xf32>, vector<18x16x4xf32> -> vector<18x16x36xf32>
    %12 = vector.shape_cast %11 : vector<18x16x36xf32> to vector<288x36xf32>
    %c0_3 = arith.constant 0 : index
    %c0_4 = arith.constant 0 : index
    %13 = vector.load %arg3[%c0_3, %c0_4] : memref<36x8xf32, #tpu.memory_space<vmem>>, vector<36x8xf32>
    %cst = arith.constant dense<0.000000e+00> : vector<288x8xf32>
    %14 = tpu.matmul %12, %13, %cst {dimension_numbers = #tpu.dot_dimension_numbers<[1], [0], [0], [1], [0, 0, 1, 1], [], []>} : vector<288x36xf32>, vector<36x8xf32>, vector<288x8xf32> -> vector<288x8xf32>
    %c0_5 = arith.constant 0 : index
    %c0_6 = arith.constant 0 : index
    %15 = vector.load %arg4[%c0_5, %c0_6] : memref<1x8xf32, #tpu.memory_space<vmem>>, vector<1x8xf32>
    %16 = vector.broadcast %15 : vector<1x8xf32> to vector<288x8xf32>
    %17 = arith.addf %14, %16 : vector<288x8xf32>
    %cst_7 = arith.constant 0.000000e+00 : f32
    %18 = vector.broadcast %cst_7 : f32 to vector<288x8xf32>
    %19 = arith.maximumf %17, %18 : vector<288x8xf32>
    %20 = vector.shape_cast %19 : vector<288x8xf32> to vector<18x16x8xf32>
    %c16_i32 = arith.constant 16 : i32
    %21 = arith.muli %arg1, %c16_i32 : i32
    %c1_i32 = arith.constant 1 : i32
    %22 = arith.subi %21, %c1_i32 : i32
    %23 = tpu.iota {dimensions = array<i32: 0>} : vector<18x1x1xi32>
    %24 = vector.broadcast %22 : i32 to vector<18x1x1xi32>
    %25 = arith.addi %24, %23 : vector<18x1x1xi32>
    %c0_i32 = arith.constant 0 : i32
    %26 = vector.broadcast %c0_i32 : i32 to vector<18x1x1xi32>
    %27 = arith.cmpi sge, %25, %26 : vector<18x1x1xi32>
    %c16_i32_8 = arith.constant 16 : i32
    %28 = vector.broadcast %c16_i32_8 : i32 to vector<18x1x1xi32>
    %29 = arith.cmpi slt, %25, %28 : vector<18x1x1xi32>
    %30 = arith.andi %27, %29 : vector<18x1x1xi1>
    %cst_9 = arith.constant 0.000000e+00 : f32
    %31 = vector.shape_cast %30 : vector<18x1x1xi1> to vector<18x1x1xi1>
    %32 = vector.broadcast %31 : vector<18x1x1xi1> to vector<18x16x8xi1>
    %33 = vector.broadcast %cst_9 : f32 to vector<18x16x8xf32>
    %34 = arith.select %32, %20, %33 : vector<18x16x8xi1>, vector<18x16x8xf32>
    %cst_10 = arith.constant 0.000000e+00 : f32
    %35 = vector.broadcast %cst_10 : f32 to vector<18x1x8xf32>
    %36 = tpu.concatenate %35, %34, %35 in 1 : vector<18x1x8xf32>, vector<18x16x8xf32>, vector<18x1x8xf32> -> vector<18x18x8xf32>
    %37 = vector.extract_strided_slice %36 {offsets = [0, 0, 0], sizes = [16, 16, 8], strides = [1, 1, 1]} : vector<18x18x8xf32> to vector<16x16x8xf32>
    %38 = vector.extract_strided_slice %36 {offsets = [0, 1, 0], sizes = [16, 16, 8], strides = [1, 1, 1]} : vector<18x18x8xf32> to vector<16x16x8xf32>
    %39 = vector.extract_strided_slice %36 {offsets = [0, 2, 0], sizes = [16, 16, 8], strides = [1, 1, 1]} : vector<18x18x8xf32> to vector<16x16x8xf32>
    %40 = vector.extract_strided_slice %36 {offsets = [1, 0, 0], sizes = [16, 16, 8], strides = [1, 1, 1]} : vector<18x18x8xf32> to vector<16x16x8xf32>
    %41 = vector.extract_strided_slice %36 {offsets = [1, 1, 0], sizes = [16, 16, 8], strides = [1, 1, 1]} : vector<18x18x8xf32> to vector<16x16x8xf32>
    %42 = vector.extract_strided_slice %36 {offsets = [1, 2, 0], sizes = [16, 16, 8], strides = [1, 1, 1]} : vector<18x18x8xf32> to vector<16x16x8xf32>
    %43 = vector.extract_strided_slice %36 {offsets = [2, 0, 0], sizes = [16, 16, 8], strides = [1, 1, 1]} : vector<18x18x8xf32> to vector<16x16x8xf32>
    %44 = vector.extract_strided_slice %36 {offsets = [2, 1, 0], sizes = [16, 16, 8], strides = [1, 1, 1]} : vector<18x18x8xf32> to vector<16x16x8xf32>
    %45 = vector.extract_strided_slice %36 {offsets = [2, 2, 0], sizes = [16, 16, 8], strides = [1, 1, 1]} : vector<18x18x8xf32> to vector<16x16x8xf32>
    %46 = tpu.concatenate %37, %38, %39, %40, %41, %42, %43, %44, %45 in 2 : vector<16x16x8xf32>, vector<16x16x8xf32>, vector<16x16x8xf32>, vector<16x16x8xf32>, vector<16x16x8xf32>, vector<16x16x8xf32>, vector<16x16x8xf32>, vector<16x16x8xf32>, vector<16x16x8xf32> -> vector<16x16x72xf32>
    %47 = vector.shape_cast %46 : vector<16x16x72xf32> to vector<256x72xf32>
    %c0_11 = arith.constant 0 : index
    %c0_12 = arith.constant 0 : index
    %48 = vector.load %arg5[%c0_11, %c0_12] : memref<72x8xf32, #tpu.memory_space<vmem>>, vector<72x8xf32>
    %cst_13 = arith.constant dense<0.000000e+00> : vector<256x8xf32>
    %49 = tpu.matmul %47, %48, %cst_13 {dimension_numbers = #tpu.dot_dimension_numbers<[1], [0], [0], [1], [0, 0, 1, 1], [], []>} : vector<256x72xf32>, vector<72x8xf32>, vector<256x8xf32> -> vector<256x8xf32>
    %c0_14 = arith.constant 0 : index
    %c0_15 = arith.constant 0 : index
    %50 = vector.load %arg6[%c0_14, %c0_15] : memref<1x8xf32, #tpu.memory_space<vmem>>, vector<1x8xf32>
    %51 = vector.broadcast %50 : vector<1x8xf32> to vector<256x8xf32>
    %52 = arith.addf %49, %51 : vector<256x8xf32>
    %cst_16 = arith.constant 0.000000e+00 : f32
    %53 = vector.broadcast %cst_16 : f32 to vector<256x8xf32>
    %54 = arith.maximumf %52, %53 : vector<256x8xf32>
    %55 = vector.shape_cast %54 : vector<256x8xf32> to vector<16x16x8xf32>
    %c0_17 = arith.constant 0 : index
    %c0_18 = arith.constant 0 : index
    %c0_19 = arith.constant 0 : index
    %c0_20 = arith.constant 0 : index
    %56 = vector.load %arg8[%c0_17, %c0_18, %c0_19, %c0_20] : memref<1x16x16x8xf32, #tpu.memory_space<vmem>>, vector<1x16x16x8xf32>
    %57 = vector.shape_cast %56 : vector<1x16x16x8xf32> to vector<16x16x8xf32>
    %58 = vector.shape_cast %55 : vector<16x16x8xf32> to vector<1x16x16x8xf32>
    tpu.vector_store %arg8[%c0_17, %c0_18, %c0_19, %c0_20], %58 {strides = array<i32>} : memref<1x16x16x8xf32, #tpu.memory_space<vmem>>, vector<1x16x16x8xf32>,
    %59 = vector.shape_cast %55 : vector<16x16x8xf32> to vector<8x2x16x8xf32>
    %cst_21 = arith.constant dense<0xFF800000> : vector<8x16x8xf32>
    %60 = vector.multi_reduction <maximumf>, %59, %cst_21 [1] : vector<8x2x16x8xf32> to vector<8x16x8xf32>
    %61 = vector.shape_cast %60 : vector<8x16x8xf32> to vector<8x8x2x8xf32>
    %cst_22 = arith.constant dense<0xFF800000> : vector<8x8x8xf32>
    %62 = vector.multi_reduction <maximumf>, %61, %cst_22 [2] : vector<8x8x2x8xf32> to vector<8x8x8xf32>
    %c0_23 = arith.constant 0 : index
    %c0_24 = arith.constant 0 : index
    %c0_25 = arith.constant 0 : index
    %c0_26 = arith.constant 0 : index
    %63 = vector.load %arg7[%c0_23, %c0_24, %c0_25, %c0_26] : memref<1x8x8x8xf32, #tpu.memory_space<vmem>>, vector<1x8x8x8xf32>
    %64 = vector.shape_cast %63 : vector<1x8x8x8xf32> to vector<8x8x8xf32>
    %65 = vector.shape_cast %62 : vector<8x8x8xf32> to vector<1x8x8x8xf32>
    tpu.vector_store %arg7[%c0_23, %c0_24, %c0_25, %c0_26], %65 {strides = array<i32>} : memref<1x8x8x8xf32, #tpu.memory_space<vmem>>, vector<1x8x8x8xf32>,
    return
  }
  func.func @transform_0(%arg0: i32, %arg1: i32) -> (i32, i32, i32, i32) {
    %c1_i32 = arith.constant 1 : i32
    %0 = arith.muli %arg0, %c1_i32 : i32
    %1 = arith.addi %0, %arg1 : i32
    %c0_i32 = arith.constant 0 : i32
    %c0_i32_0 = arith.constant 0 : i32
    %c0_i32_1 = arith.constant 0 : i32
    %c0_i32_2 = arith.constant 0 : i32
    return %1, %c0_i32, %c0_i32_0, %c0_i32_1 : i32, i32, i32, i32
  }
  func.func @transform_1(%arg0: i32, %arg1: i32) -> (i32, i32) {
    %c0_i32 = arith.constant 0 : i32
    %c0_i32_0 = arith.constant 0 : i32
    %c0_i32_1 = arith.constant 0 : i32
    return %c0_i32, %c0_i32_0 : i32, i32
  }
  func.func @transform_2(%arg0: i32, %arg1: i32) -> (i32, i32) {
    %c0_i32 = arith.constant 0 : i32
    %c0_i32_0 = arith.constant 0 : i32
    %c0_i32_1 = arith.constant 0 : i32
    return %c0_i32, %c0_i32_0 : i32, i32
  }
  func.func @transform_3(%arg0: i32, %arg1: i32) -> (i32, i32) {
    %c0_i32 = arith.constant 0 : i32
    %c0_i32_0 = arith.constant 0 : i32
    %c0_i32_1 = arith.constant 0 : i32
    return %c0_i32, %c0_i32_0 : i32, i32
  }
  func.func @transform_4(%arg0: i32, %arg1: i32) -> (i32, i32) {
    %c0_i32 = arith.constant 0 : i32
    %c0_i32_0 = arith.constant 0 : i32
    %c0_i32_1 = arith.constant 0 : i32
    return %c0_i32, %c0_i32_0 : i32, i32
  }
  func.func @transform_5(%arg0: i32, %arg1: i32) -> (i32, i32, i32, i32) {
    %c0_i32 = arith.constant 0 : i32
    %c0_i32_0 = arith.constant 0 : i32
    %c0_i32_1 = arith.constant 0 : i32
    return %arg0, %arg1, %c0_i32, %c0_i32_0 : i32, i32, i32, i32
  }
  func.func @transform_6(%arg0: i32, %arg1: i32) -> (i32, i32, i32, i32) {
    %c0_i32 = arith.constant 0 : i32
    %c0_i32_0 = arith.constant 0 : i32
    %c0_i32_1 = arith.constant 0 : i32
    return %arg0, %arg1, %c0_i32, %c0_i32_0 : i32, i32, i32, i32
  }
}

</mosaic_0001>

<llo_original>
// kernel: unet_down_conv.1
$region0: #{unet_down_conv.1}
  #allocation0 [shape = 'u32[]', space=smem, size = 0x4, offset = 0x4, fixed_abs, tag = 'smem constant byte address 0x4 - core index']
  #allocation1 [shape = 'u32[72,128]{1,0:T(1,128)}', space=vmem, size = 0x9000, scoped, tag = 'internal scratch']
  %s0 = inlined_call_operand.vmem [shape: f32[2,20,18,4], index: 0, kind: input, shape index: {}]
  %s1 = inlined_call_operand.vmem [shape: f32[36,8], index: 1, kind: input, shape index: {}]
  %s2 = inlined_call_operand.vmem [shape: f32[1,8], index: 2, kind: input, shape index: {}]
  %s3 = inlined_call_operand.vmem [shape: f32[72,8], index: 3, kind: input, shape index: {}]
  %s4 = inlined_call_operand.vmem [shape: f32[1,8], index: 4, kind: input, shape index: {}]
  %s5 = inlined_call_operand.vmem [shape: f32[2,8,8,8], index: 5, kind: output, shape index: {0}]
  %s6 = inlined_call_operand.vmem [shape: f32[2,16,16,8], index: 6, kind: output, shape index: {1}]
  %7 = xla_tuple %s5, %s6
  %s8 = sld [smem:[#allocation0]]
  $region61: #{unet_down_conv.1} parent=0
    _
  %s10 = ssub.s32 1, %s8
  %s11 = scalar_select 0, %s10, %s8
  loop: start=0, step=1, limit=4
  $region2: #{unet_down_conv.1} parent=0 // loop_pre_header
    _
  $region3: #{unet_down_conv.1} parent=0 // loop_header
    %s13 = sphi 0, %s17
    %p14 = scmp.ge.s32.totalorder %s13, 4
    %s20 = sphi 0, %s32
    %s21 = sphi 0, %s28
    %s22 = sphi 0, %s20
    %s23 = sphi 0, %s21
    %s24 = sphi 0, %s22
    %s25 = sphi 0, %s23
    %s37 = sphi 0, %s39
    %s40 = sphi 0, %s37
    %s41 = sphi 0, %s40
    %s57 = sphi 0, %s41
    %s61 = sphi 0, %s61
    %s63 = sphi 0, %s61
    %s64 = sphi 0, %s63
    %s78 = sphi 0, %s64
    %s82 = sphi 0, %s82
    %s84 = sphi 0, %s82
    %s85 = sphi 0, %s84
    %s99 = sphi 0, %s85
    %s103 = sphi 0, %s103
    %s105 = sphi 0, %s103
    %s106 = sphi 0, %s105
    %s120 = sphi 0, %s106
    %s124 = sphi 0, %s124
    %s126 = sphi 0, %s124
    %s127 = sphi 0, %s126
    %s141 = sphi 0, %s127
    %s149 = sphi 0, %s151
    %s152 = sphi 0, %s149
    %s153 = sphi 0, %s152
    %s169 = sphi 0, %s153
    %s177 = sphi 0, %s179
    %s180 = sphi 0, %s177
    %s181 = sphi 0, %s180
    %s197 = sphi 0, %s181
  $region4: #{unet_down_conv.1} parent=0 // loop_header_branch
    %16 = sbr.rel (%p14) target = $region8
  $region5: #{unet_down_conv.1} parent=0 // loop_body
    %s18 = ssub.s32 %s13, 1
    %s19 = ssub.s32 %s13, 2
    %s26 = sadd.s32 1, %s21
    %p27 = scmp.ge.s32.totalorder %s26, 1
    %s28 = scalar_select %p27, 0, %s26
    %s29 = sadd.s32 1, %s20
    %s30 = scalar_select %p27, %s29, %s20
    %p31 = scmp.ge.s32.totalorder %s30, 2
    %s32 = scalar_select %p31, 0, %s30
    %s33 = sadd.s32 %s20, %s21
    %s34 = sadd.s32 %s32, %s28
    %s35 = ssub.s32 %s33, %s34
    %p36 = scmp.eq.s32.totalorder %s35, 0
    %s38 = sadd.s32 %s37, 1
    %s39 = scalar_select %p36, %s37, %s38
    %p42 = pneg %p36
    %p43 = scmp.eq.s32.totalorder %s13, 1
    %p44 = por %p42, %p43
    %p45 = scmp.ne.s32.totalorder %s37, %s40
    %p46 = scmp.eq.s32.totalorder %s13, 0
    %p47 = por %p45, %p46
    %p48 = scmp.ne.s32.totalorder %s37, %s40
    %p49 = scmp.eq.s32.totalorder %s18, 1
    %p50 = por %p48, %p49
    %p51 = scmp.ne.s32.totalorder %s40, %s41
    %p52 = scmp.eq.s32.totalorder %s18, 0
    %p53 = por %p51, %p52
    %p54 = scmp.ne.s32.totalorder %s40, %s41
    %p55 = scmp.eq.s32.totalorder %s19, 1
    %p56 = por %p54, %p55
    %p58 = scmp.ne.s32.totalorder %s41, %s57
    %p59 = scmp.eq.s32.totalorder %s19, 0
    %p60 = por %p58, %p59
    %s62 = sadd.s32 %s61, 1
    %p65 = scmp.eq.s32.totalorder %s13, 1
    %p66 = scmp.ne.s32.totalorder %s61, %s63
    %p67 = scmp.eq.s32.totalorder %s13, 0
    %p68 = por %p66, %p67
    %p69 = scmp.ne.s32.totalorder %s61, %s63
    %p70 = scmp.eq.s32.totalorder %s18, 1
    %p71 = por %p69, %p70
    %p72 = scmp.ne.s32.totalorder %s63, %s64
    %p73 = scmp.eq.s32.totalorder %s18, 0
    %p74 = por %p72, %p73
    %p75 = scmp.ne.s32.totalorder %s63, %s64
    %p76 = scmp.eq.s32.totalorder %s19, 1
    %p77 = por %p75, %p76
    %p79 = scmp.ne.s32.totalorder %s64, %s78
    %p80 = scmp.eq.s32.totalorder %s19, 0
    %p81 = por %p79, %p80
    %s83 = sadd.s32 %s82, 1
    %p86 = scmp.eq.s32.totalorder %s13, 1
    %p87 = scmp.ne.s32.totalorder %s82, %s84
    %p88 = scmp.eq.s32.totalorder %s13, 0
    %p89 = por %p87, %p88
    %p90 = scmp.ne.s32.totalorder %s82, %s84
    %p91 = scmp.eq.s32.totalorder %s18, 1
    %p92 = por %p90, %p91
    %p93 = scmp.ne.s32.totalorder %s84, %s85
    %p94 = scmp.eq.s32.totalorder %s18, 0
    %p95 = por %p93, %p94
    %p96 = scmp.ne.s32.totalorder %s84, %s85
    %p97 = scmp.eq.s32.totalorder %s19, 1
    %p98 = por %p96, %p97
    %p100 = scmp.ne.s32.totalorder %s85, %s99
    %p101 = scmp.eq.s32.totalorder %s19, 0
    %p102 = por %p100, %p101
    %s104 = sadd.s32 %s103, 1
    %p107 = scmp.eq.s32.totalorder %s13, 1
    %p108 = scmp.ne.s32.totalorder %s103, %s105
    %p109 = scmp.eq.s32.totalorder %s13, 0
    %p110 = por %p108, %p109
    %p111 = scmp.ne.s32.totalorder %s103, %s105
    %p112 = scmp.eq.s32.totalorder %s18, 1
    %p113 = por %p111, %p112
    %p114 = scmp.ne.s32.totalorder %s105, %s106
    %p115 = scmp.eq.s32.totalorder %s18, 0
    %p116 = por %p114, %p115
    %p117 = scmp.ne.s32.totalorder %s105, %s106
    %p118 = scmp.eq.s32.totalorder %s19, 1
    %p119 = por %p117, %p118
    %p121 = scmp.ne.s32.totalorder %s106, %s120
    %p122 = scmp.eq.s32.totalorder %s19, 0
    %p123 = por %p121, %p122
    %s125 = sadd.s32 %s124, 1
    %p128 = scmp.eq.s32.totalorder %s13, 1
    %p129 = scmp.ne.s32.totalorder %s124, %s126
    %p130 = scmp.eq.s32.totalorder %s13, 0
    %p131 = por %p129, %p130
    %p132 = scmp.ne.s32.totalorder %s124, %s126
    %p133 = scmp.eq.s32.totalorder %s18, 1
    %p134 = por %p132, %p133
    %p135 = scmp.ne.s32.totalorder %s126, %s127
    %p136 = scmp.eq.s32.totalorder %s18, 0
    %p137 = por %p135, %p136
    %p138 = scmp.ne.s32.totalorder %s126, %s127
    %p139 = scmp.eq.s32.totalorder %s19, 1
    %p140 = por %p138, %p139
    %p142 = scmp.ne.s32.totalorder %s127, %s141
    %p143 = scmp.eq.s32.totalorder %s19, 0
    %p144 = por %p142, %p143
    %s145 = ssub.s32 %s20, %s32
    %s146 = ssub.s32 %s21, %s28
    %s147 = sor.u32 %s145, %s146
    %p148 = scmp.eq.s32.totalorder %s147, 0
    %s150 = sadd.s32 %s149, 1
    %s151 = scalar_select %p148, %s149, %s150
    %p154 = pneg %p148
    %p155 = scmp.eq.s32.totalorder %s13, 1
    %p156 = por %p154, %p155
    %p157 = scmp.ne.s32.totalorder %s149, %s152
    %p158 = scmp.eq.s32.totalorder %s13, 0
    %p159 = por %p157, %p158
    %p160 = scmp.ne.s32.totalorder %s149, %s152
    %p161 = scmp.eq.s32.totalorder %s18, 1
    %p162 = por %p160, %p161
    %p163 = scmp.ne.s32.totalorder %s152, %s153
    %p164 = scmp.eq.s32.totalorder %s18, 0
    %p165 = por %p163, %p164
    %p166 = scmp.ne.s32.totalorder %s152, %s153
    %p167 = scmp.eq.s32.totalorder %s19, 1
    %p168 = por %p166, %p167
    %p170 = scmp.ne.s32.totalorder %s153, %s169
    %p171 = scmp.eq.s32.totalorder %s19, 0
    %p172 = por %p170, %p171
    %s173 = ssub.s32 %s20, %s32
    %s174 = ssub.s32 %s21, %s28
    %s175 = sor.u32 %s173, %s174
    %p176 = scmp.eq.s32.totalorder %s175, 0
    %s178 = sadd.s32 %s177, 1
    %s179 = scalar_select %p176, %s177, %s178
    %p182 = pneg %p176
    %p183 = scmp.eq.s32.totalorder %s13, 1
    %p184 = por %p182, %p183
    %p185 = scmp.ne.s32.totalorder %s177, %s180
    %p186 = scmp.eq.s32.totalorder %s13, 0
    %p187 = por %p185, %p186
    %p188 = scmp.ne.s32.totalorder %s177, %s180
    %p189 = scmp.eq.s32.totalorder %s18, 1
    %p190 = por %p188, %p189
    %p191 = scmp.ne.s32.totalorder %s180, %s181
    %p192 = scmp.eq.s32.totalorder %s18, 0
    %p193 = por %p191, %p192
    %p194 = scmp.ne.s32.totalorder %s180, %s181
    %p195 = scmp.eq.s32.totalorder %s19, 1
    %p196 = por %p194, %p195
    %p198 = scmp.ne.s32.totalorder %s181, %s197
    %p199 = scmp.eq.s32.totalorder %s19, 0
    %p200 = por %p198, %p199
    %p201 = scmp.le.s32.totalorder 1, %s13
    %p202 = scmp.lt.s32.totalorder %s13, 3
    %p203 = pnand %p201, %p202
    %p204 = pneg %p203
    // Predicated region
    $region9: #{unet_down_conv.1} parent=5 // pred_check
      _
    $region10: #{unet_down_conv.1} parent=5 // pred_check_branch
      %206 = sbr.rel (%p203) target = $region12
    $region11: #{unet_down_conv.1} parent=5 // pred_region
      %s207 = ssub.s32 %s13, 1
      // Predicated region
      $region13: #{unet_down_conv.1} parent=11 // pred_check
        %p208 = pneg %p74
      $region14: #{unet_down_conv.1} parent=11 // pred_check_branch
        %210 = sbr.rel (%p208) target = $region16
      $region15: #{unet_down_conv.1} parent=11 // pred_region
        _
      $region16: #{unet_down_conv.1} parent=11 // pred_fallthru
        _
      // Predicated region
      $region17: #{unet_down_conv.1} parent=11 // pred_check
        %p211 = pneg %p95
      $region18: #{unet_down_conv.1} parent=11 // pred_check_branch
        %213 = sbr.rel (%p211) target = $region20
      $region19: #{unet_down_conv.1} parent=11 // pred_region
        _
      $region20: #{unet_down_conv.1} parent=11 // pred_fallthru
        _
      // Predicated region
      $region21: #{unet_down_conv.1} parent=11 // pred_check
        %p214 = pneg %p116
      $region22: #{unet_down_conv.1} parent=11 // pred_check_branch
        %216 = sbr.rel (%p214) target = $region24
      $region23: #{unet_down_conv.1} parent=11 // pred_region
        _
      $region24: #{unet_down_conv.1} parent=11 // pred_fallthru
        _
      // Predicated region
      $region25: #{unet_down_conv.1} parent=11 // pred_check
        %p217 = pneg %p137
      $region26: #{unet_down_conv.1} parent=11 // pred_check_branch
        %219 = sbr.rel (%p217) target = $region28
      $region27: #{unet_down_conv.1} parent=11 // pred_region
        _
      $region28: #{unet_down_conv.1} parent=11 // pred_fallthru
        _
    $region12: #{unet_down_conv.1} parent=5 // pred_fallthru
      _
    %p220 = scmp.lt.s32.totalorder %s13, 2
    // Predicated region
    $region29: #{unet_down_conv.1} parent=5 // pred_check
      %p221 = pneg %p220
    $region30: #{unet_down_conv.1} parent=5 // pred_check_branch
      %223 = sbr.rel (%p221) target = $region32
    $region31: #{unet_down_conv.1} parent=5 // pred_region
      // Predicated region
      $region33: #{unet_down_conv.1} parent=31 // pred_check
        %p224 = pneg %p47
      $region34: #{unet_down_conv.1} parent=31 // pred_check_branch
        %226 = sbr.rel (%p224) target = $region36
      $region35: #{unet_down_conv.1} parent=31 // pred_region
        %s227 = sadd.s32 %s20, %s21
        %p228 = scmp.lt.s32.totalorder %s227, 1
        %s229 = scalar_select %p228, %s227, 1
        %s230 = smul.addr %s229, 60
        %s231 = smul.addr %s230, 8
        %s232 = scalar_lea.vmem %s0, %s231
        %s233 = sadd.s32 %s20, %s21
      $region36: #{unet_down_conv.1} parent=31 // pred_fallthru
        _
    $region32: #{unet_down_conv.1} parent=5 // pred_fallthru
      _
    %p234 = scmp.le.s32.totalorder 1, %s13
    %p235 = scmp.lt.s32.totalorder %s13, 3
    %p236 = pnand %p234, %p235
    %p237 = pneg %p236
    // Predicated region
    $region37: #{unet_down_conv.1} parent=5 // pred_check
      _
    $region38: #{unet_down_conv.1} parent=5 // pred_check_branch
      %239 = sbr.rel (%p236) target = $region40
    $region39: #{unet_down_conv.1} parent=5 // pred_region
      %s240 = ssub.s32 %s13, 1
      %s241 = sadd.s32 %s22, %s23
      %p242 = scmp.lt.s32.totalorder %s241, 1
      %s243 = scalar_select %p242, %s241, 1
      %s244 = smul.addr %s243, 60
      %s245 = smul.addr %s244, 8
      %s246 = scalar_lea.vmem %s0, %s245
      %p247 = pneg %p53
      %p248 = pneg %p50
      %p249 = pneg %p74
      %p250 = pneg %p71
      %p251 = pneg %p95
      %p252 = pneg %p92
      %p253 = pneg %p116
      %p254 = pneg %p113
      %p255 = pneg %p137
      %p256 = pneg %p134
      %p257 = pneg %p165
      %p258 = pneg %p162
      %s259 = smul.u32 8, %s23
      %p260 = scmp.lt.s32.totalorder %s22, 1
      %s261 = scalar_select %p260, %s22, 1
      %p262 = scmp.lt.s32.totalorder %s259, 7
      %s263 = scalar_select %p262, %s259, 7
      %s264 = smul.addr %s261, 8
      %s265 = sadd.s32 %s263, %s264
      %s266 = smul.addr %s265, 8
      %s267 = scalar_lea.vmem %s5, %s266
      %p268 = pneg %p193
      %p269 = pneg %p190
      %s270 = smul.u32 16, %s23
      %p271 = scmp.lt.s32.totalorder %s22, 1
      %s272 = scalar_select %p271, %s22, 1
      %p273 = scmp.lt.s32.totalorder %s270, 15
      %s274 = scalar_select %p273, %s270, 15
      %s275 = smul.addr %s274, 2
      %s276 = smul.addr %s272, 32
      %s277 = sadd.s32 %s275, %s276
      %s278 = smul.addr %s277, 8
      %s279 = scalar_lea.vmem %s6, %s278
      %s280 = sadd.s32 %s22, %s23
      %p281 = scmp.lt.s32.totalorder %s280, 1
      %s282 = scalar_select %p281, %s280, 1
      %s283 = smul.addr %s282, 60
      %s284 = smul.addr %s283, 8
      %s285 = scalar_lea.vmem %s0, %s284
      %s286 = sadd.s32 %s22, %s23
      %s287 = smul.u32 8, %s23
      %p288 = scmp.lt.s32.totalorder %s22, 1
      %s289 = scalar_select %p288, %s22, 1
      %p290 = scmp.lt.s32.totalorder %s287, 7
      %s291 = scalar_select %p290, %s287, 7
      %s292 = smul.addr %s289, 8
      %s293 = sadd.s32 %s291, %s292
      %s294 = smul.addr %s293, 8
      %s295 = scalar_lea.vmem %s5, %s294
      %s296 = smul.u32 8, %s23
      %s297 = smul.u32 16, %s23
      %p298 = scmp.lt.s32.totalorder %s22, 1
      %s299 = scalar_select %p298, %s22, 1
      %p300 = scmp.lt.s32.totalorder %s297, 15
      %s301 = scalar_select %p300, %s297, 15
      %s302 = smul.addr %s301, 2
      %s303 = smul.addr %s299, 32
      %s304 = sadd.s32 %s302, %s303
      %s305 = smul.addr %s304, 8
      %s306 = scalar_lea.vmem %s6, %s305
      %s307 = smul.u32 16, %s23
      %v308 = vld [vmem:[%s285] sm:$0xff]
      %v309 = vld [vmem:[%s285 + $0x8] sm:$0xff]
      %v310 = vld [vmem:[%s285 + $0x10] sm:$0x3]
      %v311 = vld [vmem:[%s285 + $0x18] sm:$0xff]
      %v312 = vld [vmem:[%s285 + $0x20] sm:$0xff]
      %v313 = vld [vmem:[%s285 + $0x28] sm:$0x3]
      %v314 = vld [vmem:[%s285 + $0x30] sm:$0xff]
      %v315 = vld [vmem:[%s285 + $0x38] sm:$0xff]
      %v316 = vld [vmem:[%s285 + $0x40] sm:$0x3]
      %v317 = vld [vmem:[%s285 + $0x48] sm:$0xff]
      %v318 = vld [vmem:[%s285 + $0x50] sm:$0xff]
      %v319 = vld [vmem:[%s285 + $0x58] sm:$0x3]
      %v320 = vld [vmem:[%s285 + $0x60] sm:$0xff]
      %v321 = vld [vmem:[%s285 + $0x68] sm:$0xff]
      %v322 = vld [vmem:[%s285 + $0x70] sm:$0x3]
      %v323 = vld [vmem:[%s285 + $0x78] sm:$0xff]
      %v324 = vld [vmem:[%s285 + $0x80] sm:$0xff]
      %v325 = vld [vmem:[%s285 + $0x88] sm:$0x3]
      %v326 = vld [vmem:[%s285 + $0x90] sm:$0xff]
      %v327 = vld [vmem:[%s285 + $0x98] sm:$0xff]
      %v328 = vld [vmem:[%s285 + $0xa0] sm:$0x3]
      %v329 = vld [vmem:[%s285 + $0xa8] sm:$0xff]
      %v330 = vld [vmem:[%s285 + $0xb0] sm:$0xff]
      %v331 = vld [vmem:[%s285 + $0xb8] sm:$0x3]
      %v332 = vld [vmem:[%s285 + $0xc0] sm:$0xff]
      %v333 = vld [vmem:[%s285 + $0xc8] sm:$0xff]
      %v334 = vld [vmem:[%s285 + $0xd0] sm:$0x3]
      %v335 = vld [vmem:[%s285 + $0xd8] sm:$0xff]
      %v336 = vld [vmem:[%s285 + $0xe0] sm:$0xff]
      %v337 = vld [vmem:[%s285 + $0xe8] sm:$0x3]
      %v338 = vld [vmem:[%s285 + $0xf0] sm:$0xff]
      %v339 = vld [vmem:[%s285 + $0xf8] sm:$0xff]
      %v340 = vld [vmem:[%s285 + $0x100] sm:$0x3]
      %v341 = vld [vmem:[%s285 + $0x108] sm:$0xff]
      %v342 = vld [vmem:[%s285 + $0x110] sm:$0xff]
      %v343 = vld [vmem:[%s285 + $0x118] sm:$0x3]
      %v344 = vld [vmem:[%s285 + $0x120] sm:$0xff]
      %v345 = vld [vmem:[%s285 + $0x128] sm:$0xff]
      %v346 = vld [vmem:[%s285 + $0x130] sm:$0x3]
      %v347 = vld [vmem:[%s285 + $0x138] sm:$0xff]
      %v348 = vld [vmem:[%s285 + $0x140] sm:$0xff]
      %v349 = vld [vmem:[%s285 + $0x148] sm:$0x3]
      %v350 = vld [vmem:[%s285 + $0x150] sm:$0xff]
      %v351 = vld [vmem:[%s285 + $0x158] sm:$0xff]
      %v352 = vld [vmem:[%s285 + $0x160] sm:$0x3]
      %v353 = vld [vmem:[%s285 + $0x168] sm:$0xff]
      %v354 = vld [vmem:[%s285 + $0x170] sm:$0xff]
      %v355 = vld [vmem:[%s285 + $0x178] sm:$0x3]
      %v356 = vld [vmem:[%s285 + $0x180] sm:$0xff]
      %v357 = vld [vmem:[%s285 + $0x188] sm:$0xff]
      %v358 = vld [vmem:[%s285 + $0x190] sm:$0x3]
      %v359 = vld [vmem:[%s285 + $0x198] sm:$0xff]
      %v360 = vld [vmem:[%s285 + $0x1a0] sm:$0xff]
      %v361 = vld [vmem:[%s285 + $0x1a8] sm:$0x3]
      %v362 = vld [vmem:[%s285 + $0x1b0] sm:$0xff]
      %v363 = vld [vmem:[%s285 + $0x1b8] sm:$0xff]
      %v364 = vld [vmem:[%s285 + $0x1c0] sm:$0x3]
      %v365 = vld [vmem:[%s285 + $0x1c8] sm:$0xff]
      %v366 = vld [vmem:[%s285 + $0x1d0] sm:$0xff]
      %v367 = vld [vmem:[%s285 + $0x1d8] sm:$0x3]
      %vm422 = vcmask 1046528
      %v423 = vrot.slane %v308, 1
      %v424 = vrot.slane %v309, 1
      %v425 = vsel %vm422, %v423, %v424
      %v426 = vrot.slane %v310, 1
      %v427 = vsel %vm422, %v424, %v426
      %v428 = vrot.slane %v311, 1
      %v429 = vrot.slane %v312, 1
      %v430 = vsel %vm422, %v428, %v429
      %v431 = vrot.slane %v313, 1
      %v432 = vsel %vm422, %v429, %v431
      %v433 = vrot.slane %v314, 1
      %v434 = vrot.slane %v315, 1
      %v435 = vsel %vm422, %v433, %v434
      %v436 = vrot.slane %v316, 1
      %v437 = vsel %vm422, %v434, %v436
      %v438 = vrot.slane %v317, 1
      %v439 = vrot.slane %v318, 1
      %v440 = vsel %vm422, %v438, %v439
      %v441 = vrot.slane %v319, 1
      %v442 = vsel %vm422, %v439, %v441
      %v443 = vrot.slane %v320, 1
      %v444 = vrot.slane %v321, 1
      %v445 = vsel %vm422, %v443, %v444
      %v446 = vrot.slane %v322, 1
      %v447 = vsel %vm422, %v444, %v446
      %v448 = vrot.slane %v323, 1
      %v449 = vrot.slane %v324, 1
      %v450 = vsel %vm422, %v448, %v449
      %v451 = vrot.slane %v325, 1
      %v452 = vsel %vm422, %v449, %v451
      %v453 = vrot.slane %v326, 1
      %v454 = vrot.slane %v327, 1
      %v455 = vsel %vm422, %v453, %v454
      %v456 = vrot.slane %v328, 1
      %v457 = vsel %vm422, %v454, %v456
      %v458 = vrot.slane %v329, 1
      %v459 = vrot.slane %v330, 1
      %v460 = vsel %vm422, %v458, %v459
      %v461 = vrot.slane %v331, 1
      %v462 = vsel %vm422, %v459, %v461
      %v463 = vrot.slane %v332, 1
      %v464 = vrot.slane %v333, 1
      %v465 = vsel %vm422, %v463, %v464
      %v466 = vrot.slane %v334, 1
      %v467 = vsel %vm422, %v464, %v466
      %v468 = vrot.slane %v335, 1
      %v469 = vrot.slane %v336, 1
      %v470 = vsel %vm422, %v468, %v469
      %v471 = vrot.slane %v337, 1
      %v472 = vsel %vm422, %v469, %v471
      %v473 = vrot.slane %v338, 1
      %v474 = vrot.slane %v339, 1
      %v475 = vsel %vm422, %v473, %v474
      %v476 = vrot.slane %v340, 1
      %v477 = vsel %vm422, %v474, %v476
      %v478 = vrot.slane %v341, 1
      %v479 = vrot.slane %v342, 1
      %v480 = vsel %vm422, %v478, %v479
      %v481 = vrot.slane %v343, 1
      %v482 = vsel %vm422, %v479, %v481
      %v483 = vrot.slane %v344, 1
      %v484 = vrot.slane %v345, 1
      %v485 = vsel %vm422, %v483, %v484
      %v486 = vrot.slane %v346, 1
      %v487 = vsel %vm422, %v484, %v486
      %v488 = vrot.slane %v347, 1
      %v489 = vrot.slane %v348, 1
      %v490 = vsel %vm422, %v488, %v489
      %v491 = vrot.slane %v349, 1
      %v492 = vsel %vm422, %v489, %v491
      %v493 = vrot.slane %v350, 1
      %v494 = vrot.slane %v351, 1
      %v495 = vsel %vm422, %v493, %v494
      %v496 = vrot.slane %v352, 1
      %v497 = vsel %vm422, %v494, %v496
      %v498 = vrot.slane %v353, 1
      %v499 = vrot.slane %v354, 1
      %v500 = vsel %vm422, %v498, %v499
      %v501 = vrot.slane %v355, 1
      %v502 = vsel %vm422, %v499, %v501
      %v503 = vrot.slane %v356, 1
      %v504 = vrot.slane %v357, 1
      %v505 = vsel %vm422, %v503, %v504
      %v506 = vrot.slane %v358, 1
      %v507 = vsel %vm422, %v504, %v506
      %v508 = vrot.slane %v359, 1
      %v509 = vrot.slane %v360, 1
      %v510 = vsel %vm422, %v508, %v509
      %v511 = vrot.slane %v361, 1
      %v512 = vsel %vm422, %v509, %v511
      %513 = vrot.lane.b32.xlu0 %v425, 4
      %v514 = vpop.permute.xlu0 %513
      %515 = vrot.lane.b32.xlu0 %v427, 4
      %v516 = vpop.permute.xlu0 %515
      %517 = vrot.lane.b32.xlu0 %v430, 4
      %v518 = vpop.permute.xlu0 %517
      %519 = vrot.lane.b32.xlu0 %v432, 4
      %v520 = vpop.permute.xlu0 %519
      %521 = vrot.lane.b32.xlu0 %v435, 4
      %v522 = vpop.permute.xlu0 %521
      %523 = vrot.lane.b32.xlu0 %v437, 4
      %v524 = vpop.permute.xlu0 %523
      %525 = vrot.lane.b32.xlu0 %v440, 4
      %v526 = vpop.permute.xlu0 %525
      %527 = vrot.lane.b32.xlu0 %v442, 4
      %v528 = vpop.permute.xlu0 %527
      %529 = vrot.lane.b32.xlu0 %v445, 4
      %v530 = vpop.permute.xlu0 %529
      %531 = vrot.lane.b32.xlu0 %v447, 4
      %v532 = vpop.permute.xlu0 %531
      %533 = vrot.lane.b32.xlu0 %v450, 4
      %v534 = vpop.permute.xlu0 %533
      %535 = vrot.lane.b32.xlu0 %v452, 4
      %v536 = vpop.permute.xlu0 %535
      %537 = vrot.lane.b32.xlu0 %v455, 4
      %v538 = vpop.permute.xlu0 %537
      %539 = vrot.lane.b32.xlu0 %v457, 4
      %v540 = vpop.permute.xlu0 %539
      %541 = vrot.lane.b32.xlu0 %v460, 4
      %v542 = vpop.permute.xlu0 %541
      %543 = vrot.lane.b32.xlu0 %v462, 4
      %v544 = vpop.permute.xlu0 %543
      %545 = vrot.lane.b32.xlu0 %v465, 4
      %v546 = vpop.permute.xlu0 %545
      %547 = vrot.lane.b32.xlu0 %v467, 4
      %v548 = vpop.permute.xlu0 %547
      %549 = vrot.lane.b32.xlu0 %v470, 4
      %v550 = vpop.permute.xlu0 %549
      %551 = vrot.lane.b32.xlu0 %v472, 4
      %v552 = vpop.permute.xlu0 %551
      %553 = vrot.lane.b32.xlu0 %v475, 4
      %v554 = vpop.permute.xlu0 %553
      %555 = vrot.lane.b32.xlu0 %v477, 4
      %v556 = vpop.permute.xlu0 %555
      %557 = vrot.lane.b32.xlu0 %v480, 4
      %v558 = vpop.permute.xlu0 %557
      %559 = vrot.lane.b32.xlu0 %v482, 4
      %v560 = vpop.permute.xlu0 %559
      %561 = vrot.lane.b32.xlu0 %v485, 4
      %v562 = vpop.permute.xlu0 %561
      %563 = vrot.lane.b32.xlu0 %v487, 4
      %v564 = vpop.permute.xlu0 %563
      %565 = vrot.lane.b32.xlu0 %v490, 4
      %v566 = vpop.permute.xlu0 %565
      %567 = vrot.lane.b32.xlu0 %v492, 4
      %v568 = vpop.permute.xlu0 %567
      %569 = vrot.lane.b32.xlu0 %v495, 4
      %v570 = vpop.permute.xlu0 %569
      %571 = vrot.lane.b32.xlu0 %v497, 4
      %v572 = vpop.permute.xlu0 %571
      %573 = vrot.lane.b32.xlu0 %v500, 4
      %v574 = vpop.permute.xlu0 %573
      %575 = vrot.lane.b32.xlu0 %v502, 4
      %v576 = vpop.permute.xlu0 %575
      %577 = vrot.lane.b32.xlu0 %v505, 4
      %v578 = vpop.permute.xlu0 %577
      %579 = vrot.lane.b32.xlu0 %v507, 4
      %v580 = vpop.permute.xlu0 %579
      %581 = vrot.lane.b32.xlu0 %v510, 4
      %v582 = vpop.permute.xlu0 %581
      %583 = vrot.lane.b32.xlu0 %v512, 4
      %v584 = vpop.permute.xlu0 %583
      %vm621 = vcmask 1045504
      %v622 = vrot.slane %v308, 2
      %v623 = vrot.slane %v309, 2
      %v624 = vsel %vm621, %v622, %v623
      %v625 = vrot.slane %v310, 2
      %v626 = vsel %vm621, %v623, %v625
      %v627 = vrot.slane %v311, 2
      %v628 = vrot.slane %v312, 2
      %v629 = vsel %vm621, %v627, %v628
      %v630 = vrot.slane %v313, 2
      %v631 = vsel %vm621, %v628, %v630
      %v632 = vrot.slane %v314, 2
      %v633 = vrot.slane %v315, 2
      %v634 = vsel %vm621, %v632, %v633
      %v635 = vrot.slane %v316, 2
      %v636 = vsel %vm621, %v633, %v635
      %v637 = vrot.slane %v317, 2
      %v638 = vrot.slane %v318, 2
      %v639 = vsel %vm621, %v637, %v638
      %v640 = vrot.slane %v319, 2
      %v641 = vsel %vm621, %v638, %v640
      %v642 = vrot.slane %v320, 2
      %v643 = vrot.slane %v321, 2
      %v644 = vsel %vm621, %v642, %v643
      %v645 = vrot.slane %v322, 2
      %v646 = vsel %vm621, %v643, %v645
      %v647 = vrot.slane %v323, 2
      %v648 = vrot.slane %v324, 2
      %v649 = vsel %vm621, %v647, %v648
      %v650 = vrot.slane %v325, 2
      %v651 = vsel %vm621, %v648, %v650
      %v652 = vrot.slane %v326, 2
      %v653 = vrot.slane %v327, 2
      %v654 = vsel %vm621, %v652, %v653
      %v655 = vrot.slane %v328, 2
      %v656 = vsel %vm621, %v653, %v655
      %v657 = vrot.slane %v329, 2
      %v658 = vrot.slane %v330, 2
      %v659 = vsel %vm621, %v657, %v658
      %v660 = vrot.slane %v331, 2
      %v661 = vsel %vm621, %v658, %v660
      %v662 = vrot.slane %v332, 2
      %v663 = vrot.slane %v333, 2
      %v664 = vsel %vm621, %v662, %v663
      %v665 = vrot.slane %v334, 2
      %v666 = vsel %vm621, %v663, %v665
      %v667 = vrot.slane %v335, 2
      %v668 = vrot.slane %v336, 2
      %v669 = vsel %vm621, %v667, %v668
      %v670 = vrot.slane %v337, 2
      %v671 = vsel %vm621, %v668, %v670
      %v672 = vrot.slane %v338, 2
      %v673 = vrot.slane %v339, 2
      %v674 = vsel %vm621, %v672, %v673
      %v675 = vrot.slane %v340, 2
      %v676 = vsel %vm621, %v673, %v675
      %v677 = vrot.slane %v341, 2
      %v678 = vrot.slane %v342, 2
      %v679 = vsel %vm621, %v677, %v678
      %v680 = vrot.slane %v343, 2
      %v681 = vsel %vm621, %v678, %v680
      %v682 = vrot.slane %v344, 2
      %v683 = vrot.slane %v345, 2
      %v684 = vsel %vm621, %v682, %v683
      %v685 = vrot.slane %v346, 2
      %v686 = vsel %vm621, %v683, %v685
      %v687 = vrot.slane %v347, 2
      %v688 = vrot.slane %v348, 2
      %v689 = vsel %vm621, %v687, %v688
      %v690 = vrot.slane %v349, 2
      %v691 = vsel %vm621, %v688, %v690
      %v692 = vrot.slane %v350, 2
      %v693 = vrot.slane %v351, 2
      %v694 = vsel %vm621, %v692, %v693
      %v695 = vrot.slane %v352, 2
      %v696 = vsel %vm621, %v693, %v695
      %v697 = vrot.slane %v353, 2
      %v698 = vrot.slane %v354, 2
      %v699 = vsel %vm621, %v697, %v698
      %v700 = vrot.slane %v355, 2
      %v701 = vsel %vm621, %v698, %v700
      %v702 = vrot.slane %v356, 2
      %v703 = vrot.slane %v357, 2
      %v704 = vsel %vm621, %v702, %v703
      %v705 = vrot.slane %v358, 2
      %v706 = vsel %vm621, %v703, %v705
      %v707 = vrot.slane %v359, 2
      %v708 = vrot.slane %v360, 2
      %v709 = vsel %vm621, %v707, %v708
      %v710 = vrot.slane %v361, 2
      %v711 = vsel %vm621, %v708, %v710
      %712 = vrot.lane.b32.xlu0 %v624, 8
      %v713 = vpop.permute.xlu0 %712
      %714 = vrot.lane.b32.xlu0 %v626, 8
      %v715 = vpop.permute.xlu0 %714
      %716 = vrot.lane.b32.xlu0 %v629, 8
      %v717 = vpop.permute.xlu0 %716
      %718 = vrot.lane.b32.xlu0 %v631, 8
      %v719 = vpop.permute.xlu0 %718
      %720 = vrot.lane.b32.xlu0 %v634, 8
      %v721 = vpop.permute.xlu0 %720
      %722 = vrot.lane.b32.xlu0 %v636, 8
      %v723 = vpop.permute.xlu0 %722
      %724 = vrot.lane.b32.xlu0 %v639, 8
      %v725 = vpop.permute.xlu0 %724
      %726 = vrot.lane.b32.xlu0 %v641, 8
      %v727 = vpop.permute.xlu0 %726
      %728 = vrot.lane.b32.xlu0 %v644, 8
      %v729 = vpop.permute.xlu0 %728
      %730 = vrot.lane.b32.xlu0 %v646, 8
      %v731 = vpop.permute.xlu0 %730
      %732 = vrot.lane.b32.xlu0 %v649, 8
      %v733 = vpop.permute.xlu0 %732
      %734 = vrot.lane.b32.xlu0 %v651, 8
      %v735 = vpop.permute.xlu0 %734
      %736 = vrot.lane.b32.xlu0 %v654, 8
      %v737 = vpop.permute.xlu0 %736
      %738 = vrot.lane.b32.xlu0 %v656, 8
      %v739 = vpop.permute.xlu0 %738
      %740 = vrot.lane.b32.xlu0 %v659, 8
      %v741 = vpop.permute.xlu0 %740
      %742 = vrot.lane.b32.xlu0 %v661, 8
      %v743 = vpop.permute.xlu0 %742
      %744 = vrot.lane.b32.xlu0 %v664, 8
      %v745 = vpop.permute.xlu0 %744
      %746 = vrot.lane.b32.xlu0 %v666, 8
      %v747 = vpop.permute.xlu0 %746
      %748 = vrot.lane.b32.xlu0 %v669, 8
      %v749 = vpop.permute.xlu0 %748
      %750 = vrot.lane.b32.xlu0 %v671, 8
      %v751 = vpop.permute.xlu0 %750
      %752 = vrot.lane.b32.xlu0 %v674, 8
      %v753 = vpop.permute.xlu0 %752
      %754 = vrot.lane.b32.xlu0 %v676, 8
      %v755 = vpop.permute.xlu0 %754
      %756 = vrot.lane.b32.xlu0 %v679, 8
      %v757 = vpop.permute.xlu0 %756
      %758 = vrot.lane.b32.xlu0 %v681, 8
      %v759 = vpop.permute.xlu0 %758
      %760 = vrot.lane.b32.xlu0 %v684, 8
      %v761 = vpop.permute.xlu0 %760
      %762 = vrot.lane.b32.xlu0 %v686, 8
      %v763 = vpop.permute.xlu0 %762
      %764 = vrot.lane.b32.xlu0 %v689, 8
      %v765 = vpop.permute.xlu0 %764
      %766 = vrot.lane.b32.xlu0 %v691, 8
      %v767 = vpop.permute.xlu0 %766
      %768 = vrot.lane.b32.xlu0 %v694, 8
      %v769 = vpop.permute.xlu0 %768
      %770 = vrot.lane.b32.xlu0 %v696, 8
      %v771 = vpop.permute.xlu0 %770
      %772 = vrot.lane.b32.xlu0 %v699, 8
      %v773 = vpop.permute.xlu0 %772
      %774 = vrot.lane.b32.xlu0 %v701, 8
      %v775 = vpop.permute.xlu0 %774
      %776 = vrot.lane.b32.xlu0 %v704, 8
      %v777 = vpop.permute.xlu0 %776
      %778 = vrot.lane.b32.xlu0 %v706, 8
      %v779 = vpop.permute.xlu0 %778
      %780 = vrot.lane.b32.xlu0 %v709, 8
      %v781 = vpop.permute.xlu0 %780
      %782 = vrot.lane.b32.xlu0 %v711, 8
      %v783 = vpop.permute.xlu0 %782
      %822 = vrot.lane.b32.xlu0 %v311, 12
      %v823 = vpop.permute.xlu0 %822
      %824 = vrot.lane.b32.xlu0 %v312, 12
      %v825 = vpop.permute.xlu0 %824
      %826 = vrot.lane.b32.xlu0 %v314, 12
      %v827 = vpop.permute.xlu0 %826
      %828 = vrot.lane.b32.xlu0 %v315, 12
      %v829 = vpop.permute.xlu0 %828
      %830 = vrot.lane.b32.xlu0 %v317, 12
      %v831 = vpop.permute.xlu0 %830
      %832 = vrot.lane.b32.xlu0 %v318, 12
      %v833 = vpop.permute.xlu0 %832
      %834 = vrot.lane.b32.xlu0 %v320, 12
      %v835 = vpop.permute.xlu0 %834
      %836 = vrot.lane.b32.xlu0 %v321, 12
      %v837 = vpop.permute.xlu0 %836
      %838 = vrot.lane.b32.xlu0 %v323, 12
      %v839 = vpop.permute.xlu0 %838
      %840 = vrot.lane.b32.xlu0 %v324, 12
      %v841 = vpop.permute.xlu0 %840
      %842 = vrot.lane.b32.xlu0 %v326, 12
      %v843 = vpop.permute.xlu0 %842
      %844 = vrot.lane.b32.xlu0 %v327, 12
      %v845 = vpop.permute.xlu0 %844
      %846 = vrot.lane.b32.xlu0 %v329, 12
      %v847 = vpop.permute.xlu0 %846
      %848 = vrot.lane.b32.xlu0 %v330, 12
      %v849 = vpop.permute.xlu0 %848
      %850 = vrot.lane.b32.xlu0 %v332, 12
      %v851 = vpop.permute.xlu0 %850
      %852 = vrot.lane.b32.xlu0 %v333, 12
      %v853 = vpop.permute.xlu0 %852
      %854 = vrot.lane.b32.xlu0 %v335, 12
      %v855 = vpop.permute.xlu0 %854
      %856 = vrot.lane.b32.xlu0 %v336, 12
      %v857 = vpop.permute.xlu0 %856
      %858 = vrot.lane.b32.xlu0 %v338, 12
      %v859 = vpop.permute.xlu0 %858
      %860 = vrot.lane.b32.xlu0 %v339, 12
      %v861 = vpop.permute.xlu0 %860
      %862 = vrot.lane.b32.xlu0 %v341, 12
      %v863 = vpop.permute.xlu0 %862
      %864 = vrot.lane.b32.xlu0 %v342, 12
      %v865 = vpop.permute.xlu0 %864
      %866 = vrot.lane.b32.xlu0 %v344, 12
      %v867 = vpop.permute.xlu0 %866
      %868 = vrot.lane.b32.xlu0 %v345, 12
      %v869 = vpop.permute.xlu0 %868
      %870 = vrot.lane.b32.xlu0 %v347, 12
      %v871 = vpop.permute.xlu0 %870
      %872 = vrot.lane.b32.xlu0 %v348, 12
      %v873 = vpop.permute.xlu0 %872
      %874 = vrot.lane.b32.xlu0 %v350, 12
      %v875 = vpop.permute.xlu0 %874
      %876 = vrot.lane.b32.xlu0 %v351, 12
      %v877 = vpop.permute.xlu0 %876
      %878 = vrot.lane.b32.xlu0 %v353, 12
      %v879 = vpop.permute.xlu0 %878
      %880 = vrot.lane.b32.xlu0 %v354, 12
      %v881 = vpop.permute.xlu0 %880
      %882 = vrot.lane.b32.xlu0 %v356, 12
      %v883 = vpop.permute.xlu0 %882
      %884 = vrot.lane.b32.xlu0 %v357, 12
      %v885 = vpop.permute.xlu0 %884
      %886 = vrot.lane.b32.xlu0 %v359, 12
      %v887 = vpop.permute.xlu0 %886
      %888 = vrot.lane.b32.xlu0 %v360, 12
      %v889 = vpop.permute.xlu0 %888
      %890 = vrot.lane.b32.xlu0 %v362, 12
      %v891 = vpop.permute.xlu0 %890
      %892 = vrot.lane.b32.xlu0 %v363, 12
      %v893 = vpop.permute.xlu0 %892
      %v931 = vrot.slane %v362, 1
      %v932 = vrot.slane %v363, 1
      %v933 = vsel %vm422, %v931, %v932
      %v934 = vrot.slane %v364, 1
      %v935 = vsel %vm422, %v932, %v934
      %936 = vrot.lane.b32.xlu0 %v430, 16
      %v937 = vpop.permute.xlu0 %936
      %938 = vrot.lane.b32.xlu0 %v432, 16
      %v939 = vpop.permute.xlu0 %938
      %940 = vrot.lane.b32.xlu0 %v435, 16
      %v941 = vpop.permute.xlu0 %940
      %942 = vrot.lane.b32.xlu0 %v437, 16
      %v943 = vpop.permute.xlu0 %942
      %944 = vrot.lane.b32.xlu0 %v440, 16
      %v945 = vpop.permute.xlu0 %944
      %946 = vrot.lane.b32.xlu0 %v442, 16
      %v947 = vpop.permute.xlu0 %946
      %948 = vrot.lane.b32.xlu0 %v445, 16
      %v949 = vpop.permute.xlu0 %948
      %950 = vrot.lane.b32.xlu0 %v447, 16
      %v951 = vpop.permute.xlu0 %950
      %952 = vrot.lane.b32.xlu0 %v450, 16
      %v953 = vpop.permute.xlu0 %952
      %954 = vrot.lane.b32.xlu0 %v452, 16
      %v955 = vpop.permute.xlu0 %954
      %956 = vrot.lane.b32.xlu0 %v455, 16
      %v957 = vpop.permute.xlu0 %956
      %958 = vrot.lane.b32.xlu0 %v457, 16
      %v959 = vpop.permute.xlu0 %958
      %960 = vrot.lane.b32.xlu0 %v460, 16
      %v961 = vpop.permute.xlu0 %960
      %962 = vrot.lane.b32.xlu0 %v462, 16
      %v963 = vpop.permute.xlu0 %962
      %964 = vrot.lane.b32.xlu0 %v465, 16
      %v965 = vpop.permute.xlu0 %964
      %966 = vrot.lane.b32.xlu0 %v467, 16
      %v967 = vpop.permute.xlu0 %966
      %968 = vrot.lane.b32.xlu0 %v470, 16
      %v969 = vpop.permute.xlu0 %968
      %970 = vrot.lane.b32.xlu0 %v472, 16
      %v971 = vpop.permute.xlu0 %970
      %972 = vrot.lane.b32.xlu0 %v475, 16
      %v973 = vpop.permute.xlu0 %972
      %974 = vrot.lane.b32.xlu0 %v477, 16
      %v975 = vpop.permute.xlu0 %974
      %976 = vrot.lane.b32.xlu0 %v480, 16
      %v977 = vpop.permute.xlu0 %976
      %978 = vrot.lane.b32.xlu0 %v482, 16
      %v979 = vpop.permute.xlu0 %978
      %980 = vrot.lane.b32.xlu0 %v485, 16
      %v981 = vpop.permute.xlu0 %980
      %982 = vrot.lane.b32.xlu0 %v487, 16
      %v983 = vpop.permute.xlu0 %982
      %984 = vrot.lane.b32.xlu0 %v490, 16
      %v985 = vpop.permute.xlu0 %984
      %986 = vrot.lane.b32.xlu0 %v492, 16
      %v987 = vpop.permute.xlu0 %986
      %988 = vrot.lane.b32.xlu0 %v495, 16
      %v989 = vpop.permute.xlu0 %988
      %990 = vrot.lane.b32.xlu0 %v497, 16
      %v991 = vpop.permute.xlu0 %990
      %992 = vrot.lane.b32.xlu0 %v500, 16
      %v993 = vpop.permute.xlu0 %992
      %994 = vrot.lane.b32.xlu0 %v502, 16
      %v995 = vpop.permute.xlu0 %994
      %996 = vrot.lane.b32.xlu0 %v505, 16
      %v997 = vpop.permute.xlu0 %996
      %998 = vrot.lane.b32.xlu0 %v507, 16
      %v999 = vpop.permute.xlu0 %998
      %1000 = vrot.lane.b32.xlu0 %v510, 16
      %v1001 = vpop.permute.xlu0 %1000
      %1002 = vrot.lane.b32.xlu0 %v512, 16
      %v1003 = vpop.permute.xlu0 %1002
      %1004 = vrot.lane.b32.xlu0 %v933, 16
      %v1005 = vpop.permute.xlu0 %1004
      %1006 = vrot.lane.b32.xlu0 %v935, 16
      %v1007 = vpop.permute.xlu0 %1006
      %v1044 = vrot.slane %v362, 2
      %v1045 = vrot.slane %v363, 2
      %v1046 = vsel %vm621, %v1044, %v1045
      %v1047 = vrot.slane %v364, 2
      %v1048 = vsel %vm621, %v1045, %v1047
      %1049 = vrot.lane.b32.xlu0 %v629, 20
      %v1050 = vpop.permute.xlu0 %1049
      %1051 = vrot.lane.b32.xlu0 %v631, 20
      %v1052 = vpop.permute.xlu0 %1051
      %1053 = vrot.lane.b32.xlu0 %v634, 20
      %v1054 = vpop.permute.xlu0 %1053
      %1055 = vrot.lane.b32.xlu0 %v636, 20
      %v1056 = vpop.permute.xlu0 %1055
      %1057 = vrot.lane.b32.xlu0 %v639, 20
      %v1058 = vpop.permute.xlu0 %1057
      %1059 = vrot.lane.b32.xlu0 %v641, 20
      %v1060 = vpop.permute.xlu0 %1059
      %1061 = vrot.lane.b32.xlu0 %v644, 20
      %v1062 = vpop.permute.xlu0 %1061
      %1063 = vrot.lane.b32.xlu0 %v646, 20
      %v1064 = vpop.permute.xlu0 %1063
      %1065 = vrot.lane.b32.xlu0 %v649, 20
      %v1066 = vpop.permute.xlu0 %1065
      %1067 = vrot.lane.b32.xlu0 %v651, 20
      %v1068 = vpop.permute.xlu0 %1067
      %1069 = vrot.lane.b32.xlu0 %v654, 20
      %v1070 = vpop.permute.xlu0 %1069
      %1071 = vrot.lane.b32.xlu0 %v656, 20
      %v1072 = vpop.permute.xlu0 %1071
      %1073 = vrot.lane.b32.xlu0 %v659, 20
      %v1074 = vpop.permute.xlu0 %1073
      %1075 = vrot.lane.b32.xlu0 %v661, 20
      %v1076 = vpop.permute.xlu0 %1075
      %1077 = vrot.lane.b32.xlu0 %v664, 20
      %v1078 = vpop.permute.xlu0 %1077
      %1079 = vrot.lane.b32.xlu0 %v666, 20
      %v1080 = vpop.permute.xlu0 %1079
      %1081 = vrot.lane.b32.xlu0 %v669, 20
      %v1082 = vpop.permute.xlu0 %1081
      %1083 = vrot.lane.b32.xlu0 %v671, 20
      %v1084 = vpop.permute.xlu0 %1083
      %1085 = vrot.lane.b32.xlu0 %v674, 20
      %v1086 = vpop.permute.xlu0 %1085
      %1087 = vrot.lane.b32.xlu0 %v676, 20
      %v1088 = vpop.permute.xlu0 %1087
      %1089 = vrot.lane.b32.xlu0 %v679, 20
      %v1090 = vpop.permute.xlu0 %1089
      %1091 = vrot.lane.b32.xlu0 %v681, 20
      %v1092 = vpop.permute.xlu0 %1091
      %1093 = vrot.lane.b32.xlu0 %v684, 20
      %v1094 = vpop.permute.xlu0 %1093
      %1095 = vrot.lane.b32.xlu0 %v686, 20
      %v1096 = vpop.permute.xlu0 %1095
      %1097 = vrot.lane.b32.xlu0 %v689, 20
      %v1098 = vpop.permute.xlu0 %1097
      %1099 = vrot.lane.b32.xlu0 %v691, 20
      %v1100 = vpop.permute.xlu0 %1099
      %1101 = vrot.lane.b32.xlu0 %v694, 20
      %v1102 = vpop.permute.xlu0 %1101
      %1103 = vrot.lane.b32.xlu0 %v696, 20
      %v1104 = vpop.permute.xlu0 %1103
      %1105 = vrot.lane.b32.xlu0 %v699, 20
      %v1106 = vpop.permute.xlu0 %1105
      %1107 = vrot.lane.b32.xlu0 %v701, 20
      %v1108 = vpop.permute.xlu0 %1107
      %1109 = vrot.lane.b32.xlu0 %v704, 20
      %v1110 = vpop.permute.xlu0 %1109
      %1111 = vrot.lane.b32.xlu0 %v706, 20
      %v1112 = vpop.permute.xlu0 %1111
      %1113 = vrot.lane.b32.xlu0 %v709, 20
      %v1114 = vpop.permute.xlu0 %1113
      %1115 = vrot.lane.b32.xlu0 %v711, 20
      %v1116 = vpop.permute.xlu0 %1115
      %1117 = vrot.lane.b32.xlu0 %v1046, 20
      %v1118 = vpop.permute.xlu0 %1117
      %1119 = vrot.lane.b32.xlu0 %v1048, 20
      %v1120 = vpop.permute.xlu0 %1119
      %1159 = vrot.lane.b32.xlu0 %v314, 24
      %v1160 = vpop.permute.xlu0 %1159
      %1161 = vrot.lane.b32.xlu0 %v315, 24
      %v1162 = vpop.permute.xlu0 %1161
      %1163 = vrot.lane.b32.xlu0 %v317, 24
      %v1164 = vpop.permute.xlu0 %1163
      %1165 = vrot.lane.b32.xlu0 %v318, 24
      %v1166 = vpop.permute.xlu0 %1165
      %1167 = vrot.lane.b32.xlu0 %v320, 24
      %v1168 = vpop.permute.xlu0 %1167
      %1169 = vrot.lane.b32.xlu0 %v321, 24
      %v1170 = vpop.permute.xlu0 %1169
      %1171 = vrot.lane.b32.xlu0 %v323, 24
      %v1172 = vpop.permute.xlu0 %1171
      %1173 = vrot.lane.b32.xlu0 %v324, 24
      %v1174 = vpop.permute.xlu0 %1173
      %1175 = vrot.lane.b32.xlu0 %v326, 24
      %v1176 = vpop.permute.xlu0 %1175
      %1177 = vrot.lane.b32.xlu0 %v327, 24
      %v1178 = vpop.permute.xlu0 %1177
      %1179 = vrot.lane.b32.xlu0 %v329, 24
      %v1180 = vpop.permute.xlu0 %1179
      %1181 = vrot.lane.b32.xlu0 %v330, 24
      %v1182 = vpop.permute.xlu0 %1181
      %1183 = vrot.lane.b32.xlu0 %v332, 24
      %v1184 = vpop.permute.xlu0 %1183
      %1185 = vrot.lane.b32.xlu0 %v333, 24
      %v1186 = vpop.permute.xlu0 %1185
      %1187 = vrot.lane.b32.xlu0 %v335, 24
      %v1188 = vpop.permute.xlu0 %1187
      %1189 = vrot.lane.b32.xlu0 %v336, 24
      %v1190 = vpop.permute.xlu0 %1189
      %1191 = vrot.lane.b32.xlu0 %v338, 24
      %v1192 = vpop.permute.xlu0 %1191
      %1193 = vrot.lane.b32.xlu0 %v339, 24
      %v1194 = vpop.permute.xlu0 %1193
      %1195 = vrot.lane.b32.xlu0 %v341, 24
      %v1196 = vpop.permute.xlu0 %1195
      %1197 = vrot.lane.b32.xlu0 %v342, 24
      %v1198 = vpop.permute.xlu0 %1197
      %1199 = vrot.lane.b32.xlu0 %v344, 24
      %v1200 = vpop.permute.xlu0 %1199
      %1201 = vrot.lane.b32.xlu0 %v345, 24
      %v1202 = vpop.permute.xlu0 %1201
      %1203 = vrot.lane.b32.xlu0 %v347, 24
      %v1204 = vpop.permute.xlu0 %1203
      %1205 = vrot.lane.b32.xlu0 %v348, 24
      %v1206 = vpop.permute.xlu0 %1205
      %1207 = vrot.lane.b32.xlu0 %v350, 24
      %v1208 = vpop.permute.xlu0 %1207
      %1209 = vrot.lane.b32.xlu0 %v351, 24
      %v1210 = vpop.permute.xlu0 %1209
      %1211 = vrot.lane.b32.xlu0 %v353, 24
      %v1212 = vpop.permute.xlu0 %1211
      %1213 = vrot.lane.b32.xlu0 %v354, 24
      %v1214 = vpop.permute.xlu0 %1213
      %1215 = vrot.lane.b32.xlu0 %v356, 24
      %v1216 = vpop.permute.xlu0 %1215
      %1217 = vrot.lane.b32.xlu0 %v357, 24
      %v1218 = vpop.permute.xlu0 %1217
      %1219 = vrot.lane.b32.xlu0 %v359, 24
      %v1220 = vpop.permute.xlu0 %1219
      %1221 = vrot.lane.b32.xlu0 %v360, 24
      %v1222 = vpop.permute.xlu0 %1221
      %1223 = vrot.lane.b32.xlu0 %v362, 24
      %v1224 = vpop.permute.xlu0 %1223
      %1225 = vrot.lane.b32.xlu0 %v363, 24
      %v1226 = vpop.permute.xlu0 %1225
      %1227 = vrot.lane.b32.xlu0 %v365, 24
      %v1228 = vpop.permute.xlu0 %1227
      %1229 = vrot.lane.b32.xlu0 %v366, 24
      %v1230 = vpop.permute.xlu0 %1229
      %v1268 = vrot.slane %v365, 1
      %v1269 = vrot.slane %v366, 1
      %v1270 = vsel %vm422, %v1268, %v1269
      %v1271 = vrot.slane %v367, 1
      %v1272 = vsel %vm422, %v1269, %v1271
      %1273 = vrot.lane.b32.xlu0 %v435, 28
      %v1274 = vpop.permute.xlu0 %1273
      %1275 = vrot.lane.b32.xlu0 %v437, 28
      %v1276 = vpop.permute.xlu0 %1275
      %1277 = vrot.lane.b32.xlu0 %v440, 28
      %v1278 = vpop.permute.xlu0 %1277
      %1279 = vrot.lane.b32.xlu0 %v442, 28
      %v1280 = vpop.permute.xlu0 %1279
      %1281 = vrot.lane.b32.xlu0 %v445, 28
      %v1282 = vpop.permute.xlu0 %1281
      %1283 = vrot.lane.b32.xlu0 %v447, 28
      %v1284 = vpop.permute.xlu0 %1283
      %1285 = vrot.lane.b32.xlu0 %v450, 28
      %v1286 = vpop.permute.xlu0 %1285
      %1287 = vrot.lane.b32.xlu0 %v452, 28
      %v1288 = vpop.permute.xlu0 %1287
      %1289 = vrot.lane.b32.xlu0 %v455, 28
      %v1290 = vpop.permute.xlu0 %1289
      %1291 = vrot.lane.b32.xlu0 %v457, 28
      %v1292 = vpop.permute.xlu0 %1291
      %1293 = vrot.lane.b32.xlu0 %v460, 28
      %v1294 = vpop.permute.xlu0 %1293
      %1295 = vrot.lane.b32.xlu0 %v462, 28
      %v1296 = vpop.permute.xlu0 %1295
      %1297 = vrot.lane.b32.xlu0 %v465, 28
      %v1298 = vpop.permute.xlu0 %1297
      %1299 = vrot.lane.b32.xlu0 %v467, 28
      %v1300 = vpop.permute.xlu0 %1299
      %1301 = vrot.lane.b32.xlu0 %v470, 28
      %v1302 = vpop.permute.xlu0 %1301
      %1303 = vrot.lane.b32.xlu0 %v472, 28
      %v1304 = vpop.permute.xlu0 %1303
      %1305 = vrot.lane.b32.xlu0 %v475, 28
      %v1306 = vpop.permute.xlu0 %1305
      %1307 = vrot.lane.b32.xlu0 %v477, 28
      %v1308 = vpop.permute.xlu0 %1307
      %1309 = vrot.lane.b32.xlu0 %v480, 28
      %v1310 = vpop.permute.xlu0 %1309
      %1311 = vrot.lane.b32.xlu0 %v482, 28
      %v1312 = vpop.permute.xlu0 %1311
      %1313 = vrot.lane.b32.xlu0 %v485, 28
      %v1314 = vpop.permute.xlu0 %1313
      %1315 = vrot.lane.b32.xlu0 %v487, 28
      %v1316 = vpop.permute.xlu0 %1315
      %1317 = vrot.lane.b32.xlu0 %v490, 28
      %v1318 = vpop.permute.xlu0 %1317
      %1319 = vrot.lane.b32.xlu0 %v492, 28
      %v1320 = vpop.permute.xlu0 %1319
      %1321 = vrot.lane.b32.xlu0 %v495, 28
      %v1322 = vpop.permute.xlu0 %1321
      %1323 = vrot.lane.b32.xlu0 %v497, 28
      %v1324 = vpop.permute.xlu0 %1323
      %1325 = vrot.lane.b32.xlu0 %v500, 28
      %v1326 = vpop.permute.xlu0 %1325
      %1327 = vrot.lane.b32.xlu0 %v502, 28
      %v1328 = vpop.permute.xlu0 %1327
      %1329 = vrot.lane.b32.xlu0 %v505, 28
      %v1330 = vpop.permute.xlu0 %1329
      %1331 = vrot.lane.b32.xlu0 %v507, 28
      %v1332 = vpop.permute.xlu0 %1331
      %1333 = vrot.lane.b32.xlu0 %v510, 28
      %v1334 = vpop.permute.xlu0 %1333
      %1335 = vrot.lane.b32.xlu0 %v512, 28
      %v1336 = vpop.permute.xlu0 %1335
      %1337 = vrot.lane.b32.xlu0 %v933, 28
      %v1338 = vpop.permute.xlu0 %1337
      %1339 = vrot.lane.b32.xlu0 %v935, 28
      %v1340 = vpop.permute.xlu0 %1339
      %1341 = vrot.lane.b32.xlu0 %v1270, 28
      %v1342 = vpop.permute.xlu0 %1341
      %1343 = vrot.lane.b32.xlu0 %v1272, 28
      %v1344 = vpop.permute.xlu0 %1343
      %v1381 = vrot.slane %v365, 2
      %v1382 = vrot.slane %v366, 2
      %v1383 = vsel %vm621, %v1381, %v1382
      %v1384 = vrot.slane %v367, 2
      %v1385 = vsel %vm621, %v1382, %v1384
      %1386 = vrot.lane.b32.xlu0 %v634, 32
      %v1387 = vpop.permute.xlu0 %1386
      %1388 = vrot.lane.b32.xlu0 %v636, 32
      %v1389 = vpop.permute.xlu0 %1388
      %1390 = vrot.lane.b32.xlu0 %v639, 32
      %v1391 = vpop.permute.xlu0 %1390
      %1392 = vrot.lane.b32.xlu0 %v641, 32
      %v1393 = vpop.permute.xlu0 %1392
      %1394 = vrot.lane.b32.xlu0 %v644, 32
      %v1395 = vpop.permute.xlu0 %1394
      %1396 = vrot.lane.b32.xlu0 %v646, 32
      %v1397 = vpop.permute.xlu0 %1396
      %1398 = vrot.lane.b32.xlu0 %v649, 32
      %v1399 = vpop.permute.xlu0 %1398
      %1400 = vrot.lane.b32.xlu0 %v651, 32
      %v1401 = vpop.permute.xlu0 %1400
      %1402 = vrot.lane.b32.xlu0 %v654, 32
      %v1403 = vpop.permute.xlu0 %1402
      %1404 = vrot.lane.b32.xlu0 %v656, 32
      %v1405 = vpop.permute.xlu0 %1404
      %1406 = vrot.lane.b32.xlu0 %v659, 32
      %v1407 = vpop.permute.xlu0 %1406
      %1408 = vrot.lane.b32.xlu0 %v661, 32
      %v1409 = vpop.permute.xlu0 %1408
      %1410 = vrot.lane.b32.xlu0 %v664, 32
      %v1411 = vpop.permute.xlu0 %1410
      %1412 = vrot.lane.b32.xlu0 %v666, 32
      %v1413 = vpop.permute.xlu0 %1412
      %1414 = vrot.lane.b32.xlu0 %v669, 32
      %v1415 = vpop.permute.xlu0 %1414
      %1416 = vrot.lane.b32.xlu0 %v671, 32
      %v1417 = vpop.permute.xlu0 %1416
      %1418 = vrot.lane.b32.xlu0 %v674, 32
      %v1419 = vpop.permute.xlu0 %1418
      %1420 = vrot.lane.b32.xlu0 %v676, 32
      %v1421 = vpop.permute.xlu0 %1420
      %1422 = vrot.lane.b32.xlu0 %v679, 32
      %v1423 = vpop.permute.xlu0 %1422
      %1424 = vrot.lane.b32.xlu0 %v681, 32
      %v1425 = vpop.permute.xlu0 %1424
      %1426 = vrot.lane.b32.xlu0 %v684, 32
      %v1427 = vpop.permute.xlu0 %1426
      %1428 = vrot.lane.b32.xlu0 %v686, 32
      %v1429 = vpop.permute.xlu0 %1428
      %1430 = vrot.lane.b32.xlu0 %v689, 32
      %v1431 = vpop.permute.xlu0 %1430
      %1432 = vrot.lane.b32.xlu0 %v691, 32
      %v1433 = vpop.permute.xlu0 %1432
      %1434 = vrot.lane.b32.xlu0 %v694, 32
      %v1435 = vpop.permute.xlu0 %1434
      %1436 = vrot.lane.b32.xlu0 %v696, 32
      %v1437 = vpop.permute.xlu0 %1436
      %1438 = vrot.lane.b32.xlu0 %v699, 32
      %v1439 = vpop.permute.xlu0 %1438
      %1440 = vrot.lane.b32.xlu0 %v701, 32
      %v1441 = vpop.permute.xlu0 %1440
      %1442 = vrot.lane.b32.xlu0 %v704, 32
      %v1443 = vpop.permute.xlu0 %1442
      %1444 = vrot.lane.b32.xlu0 %v706, 32
      %v1445 = vpop.permute.xlu0 %1444
      %1446 = vrot.lane.b32.xlu0 %v709, 32
      %v1447 = vpop.permute.xlu0 %1446
      %1448 = vrot.lane.b32.xlu0 %v711, 32
      %v1449 = vpop.permute.xlu0 %1448
      %1450 = vrot.lane.b32.xlu0 %v1046, 32
      %v1451 = vpop.permute.xlu0 %1450
      %1452 = vrot.lane.b32.xlu0 %v1048, 32
      %v1453 = vpop.permute.xlu0 %1452
      %1454 = vrot.lane.b32.xlu0 %v1383, 32
      %v1455 = vpop.permute.xlu0 %1454
      %1456 = vrot.lane.b32.xlu0 %v1385, 32
      %v1457 = vpop.permute.xlu0 %1456
      %vm1494 = vcmask 31744
      %v1495 = vsel %vm1494, %v308, %v514
      %v1496 = vsel %vm1494, %v309, %v516
      %v1497 = vsel %vm1494, %v311, %v518
      %v1498 = vsel %vm1494, %v312, %v520
      %v1499 = vsel %vm1494, %v314, %v522
      %v1500 = vsel %vm1494, %v315, %v524
      %v1501 = vsel %vm1494, %v317, %v526
      %v1502 = vsel %vm1494, %v318, %v528
      %v1503 = vsel %vm1494, %v320, %v530
      %v1504 = vsel %vm1494, %v321, %v532
      %v1505 = vsel %vm1494, %v323, %v534
      %v1506 = vsel %vm1494, %v324, %v536
      %v1507 = vsel %vm1494, %v326, %v538
      %v1508 = vsel %vm1494, %v327, %v540
      %v1509 = vsel %vm1494, %v329, %v542
      %v1510 = vsel %vm1494, %v330, %v544
      %v1511 = vsel %vm1494, %v332, %v546
      %v1512 = vsel %vm1494, %v333, %v548
      %v1513 = vsel %vm1494, %v335, %v550
      %v1514 = vsel %vm1494, %v336, %v552
      %v1515 = vsel %vm1494, %v338, %v554
      %v1516 = vsel %vm1494, %v339, %v556
      %v1517 = vsel %vm1494, %v341, %v558
      %v1518 = vsel %vm1494, %v342, %v560
      %v1519 = vsel %vm1494, %v344, %v562
      %v1520 = vsel %vm1494, %v345, %v564
      %v1521 = vsel %vm1494, %v347, %v566
      %v1522 = vsel %vm1494, %v348, %v568
      %v1523 = vsel %vm1494, %v350, %v570
      %v1524 = vsel %vm1494, %v351, %v572
      %v1525 = vsel %vm1494, %v353, %v574
      %v1526 = vsel %vm1494, %v354, %v576
      %v1527 = vsel %vm1494, %v356, %v578
      %v1528 = vsel %vm1494, %v357, %v580
      %v1529 = vsel %vm1494, %v359, %v582
      %v1530 = vsel %vm1494, %v360, %v584
      %vm1531 = vcmask 64512
      %v1532 = vsel %vm1531, %v1495, %v713
      %v1533 = vsel %vm1531, %v1496, %v715
      %v1534 = vsel %vm1531, %v1497, %v717
      %v1535 = vsel %vm1531, %v1498, %v719
      %v1536 = vsel %vm1531, %v1499, %v721
      %v1537 = vsel %vm1531, %v1500, %v723
      %v1538 = vsel %vm1531, %v1501, %v725
      %v1539 = vsel %vm1531, %v1502, %v727
      %v1540 = vsel %vm1531, %v1503, %v729
      %v1541 = vsel %vm1531, %v1504, %v731
      %v1542 = vsel %vm1531, %v1505, %v733
      %v1543 = vsel %vm1531, %v1506, %v735
      %v1544 = vsel %vm1531, %v1507, %v737
      %v1545 = vsel %vm1531, %v1508, %v739
      %v1546 = vsel %vm1531, %v1509, %v741
      %v1547 = vsel %vm1531, %v1510, %v743
      %v1548 = vsel %vm1531, %v1511, %v745
      %v1549 = vsel %vm1531, %v1512, %v747
      %v1550 = vsel %vm1531, %v1513, %v749
      %v1551 = vsel %vm1531, %v1514, %v751
      %v1552 = vsel %vm1531, %v1515, %v753
      %v1553 = vsel %vm1531, %v1516, %v755
      %v1554 = vsel %vm1531, %v1517, %v757
      %v1555 = vsel %vm1531, %v1518, %v759
      %v1556 = vsel %vm1531, %v1519, %v761
      %v1557 = vsel %vm1531, %v1520, %v763
      %v1558 = vsel %vm1531, %v1521, %v765
      %v1559 = vsel %vm1531, %v1522, %v767
      %v1560 = vsel %vm1531, %v1523, %v769
      %v1561 = vsel %vm1531, %v1524, %v771
      %v1562 = vsel %vm1531, %v1525, %v773
      %v1563 = vsel %vm1531, %v1526, %v775
      %v1564 = vsel %vm1531, %v1527, %v777
      %v1565 = vsel %vm1531, %v1528, %v779
      %v1566 = vsel %vm1531, %v1529, %v781
      %v1567 = vsel %vm1531, %v1530, %v783
      %vm1568 = vcmask 97280
      %v1569 = vsel %vm1568, %v1532, %v823
      %v1570 = vsel %vm1568, %v1533, %v825
      %v1571 = vsel %vm1568, %v1534, %v827
      %v1572 = vsel %vm1568, %v1535, %v829
      %v1573 = vsel %vm1568, %v1536, %v831
      %v1574 = vsel %vm1568, %v1537, %v833
      %v1575 = vsel %vm1568, %v1538, %v835
      %v1576 = vsel %vm1568, %v1539, %v837
      %v1577 = vsel %vm1568, %v1540, %v839
      %v1578 = vsel %vm1568, %v1541, %v841
      %v1579 = vsel %vm1568, %v1542, %v843
      %v1580 = vsel %vm1568, %v1543, %v845
      %v1581 = vsel %vm1568, %v1544, %v847
      %v1582 = vsel %vm1568, %v1545, %v849
      %v1583 = vsel %vm1568, %v1546, %v851
      %v1584 = vsel %vm1568, %v1547, %v853
      %v1585 = vsel %vm1568, %v1548, %v855
      %v1586 = vsel %vm1568, %v1549, %v857
      %v1587 = vsel %vm1568, %v1550, %v859
      %v1588 = vsel %vm1568, %v1551, %v861
      %v1589 = vsel %vm1568, %v1552, %v863
      %v1590 = vsel %vm1568, %v1553, %v865
      %v1591 = vsel %vm1568, %v1554, %v867
      %v1592 = vsel %vm1568, %v1555, %v869
      %v1593 = vsel %vm1568, %v1556, %v871
      %v1594 = vsel %vm1568, %v1557, %v873
      %v1595 = vsel %vm1568, %v1558, %v875
      %v1596 = vsel %vm1568, %v1559, %v877
      %v1597 = vsel %vm1568, %v1560, %v879
      %v1598 = vsel %vm1568, %v1561, %v881
      %v1599 = vsel %vm1568, %v1562, %v883
      %v1600 = vsel %vm1568, %v1563, %v885
      %v1601 = vsel %vm1568, %v1564, %v887
      %v1602 = vsel %vm1568, %v1565, %v889
      %v1603 = vsel %vm1568, %v1566, %v891
      %v1604 = vsel %vm1568, %v1567, %v893
      %vm1605 = vcmask 130048
      %v1606 = vsel %vm1605, %v1569, %v937
      %v1607 = vsel %vm1605, %v1570, %v939
      %v1608 = vsel %vm1605, %v1571, %v941
      %v1609 = vsel %vm1605, %v1572, %v943
      %v1610 = vsel %vm1605, %v1573, %v945
      %v1611 = vsel %vm1605, %v1574, %v947
      %v1612 = vsel %vm1605, %v1575, %v949
      %v1613 = vsel %vm1605, %v1576, %v951
      %v1614 = vsel %vm1605, %v1577, %v953
      %v1615 = vsel %vm1605, %v1578, %v955
      %v1616 = vsel %vm1605, %v1579, %v957
      %v1617 = vsel %vm1605, %v1580, %v959
      %v1618 = vsel %vm1605, %v1581, %v961
      %v1619 = vsel %vm1605, %v1582, %v963
      %v1620 = vsel %vm1605, %v1583, %v965
      %v1621 = vsel %vm1605, %v1584, %v967
      %v1622 = vsel %vm1605, %v1585, %v969
      %v1623 = vsel %vm1605, %v1586, %v971
      %v1624 = vsel %vm1605, %v1587, %v973
      %v1625 = vsel %vm1605, %v1588, %v975
      %v1626 = vsel %vm1605, %v1589, %v977
      %v1627 = vsel %vm1605, %v1590, %v979
      %v1628 = vsel %vm1605, %v1591, %v981
      %v1629 = vsel %vm1605, %v1592, %v983
      %v1630 = vsel %vm1605, %v1593, %v985
      %v1631 = vsel %vm1605, %v1594, %v987
      %v1632 = vsel %vm1605, %v1595, %v989
      %v1633 = vsel %vm1605, %v1596, %v991
      %v1634 = vsel %vm1605, %v1597, %v993
      %v1635 = vsel %vm1605, %v1598, %v995
      %v1636 = vsel %vm1605, %v1599, %v997
      %v1637 = vsel %vm1605, %v1600, %v999
      %v1638 = vsel %vm1605, %v1601, %v1001
      %v1639 = vsel %vm1605, %v1602, %v1003
      %v1640 = vsel %vm1605, %v1603, %v1005
      %v1641 = vsel %vm1605, %v1604, %v1007
      %vm1642 = vcmask 162816
      %v1643 = vsel %vm1642, %v1606, %v1050
      %v1644 = vsel %vm1642, %v1607, %v1052
      %v1645 = vsel %vm1642, %v1608, %v1054
      %v1646 = vsel %vm1642, %v1609, %v1056
      %v1647 = vsel %vm1642, %v1610, %v1058
      %v1648 = vsel %vm1642, %v1611, %v1060
      %v1649 = vsel %vm1642, %v1612, %v1062
      %v1650 = vsel %vm1642, %v1613, %v1064
      %v1651 = vsel %vm1642, %v1614, %v1066
      %v1652 = vsel %vm1642, %v1615, %v1068
      %v1653 = vsel %vm1642, %v1616, %v1070
      %v1654 = vsel %vm1642, %v1617, %v1072
      %v1655 = vsel %vm1642, %v1618, %v1074
      %v1656 = vsel %vm1642, %v1619, %v1076
      %v1657 = vsel %vm1642, %v1620, %v1078
      %v1658 = vsel %vm1642, %v1621, %v1080
      %v1659 = vsel %vm1642, %v1622, %v1082
      %v1660 = vsel %vm1642, %v1623, %v1084
      %v1661 = vsel %vm1642, %v1624, %v1086
      %v1662 = vsel %vm1642, %v1625, %v1088
      %v1663 = vsel %vm1642, %v1626, %v1090
      %v1664 = vsel %vm1642, %v1627, %v1092
      %v1665 = vsel %vm1642, %v1628, %v1094
      %v1666 = vsel %vm1642, %v1629, %v1096
      %v1667 = vsel %vm1642, %v1630, %v1098
      %v1668 = vsel %vm1642, %v1631, %v1100
      %v1669 = vsel %vm1642, %v1632, %v1102
      %v1670 = vsel %vm1642, %v1633, %v1104
      %v1671 = vsel %vm1642, %v1634, %v1106
      %v1672 = vsel %vm1642, %v1635, %v1108
      %v1673 = vsel %vm1642, %v1636, %v1110
      %v1674 = vsel %vm1642, %v1637, %v1112
      %v1675 = vsel %vm1642, %v1638, %v1114
      %v1676 = vsel %vm1642, %v1639, %v1116
      %v1677 = vsel %vm1642, %v1640, %v1118
      %v1678 = vsel %vm1642, %v1641, %v1120
      %vm1679 = vcmask 195584
      %v1680 = vsel %vm1679, %v1643, %v1160
      %v1681 = vsel %vm1679, %v1644, %v1162
      %v1682 = vsel %vm1679, %v1645, %v1164
      %v1683 = vsel %vm1679, %v1646, %v1166
      %v1684 = vsel %vm1679, %v1647, %v1168
      %v1685 = vsel %vm1679, %v1648, %v1170
      %v1686 = vsel %vm1679, %v1649, %v1172
      %v1687 = vsel %vm1679, %v1650, %v1174
      %v1688 = vsel %vm1679, %v1651, %v1176
      %v1689 = vsel %vm1679, %v1652, %v1178
      %v1690 = vsel %vm1679, %v1653, %v1180
      %v1691 = vsel %vm1679, %v1654, %v1182
      %v1692 = vsel %vm1679, %v1655, %v1184
      %v1693 = vsel %vm1679, %v1656, %v1186
      %v1694 = vsel %vm1679, %v1657, %v1188
      %v1695 = vsel %vm1679, %v1658, %v1190
      %v1696 = vsel %vm1679, %v1659, %v1192
      %v1697 = vsel %vm1679, %v1660, %v1194
      %v1698 = vsel %vm1679, %v1661, %v1196
      %v1699 = vsel %vm1679, %v1662, %v1198
      %v1700 = vsel %vm1679, %v1663, %v1200
      %v1701 = vsel %vm1679, %v1664, %v1202
      %v1702 = vsel %vm1679, %v1665, %v1204
      %v1703 = vsel %vm1679, %v1666, %v1206
      %v1704 = vsel %vm1679, %v1667, %v1208
      %v1705 = vsel %vm1679, %v1668, %v1210
      %v1706 = vsel %vm1679, %v1669, %v1212
      %v1707 = vsel %vm1679, %v1670, %v1214
      %v1708 = vsel %vm1679, %v1671, %v1216
      %v1709 = vsel %vm1679, %v1672, %v1218
      %v1710 = vsel %vm1679, %v1673, %v1220
      %v1711 = vsel %vm1679, %v1674, %v1222
      %v1712 = vsel %vm1679, %v1675, %v1224
      %v1713 = vsel %vm1679, %v1676, %v1226
      %v1714 = vsel %vm1679, %v1677, %v1228
      %v1715 = vsel %vm1679, %v1678, %v1230
      %vm1716 = vcmask 228352
      %v1717 = vsel %vm1716, %v1680, %v1274
      %v1718 = vsel %vm1716, %v1681, %v1276
      %v1719 = vsel %vm1716, %v1682, %v1278
      %v1720 = vsel %vm1716, %v1683, %v1280
      %v1721 = vsel %vm1716, %v1684, %v1282
      %v1722 = vsel %vm1716, %v1685, %v1284
      %v1723 = vsel %vm1716, %v1686, %v1286
      %v1724 = vsel %vm1716, %v1687, %v1288
      %v1725 = vsel %vm1716, %v1688, %v1290
      %v1726 = vsel %vm1716, %v1689, %v1292
      %v1727 = vsel %vm1716, %v1690, %v1294
      %v1728 = vsel %vm1716, %v1691, %v1296
      %v1729 = vsel %vm1716, %v1692, %v1298
      %v1730 = vsel %vm1716, %v1693, %v1300
      %v1731 = vsel %vm1716, %v1694, %v1302
      %v1732 = vsel %vm1716, %v1695, %v1304
      %v1733 = vsel %vm1716, %v1696, %v1306
      %v1734 = vsel %vm1716, %v1697, %v1308
      %v1735 = vsel %vm1716, %v1698, %v1310
      %v1736 = vsel %vm1716, %v1699, %v1312
      %v1737 = vsel %vm1716, %v1700, %v1314
      %v1738 = vsel %vm1716, %v1701, %v1316
      %v1739 = vsel %vm1716, %v1702, %v1318
      %v1740 = vsel %vm1716, %v1703, %v1320
      %v1741 = vsel %vm1716, %v1704, %v1322
      %v1742 = vsel %vm1716, %v1705, %v1324
      %v1743 = vsel %vm1716, %v1706, %v1326
      %v1744 = vsel %vm1716, %v1707, %v1328
      %v1745 = vsel %vm1716, %v1708, %v1330
      %v1746 = vsel %vm1716, %v1709, %v1332
      %v1747 = vsel %vm1716, %v1710, %v1334
      %v1748 = vsel %vm1716, %v1711, %v1336
      %v1749 = vsel %vm1716, %v1712, %v1338
      %v1750 = vsel %vm1716, %v1713, %v1340
      %v1751 = vsel %vm1716, %v1714, %v1342
      %v1752 = vsel %vm1716, %v1715, %v1344
      %vm1753 = vcmask 261120
      %v1754 = vsel %vm1753, %v1717, %v1387
      %v1755 = vsel %vm1753, %v1718, %v1389
      %v1756 = vsel %vm1753, %v1719, %v1391
      %v1757 = vsel %vm1753, %v1720, %v1393
      %v1758 = vsel %vm1753, %v1721, %v1395
      %v1759 = vsel %vm1753, %v1722, %v1397
      %v1760 = vsel %vm1753, %v1723, %v1399
      %v1761 = vsel %vm1753, %v1724, %v1401
      %v1762 = vsel %vm1753, %v1725, %v1403
      %v1763 = vsel %vm1753, %v1726, %v1405
      %v1764 = vsel %vm1753, %v1727, %v1407
      %v1765 = vsel %vm1753, %v1728, %v1409
      %v1766 = vsel %vm1753, %v1729, %v1411
      %v1767 = vsel %vm1753, %v1730, %v1413
      %v1768 = vsel %vm1753, %v1731, %v1415
      %v1769 = vsel %vm1753, %v1732, %v1417
      %v1770 = vsel %vm1753, %v1733, %v1419
      %v1771 = vsel %vm1753, %v1734, %v1421
      %v1772 = vsel %vm1753, %v1735, %v1423
      %v1773 = vsel %vm1753, %v1736, %v1425
      %v1774 = vsel %vm1753, %v1737, %v1427
      %v1775 = vsel %vm1753, %v1738, %v1429
      %v1776 = vsel %vm1753, %v1739, %v1431
      %v1777 = vsel %vm1753, %v1740, %v1433
      %v1778 = vsel %vm1753, %v1741, %v1435
      %v1779 = vsel %vm1753, %v1742, %v1437
      %v1780 = vsel %vm1753, %v1743, %v1439
      %v1781 = vsel %vm1753, %v1744, %v1441
      %v1782 = vsel %vm1753, %v1745, %v1443
      %v1783 = vsel %vm1753, %v1746, %v1445
      %v1784 = vsel %vm1753, %v1747, %v1447
      %v1785 = vsel %vm1753, %v1748, %v1449
      %v1786 = vsel %vm1753, %v1749, %v1451
      %v1787 = vsel %vm1753, %v1750, %v1453
      %v1788 = vsel %vm1753, %v1751, %v1455
      %v1789 = vsel %vm1753, %v1752, %v1457
      %v1790 = vld [vmem:[%s1] sm:$0xff]
      %v1791 = vld [vmem:[%s1 + $0x8] sm:$0xff]
      %v1792 = vld [vmem:[%s1 + $0x10] sm:$0xff]
      %v1793 = vld [vmem:[%s1 + $0x18] sm:$0xff]
      %v1794 = vld [vmem:[%s1 + $0x20] sm:$0xf]
      %v1795 = vld [vmem:[%s2] sm:$0x1]
      %v1797 = vperm.slane %v1795, 0
      %vm1799 = vcmask 293888
      %v1801 = vsel %vm1799, %v1754, 0
      %v1804 = vsel %vm1799, %v1755, 0
      %v1807 = vsel %vm1799, %v1756, 0
      %v1810 = vsel %vm1799, %v1757, 0
      %v1813 = vsel %vm1799, %v1758, 0
      %v1816 = vsel %vm1799, %v1759, 0
      %v1819 = vsel %vm1799, %v1760, 0
      %v1822 = vsel %vm1799, %v1761, 0
      %v1825 = vsel %vm1799, %v1762, 0
      %v1828 = vsel %vm1799, %v1763, 0
      %v1831 = vsel %vm1799, %v1764, 0
      %v1834 = vsel %vm1799, %v1765, 0
      %v1837 = vsel %vm1799, %v1766, 0
      %v1840 = vsel %vm1799, %v1767, 0
      %v1843 = vsel %vm1799, %v1768, 0
      %v1846 = vsel %vm1799, %v1769, 0
      %v1849 = vsel %vm1799, %v1770, 0
      %v1852 = vsel %vm1799, %v1771, 0
      %v1855 = vsel %vm1799, %v1772, 0
      %v1858 = vsel %vm1799, %v1773, 0
      %v1861 = vsel %vm1799, %v1774, 0
      %v1864 = vsel %vm1799, %v1775, 0
      %v1867 = vsel %vm1799, %v1776, 0
      %v1870 = vsel %vm1799, %v1777, 0
      %v1873 = vsel %vm1799, %v1778, 0
      %v1876 = vsel %vm1799, %v1779, 0
      %v1879 = vsel %vm1799, %v1780, 0
      %v1882 = vsel %vm1799, %v1781, 0
      %v1885 = vsel %vm1799, %v1782, 0
      %v1888 = vsel %vm1799, %v1783, 0
      %v1891 = vsel %vm1799, %v1784, 0
      %v1894 = vsel %vm1799, %v1785, 0
      %v1897 = vsel %vm1799, %v1786, 0
      %v1900 = vsel %vm1799, %v1787, 0
      %v1903 = vsel %vm1799, %v1788, 0
      %v1906 = vsel %vm1799, %v1789, 0
      %vm1908 = vcmask 1043456
      %v1910 = vsel %vm1908, %v1794, 0
      %1912 = vmatpush.msra.mxu0 0.0
      %1913 = vmatpush.msra.mxu0 0.0
      %1914 = vmatpush.msra.mxu0 0.0
      %1915 = vmatpush.msra.mxu0 0.0
      %1916 = vmatpush.msra.mxu0 0.0
      %1917 = vmatpush.msra.mxu0 0.0
      %1918 = vmatpush.msra.mxu0 0.0
      %1919 = vmatpush.msra.mxu0 0.0
      %1920 = vmatpush.msra.mxu0 0.0
      %1921 = vmatpush.msra.mxu0 0.0
      %1922 = vmatpush.msra.mxu0 0.0
      %1923 = vmatpush.msra.mxu0 %v1910
      %1924 = vmatpush.msra.mxu0 %v1793
      %1925 = vmatpush.msra.mxu0 %v1792
      %1926 = vmatpush.msra.mxu0 %v1791
      %1927 = vmatpush.msra.mxu0 %v1790
      %1928 = vmatmul.f32.gmra.mxu0 %v1801
      %v1929 = vpop.f32.mrf.mxu0
      %v1930 = vadd.f32 %v1797, %v1929
      %1931 = vmatmul.f32.gmra.mxu0 %v1804
      %v1932 = vpop.f32.mrf.mxu0
      %v1933 = vadd.f32 %v1797, %v1932
      %1934 = vmatmul.f32.gmra.mxu0 %v1807
      %v1935 = vpop.f32.mrf.mxu0
      %v1936 = vadd.f32 %v1797, %v1935
      %1937 = vmatmul.f32.gmra.mxu0 %v1810
      %v1938 = vpop.f32.mrf.mxu0
      %v1939 = vadd.f32 %v1797, %v1938
      %1940 = vmatmul.f32.gmra.mxu0 %v1813
      %v1941 = vpop.f32.mrf.mxu0
      %v1942 = vadd.f32 %v1797, %v1941
      %1943 = vmatmul.f32.gmra.mxu0 %v1816
      %v1944 = vpop.f32.mrf.mxu0
      %v1945 = vadd.f32 %v1797, %v1944
      %1946 = vmatmul.f32.gmra.mxu0 %v1819
      %v1947 = vpop.f32.mrf.mxu0
      %v1948 = vadd.f32 %v1797, %v1947
      %1949 = vmatmul.f32.gmra.mxu0 %v1822
      %v1950 = vpop.f32.mrf.mxu0
      %v1951 = vadd.f32 %v1797, %v1950
      %1952 = vmatmul.f32.gmra.mxu0 %v1825
      %v1953 = vpop.f32.mrf.mxu0
      %v1954 = vadd.f32 %v1797, %v1953
      %1955 = vmatmul.f32.gmra.mxu0 %v1828
      %v1956 = vpop.f32.mrf.mxu0
      %v1957 = vadd.f32 %v1797, %v1956
      %1958 = vmatmul.f32.gmra.mxu0 %v1831
      %v1959 = vpop.f32.mrf.mxu0
      %v1960 = vadd.f32 %v1797, %v1959
      %1961 = vmatmul.f32.gmra.mxu0 %v1834
      %v1962 = vpop.f32.mrf.mxu0
      %v1963 = vadd.f32 %v1797, %v1962
      %1964 = vmatmul.f32.gmra.mxu0 %v1837
      %v1965 = vpop.f32.mrf.mxu0
      %v1966 = vadd.f32 %v1797, %v1965
      %1967 = vmatmul.f32.gmra.mxu0 %v1840
      %v1968 = vpop.f32.mrf.mxu0
      %v1969 = vadd.f32 %v1797, %v1968
      %1970 = vmatmul.f32.gmra.mxu0 %v1843
      %v1971 = vpop.f32.mrf.mxu0
      %v1972 = vadd.f32 %v1797, %v1971
      %1973 = vmatmul.f32.gmra.mxu0 %v1846
      %v1974 = vpop.f32.mrf.mxu0
      %v1975 = vadd.f32 %v1797, %v1974
      %1976 = vmatmul.f32.gmra.mxu0 %v1849
      %v1977 = vpop.f32.mrf.mxu0
      %v1978 = vadd.f32 %v1797, %v1977
      %1979 = vmatmul.f32.gmra.mxu0 %v1852
      %v1980 = vpop.f32.mrf.mxu0
      %v1981 = vadd.f32 %v1797, %v1980
      %1982 = vmatmul.f32.gmra.mxu0 %v1855
      %v1983 = vpop.f32.mrf.mxu0
      %v1984 = vadd.f32 %v1797, %v1983
      %1985 = vmatmul.f32.gmra.mxu0 %v1858
      %v1986 = vpop.f32.mrf.mxu0
      %v1987 = vadd.f32 %v1797, %v1986
      %1988 = vmatmul.f32.gmra.mxu0 %v1861
      %v1989 = vpop.f32.mrf.mxu0
      %v1990 = vadd.f32 %v1797, %v1989
      %1991 = vmatmul.f32.gmra.mxu0 %v1864
      %v1992 = vpop.f32.mrf.mxu0
      %v1993 = vadd.f32 %v1797, %v1992
      %1994 = vmatmul.f32.gmra.mxu0 %v1867
      %v1995 = vpop.f32.mrf.mxu0
      %v1996 = vadd.f32 %v1797, %v1995
      %1997 = vmatmul.f32.gmra.mxu0 %v1870
      %v1998 = vpop.f32.mrf.mxu0
      %v1999 = vadd.f32 %v1797, %v1998
      %2000 = vmatmul.f32.gmra.mxu0 %v1873
      %v2001 = vpop.f32.mrf.mxu0
      %v2002 = vadd.f32 %v1797, %v2001
      %2003 = vmatmul.f32.gmra.mxu0 %v1876
      %v2004 = vpop.f32.mrf.mxu0
      %v2005 = vadd.f32 %v1797, %v2004
      %2006 = vmatmul.f32.gmra.mxu0 %v1879
      %v2007 = vpop.f32.mrf.mxu0
      %v2008 = vadd.f32 %v1797, %v2007
      %2009 = vmatmul.f32.gmra.mxu0 %v1882
      %v2010 = vpop.f32.mrf.mxu0
      %v2011 = vadd.f32 %v1797, %v2010
      %2012 = vmatmul.f32.gmra.mxu0 %v1885
      %v2013 = vpop.f32.mrf.mxu0
      %v2014 = vadd.f32 %v1797, %v2013
      %2015 = vmatmul.f32.gmra.mxu0 %v1888
      %v2016 = vpop.f32.mrf.mxu0
      %v2017 = vadd.f32 %v1797, %v2016
      %2018 = vmatmul.f32.gmra.mxu0 %v1891
      %v2019 = vpop.f32.mrf.mxu0
      %v2020 = vadd.f32 %v1797, %v2019
      %2021 = vmatmul.f32.gmra.mxu0 %v1894
      %v2022 = vpop.f32.mrf.mxu0
      %v2023 = vadd.f32 %v1797, %v2022
      %2024 = vmatmul.f32.gmra.mxu0 %v1897
      %v2025 = vpop.f32.mrf.mxu0
      %v2026 = vadd.f32 %v1797, %v2025
      %2027 = vmatmul.f32.gmra.mxu0 %v1900
      %v2028 = vpop.f32.mrf.mxu0
      %v2029 = vadd.f32 %v1797, %v2028
      %2030 = vmatmul.f32.gmra.mxu0 %v1903
      %v2031 = vpop.f32.mrf.mxu0
      %v2032 = vadd.f32 %v1797, %v2031
      %2033 = vmatmul.f32.gmra.mxu0 %v1906
      %v2034 = vpop.f32.mrf.mxu0
      %v2035 = vadd.f32 %v1797, %v2034
      %2036 = vdwg.mxu0
      %v2037 = vmax.f32 %v1930, 0.0
      %v2038 = vmax.f32 %v1933, 0.0
      %v2039 = vmax.f32 %v1936, 0.0
      %v2040 = vmax.f32 %v1939, 0.0
      %v2041 = vmax.f32 %v1942, 0.0
      %v2042 = vmax.f32 %v1945, 0.0
      %v2043 = vmax.f32 %v1948, 0.0
      %v2044 = vmax.f32 %v1951, 0.0
      %v2045 = vmax.f32 %v1954, 0.0
      %v2046 = vmax.f32 %v1957, 0.0
      %v2047 = vmax.f32 %v1960, 0.0
      %v2048 = vmax.f32 %v1963, 0.0
      %v2049 = vmax.f32 %v1966, 0.0
      %v2050 = vmax.f32 %v1969, 0.0
      %v2051 = vmax.f32 %v1972, 0.0
      %v2052 = vmax.f32 %v1975, 0.0
      %v2053 = vmax.f32 %v1978, 0.0
      %v2054 = vmax.f32 %v1981, 0.0
      %v2055 = vmax.f32 %v1984, 0.0
      %v2056 = vmax.f32 %v1987, 0.0
      %v2057 = vmax.f32 %v1990, 0.0
      %v2058 = vmax.f32 %v1993, 0.0
      %v2059 = vmax.f32 %v1996, 0.0
      %v2060 = vmax.f32 %v1999, 0.0
      %v2061 = vmax.f32 %v2002, 0.0
      %v2062 = vmax.f32 %v2005, 0.0
      %v2063 = vmax.f32 %v2008, 0.0
      %v2064 = vmax.f32 %v2011, 0.0
      %v2065 = vmax.f32 %v2014, 0.0
      %v2066 = vmax.f32 %v2017, 0.0
      %v2067 = vmax.f32 %v2020, 0.0
      %v2068 = vmax.f32 %v2023, 0.0
      %v2069 = vmax.f32 %v2026, 0.0
      %v2070 = vmax.f32 %v2029, 0.0
      %v2071 = vmax.f32 %v2032, 0.0
      %v2072 = vmax.f32 %v2035, 0.0
      %s2073 = smul.u32 %s23, 16
      %s2074 = ssub.s32 %s2073, 1
      %v2075 = vstv %s2074
      %v2076 = vadd.s32 %v2075, 1
      %v2077 = vadd.s32 %v2075, 2
      %v2078 = vadd.s32 %v2075, 3
      %v2079 = vadd.s32 %v2075, 4
      %v2080 = vadd.s32 %v2075, 5
      %v2081 = vadd.s32 %v2075, 6
      %v2082 = vadd.s32 %v2075, 7
      %v2083 = vadd.s32 %v2075, 8
      %v2084 = vadd.s32 %v2075, 9
      %v2085 = vadd.s32 %v2075, 10
      %v2086 = vadd.s32 %v2075, 11
      %v2087 = vadd.s32 %v2075, 12
      %v2088 = vadd.s32 %v2075, 13
      %v2089 = vadd.s32 %v2075, 14
      %v2090 = vadd.s32 %v2075, 15
      %v2091 = vadd.s32 %v2075, 16
      %v2092 = vadd.s32 %v2075, 17
      %vm2093 = vcmp.ge.s32.totalorder %v2075, 0
      %vm2094 = vcmp.ge.s32.totalorder %v2076, 0
      %vm2095 = vcmp.ge.s32.totalorder %v2077, 0
      %vm2096 = vcmp.ge.s32.totalorder %v2078, 0
      %vm2097 = vcmp.ge.s32.totalorder %v2079, 0
      %vm2098 = vcmp.ge.s32.totalorder %v2080, 0
      %vm2099 = vcmp.ge.s32.totalorder %v2081, 0
      %vm2100 = vcmp.ge.s32.totalorder %v2082, 0
      %vm2101 = vcmp.ge.s32.totalorder %v2083, 0
      %vm2102 = vcmp.ge.s32.totalorder %v2084, 0
      %vm2103 = vcmp.ge.s32.totalorder %v2085, 0
      %vm2104 = vcmp.ge.s32.totalorder %v2086, 0
      %vm2105 = vcmp.ge.s32.totalorder %v2087, 0
      %vm2106 = vcmp.ge.s32.totalorder %v2088, 0
      %vm2107 = vcmp.ge.s32.totalorder %v2089, 0
      %vm2108 = vcmp.ge.s32.totalorder %v2090, 0
      %vm2109 = vcmp.ge.s32.totalorder %v2091, 0
      %vm2110 = vcmp.ge.s32.totalorder %v2092, 0
      %vm2111 = vcmp.lt.s32.totalorder %v2075, 16
      %vm2112 = vcmp.lt.s32.totalorder %v2076, 16
      %vm2113 = vcmp.lt.s32.totalorder %v2077, 16
      %vm2114 = vcmp.lt.s32.totalorder %v2078, 16
      %vm2115 = vcmp.lt.s32.totalorder %v2079, 16
      %vm2116 = vcmp.lt.s32.totalorder %v2080, 16
      %vm2117 = vcmp.lt.s32.totalorder %v2081, 16
      %vm2118 = vcmp.lt.s32.totalorder %v2082, 16
      %vm2119 = vcmp.lt.s32.totalorder %v2083, 16
      %vm2120 = vcmp.lt.s32.totalorder %v2084, 16
      %vm2121 = vcmp.lt.s32.totalorder %v2085, 16
      %vm2122 = vcmp.lt.s32.totalorder %v2086, 16
      %vm2123 = vcmp.lt.s32.totalorder %v2087, 16
      %vm2124 = vcmp.lt.s32.totalorder %v2088, 16
      %vm2125 = vcmp.lt.s32.totalorder %v2089, 16
      %vm2126 = vcmp.lt.s32.totalorder %v2090, 16
      %vm2127 = vcmp.lt.s32.totalorder %v2091, 16
      %vm2128 = vcmp.lt.s32.totalorder %v2092, 16
      %vm2129 = vmand %vm2093, %vm2111
      %vm2130 = vmand %vm2094, %vm2112
      %vm2131 = vmand %vm2095, %vm2113
      %vm2132 = vmand %vm2096, %vm2114
      %vm2133 = vmand %vm2097, %vm2115
      %vm2134 = vmand %vm2098, %vm2116
      %vm2135 = vmand %vm2099, %vm2117
      %vm2136 = vmand %vm2100, %vm2118
      %vm2137 = vmand %vm2101, %vm2119
      %vm2138 = vmand %vm2102, %vm2120
      %vm2139 = vmand %vm2103, %vm2121
      %vm2140 = vmand %vm2104, %vm2122
      %vm2141 = vmand %vm2105, %vm2123
      %vm2142 = vmand %vm2106, %vm2124
      %vm2143 = vmand %vm2107, %vm2125
      %vm2144 = vmand %vm2108, %vm2126
      %vm2145 = vmand %vm2109, %vm2127
      %vm2146 = vmand %vm2110, %vm2128
      %v2147 = vsel %vm2129, 1, 0
      %v2148 = vsel %vm2130, 1, 0
      %v2149 = vsel %vm2131, 1, 0
      %v2150 = vsel %vm2132, 1, 0
      %v2151 = vsel %vm2133, 1, 0
      %v2152 = vsel %vm2134, 1, 0
      %v2153 = vsel %vm2135, 1, 0
      %v2154 = vsel %vm2136, 1, 0
      %v2155 = vsel %vm2137, 1, 0
      %v2156 = vsel %vm2138, 1, 0
      %v2157 = vsel %vm2139, 1, 0
      %v2158 = vsel %vm2140, 1, 0
      %v2159 = vsel %vm2141, 1, 0
      %v2160 = vsel %vm2142, 1, 0
      %v2161 = vsel %vm2143, 1, 0
      %v2162 = vsel %vm2144, 1, 0
      %v2163 = vsel %vm2145, 1, 0
      %v2164 = vsel %vm2146, 1, 0
      %vm2165 = vcmp.eq.s32.totalorder %v2147, 1
      %vm2166 = vcmp.eq.s32.totalorder %v2148, 1
      %vm2167 = vcmp.eq.s32.totalorder %v2149, 1
      %vm2168 = vcmp.eq.s32.totalorder %v2150, 1
      %vm2169 = vcmp.eq.s32.totalorder %v2151, 1
      %vm2170 = vcmp.eq.s32.totalorder %v2152, 1
      %vm2171 = vcmp.eq.s32.totalorder %v2153, 1
      %vm2172 = vcmp.eq.s32.totalorder %v2154, 1
      %vm2173 = vcmp.eq.s32.totalorder %v2155, 1
      %vm2174 = vcmp.eq.s32.totalorder %v2156, 1
      %vm2175 = vcmp.eq.s32.totalorder %v2157, 1
      %vm2176 = vcmp.eq.s32.totalorder %v2158, 1
      %vm2177 = vcmp.eq.s32.totalorder %v2159, 1
      %vm2178 = vcmp.eq.s32.totalorder %v2160, 1
      %vm2179 = vcmp.eq.s32.totalorder %v2161, 1
      %vm2180 = vcmp.eq.s32.totalorder %v2162, 1
      %vm2181 = vcmp.eq.s32.totalorder %v2163, 1
      %vm2182 = vcmp.eq.s32.totalorder %v2164, 1
      %v2183 = vsel %vm2165, %v2037, 0.0
      %v2184 = vsel %vm2165, %v2038, 0.0
      %v2185 = vsel %vm2166, %v2039, 0.0
      %v2186 = vsel %vm2166, %v2040, 0.0
      %v2187 = vsel %vm2167, %v2041, 0.0
      %v2188 = vsel %vm2167, %v2042, 0.0
      %v2189 = vsel %vm2168, %v2043, 0.0
      %v2190 = vsel %vm2168, %v2044, 0.0
      %v2191 = vsel %vm2169, %v2045, 0.0
      %v2192 = vsel %vm2169, %v2046, 0.0
      %v2193 = vsel %vm2170, %v2047, 0.0
      %v2194 = vsel %vm2170, %v2048, 0.0
      %v2195 = vsel %vm2171, %v2049, 0.0
      %v2196 = vsel %vm2171, %v2050, 0.0
      %v2197 = vsel %vm2172, %v2051, 0.0
      %v2198 = vsel %vm2172, %v2052, 0.0
      %v2199 = vsel %vm2173, %v2053, 0.0
      %v2200 = vsel %vm2173, %v2054, 0.0
      %v2201 = vsel %vm2174, %v2055, 0.0
      %v2202 = vsel %vm2174, %v2056, 0.0
      %v2203 = vsel %vm2175, %v2057, 0.0
      %v2204 = vsel %vm2175, %v2058, 0.0
      %v2205 = vsel %vm2176, %v2059, 0.0
      %v2206 = vsel %vm2176, %v2060, 0.0
      %v2207 = vsel %vm2177, %v2061, 0.0
      %v2208 = vsel %vm2177, %v2062, 0.0
      %v2209 = vsel %vm2178, %v2063, 0.0
      %v2210 = vsel %vm2178, %v2064, 0.0
      %v2211 = vsel %vm2179, %v2065, 0.0
      %v2212 = vsel %vm2179, %v2066, 0.0
      %v2213 = vsel %vm2180, %v2067, 0.0
      %v2214 = vsel %vm2180, %v2068, 0.0
      %v2215 = vsel %vm2181, %v2069, 0.0
      %v2216 = vsel %vm2181, %v2070, 0.0
      %v2217 = vsel %vm2182, %v2071, 0.0
      %v2218 = vsel %vm2182, %v2072, 0.0
      %vm2255 = vcmask 1040384
      %v2256 = vrot.slane %v2183, 7
      %v2257 = vrot.slane %v2184, 7
      %v2258 = vsel %vm2255, %v2256, %v2257
      %v2259 = vrot.slane %v2185, 7
      %v2260 = vrot.slane %v2186, 7
      %v2261 = vsel %vm2255, %v2259, %v2260
      %v2262 = vrot.slane %v2187, 7
      %v2263 = vrot.slane %v2188, 7
      %v2264 = vsel %vm2255, %v2262, %v2263
      %v2265 = vrot.slane %v2189, 7
      %v2266 = vrot.slane %v2190, 7
      %v2267 = vsel %vm2255, %v2265, %v2266
      %v2268 = vrot.slane %v2191, 7
      %v2269 = vrot.slane %v2192, 7
      %v2270 = vsel %vm2255, %v2268, %v2269
      %v2271 = vrot.slane %v2193, 7
      %v2272 = vrot.slane %v2194, 7
      %v2273 = vsel %vm2255, %v2271, %v2272
      %v2274 = vrot.slane %v2195, 7
      %v2275 = vrot.slane %v2196, 7
      %v2276 = vsel %vm2255, %v2274, %v2275
      %v2277 = vrot.slane %v2197, 7
      %v2278 = vrot.slane %v2198, 7
      %v2279 = vsel %vm2255, %v2277, %v2278
      %v2280 = vrot.slane %v2199, 7
      %v2281 = vrot.slane %v2200, 7
      %v2282 = vsel %vm2255, %v2280, %v2281
      %v2283 = vrot.slane %v2201, 7
      %v2284 = vrot.slane %v2202, 7
      %v2285 = vsel %vm2255, %v2283, %v2284
      %v2286 = vrot.slane %v2203, 7
      %v2287 = vrot.slane %v2204, 7
      %v2288 = vsel %vm2255, %v2286, %v2287
      %v2289 = vrot.slane %v2205, 7
      %v2290 = vrot.slane %v2206, 7
      %v2291 = vsel %vm2255, %v2289, %v2290
      %v2292 = vrot.slane %v2207, 7
      %v2293 = vrot.slane %v2208, 7
      %v2294 = vsel %vm2255, %v2292, %v2293
      %v2295 = vrot.slane %v2209, 7
      %v2296 = vrot.slane %v2210, 7
      %v2297 = vsel %vm2255, %v2295, %v2296
      %v2298 = vrot.slane %v2211, 7
      %v2299 = vrot.slane %v2212, 7
      %v2300 = vsel %vm2255, %v2298, %v2299
      %v2301 = vrot.slane %v2213, 7
      %v2302 = vrot.slane %v2214, 7
      %v2303 = vsel %vm2255, %v2301, %v2302
      %v2304 = vrot.slane %v2215, 7
      %v2305 = vrot.slane %v2216, 7
      %v2306 = vsel %vm2255, %v2304, %v2305
      %v2307 = vrot.slane %v2217, 7
      %v2308 = vrot.slane %v2218, 7
      %v2309 = vsel %vm2255, %v2307, %v2308
      %v2362 = vsel %vm2255, 0.0, %v2256
      %v2363 = vsel %vm2255, 0.0, %v2259
      %v2364 = vsel %vm2255, 0.0, %v2262
      %v2365 = vsel %vm2255, 0.0, %v2265
      %v2366 = vsel %vm2255, 0.0, %v2268
      %v2367 = vsel %vm2255, 0.0, %v2271
      %v2368 = vsel %vm2255, 0.0, %v2274
      %v2369 = vsel %vm2255, 0.0, %v2277
      %v2370 = vsel %vm2255, 0.0, %v2280
      %v2371 = vsel %vm2255, 0.0, %v2283
      %v2372 = vsel %vm2255, 0.0, %v2286
      %v2373 = vsel %vm2255, 0.0, %v2289
      %v2374 = vsel %vm2255, 0.0, %v2292
      %v2375 = vsel %vm2255, 0.0, %v2295
      %v2376 = vsel %vm2255, 0.0, %v2298
      %v2377 = vsel %vm2255, 0.0, %v2301
      %v2378 = vsel %vm2255, 0.0, %v2304
      %v2379 = vsel %vm2255, 0.0, %v2307
      %v2380 = vsel %vm2255, %v2257, 0.0
      %v2381 = vsel %vm2255, %v2260, 0.0
      %v2382 = vsel %vm2255, %v2263, 0.0
      %v2383 = vsel %vm2255, %v2266, 0.0
      %v2384 = vsel %vm2255, %v2269, 0.0
      %v2385 = vsel %vm2255, %v2272, 0.0
      %v2386 = vsel %vm2255, %v2275, 0.0
      %v2387 = vsel %vm2255, %v2278, 0.0
      %v2388 = vsel %vm2255, %v2281, 0.0
      %v2389 = vsel %vm2255, %v2284, 0.0
      %v2390 = vsel %vm2255, %v2287, 0.0
      %v2391 = vsel %vm2255, %v2290, 0.0
      %v2392 = vsel %vm2255, %v2293, 0.0
      %v2393 = vsel %vm2255, %v2296, 0.0
      %v2394 = vsel %vm2255, %v2299, 0.0
      %v2395 = vsel %vm2255, %v2302, 0.0
      %v2396 = vsel %vm2255, %v2305, 0.0
      %v2397 = vsel %vm2255, %v2308, 0.0
      %v2430 = vrot.slane %v2362, 1
      %v2431 = vrot.slane %v2258, 1
      %v2432 = vsel %vm422, %v2430, %v2431
      %v2433 = vrot.slane %v2380, 1
      %v2434 = vsel %vm422, %v2431, %v2433
      %v2435 = vrot.slane %v2363, 1
      %v2436 = vrot.slane %v2261, 1
      %v2437 = vsel %vm422, %v2435, %v2436
      %v2438 = vrot.slane %v2381, 1
      %v2439 = vsel %vm422, %v2436, %v2438
      %v2440 = vrot.slane %v2364, 1
      %v2441 = vrot.slane %v2264, 1
      %v2442 = vsel %vm422, %v2440, %v2441
      %v2443 = vrot.slane %v2382, 1
      %v2444 = vsel %vm422, %v2441, %v2443
      %v2445 = vrot.slane %v2365, 1
      %v2446 = vrot.slane %v2267, 1
      %v2447 = vsel %vm422, %v2445, %v2446
      %v2448 = vrot.slane %v2383, 1
      %v2449 = vsel %vm422, %v2446, %v2448
      %v2450 = vrot.slane %v2366, 1
      %v2451 = vrot.slane %v2270, 1
      %v2452 = vsel %vm422, %v2450, %v2451
      %v2453 = vrot.slane %v2384, 1
      %v2454 = vsel %vm422, %v2451, %v2453
      %v2455 = vrot.slane %v2367, 1
      %v2456 = vrot.slane %v2273, 1
      %v2457 = vsel %vm422, %v2455, %v2456
      %v2458 = vrot.slane %v2385, 1
      %v2459 = vsel %vm422, %v2456, %v2458
      %v2460 = vrot.slane %v2368, 1
      %v2461 = vrot.slane %v2276, 1
      %v2462 = vsel %vm422, %v2460, %v2461
      %v2463 = vrot.slane %v2386, 1
      %v2464 = vsel %vm422, %v2461, %v2463
      %v2465 = vrot.slane %v2369, 1
      %v2466 = vrot.slane %v2279, 1
      %v2467 = vsel %vm422, %v2465, %v2466
      %v2468 = vrot.slane %v2387, 1
      %v2469 = vsel %vm422, %v2466, %v2468
      %v2470 = vrot.slane %v2370, 1
      %v2471 = vrot.slane %v2282, 1
      %v2472 = vsel %vm422, %v2470, %v2471
      %v2473 = vrot.slane %v2388, 1
      %v2474 = vsel %vm422, %v2471, %v2473
      %v2475 = vrot.slane %v2371, 1
      %v2476 = vrot.slane %v2285, 1
      %v2477 = vsel %vm422, %v2475, %v2476
      %v2478 = vrot.slane %v2389, 1
      %v2479 = vsel %vm422, %v2476, %v2478
      %v2480 = vrot.slane %v2372, 1
      %v2481 = vrot.slane %v2288, 1
      %v2482 = vsel %vm422, %v2480, %v2481
      %v2483 = vrot.slane %v2390, 1
      %v2484 = vsel %vm422, %v2481, %v2483
      %v2485 = vrot.slane %v2373, 1
      %v2486 = vrot.slane %v2291, 1
      %v2487 = vsel %vm422, %v2485, %v2486
      %v2488 = vrot.slane %v2391, 1
      %v2489 = vsel %vm422, %v2486, %v2488
      %v2490 = vrot.slane %v2374, 1
      %v2491 = vrot.slane %v2294, 1
      %v2492 = vsel %vm422, %v2490, %v2491
      %v2493 = vrot.slane %v2392, 1
      %v2494 = vsel %vm422, %v2491, %v2493
      %v2495 = vrot.slane %v2375, 1
      %v2496 = vrot.slane %v2297, 1
      %v2497 = vsel %vm422, %v2495, %v2496
      %v2498 = vrot.slane %v2393, 1
      %v2499 = vsel %vm422, %v2496, %v2498
      %v2500 = vrot.slane %v2376, 1
      %v2501 = vrot.slane %v2300, 1
      %v2502 = vsel %vm422, %v2500, %v2501
      %v2503 = vrot.slane %v2394, 1
      %v2504 = vsel %vm422, %v2501, %v2503
      %v2505 = vrot.slane %v2377, 1
      %v2506 = vrot.slane %v2303, 1
      %v2507 = vsel %vm422, %v2505, %v2506
      %v2508 = vrot.slane %v2395, 1
      %v2509 = vsel %vm422, %v2506, %v2508
      %2510 = vrot.lane.b32.xlu0 %v2432, 8
      %v2511 = vpop.permute.xlu0 %2510
      %2512 = vrot.lane.b32.xlu0 %v2434, 8
      %v2513 = vpop.permute.xlu0 %2512
      %2514 = vrot.lane.b32.xlu0 %v2437, 8
      %v2515 = vpop.permute.xlu0 %2514
      %2516 = vrot.lane.b32.xlu0 %v2439, 8
      %v2517 = vpop.permute.xlu0 %2516
      %2518 = vrot.lane.b32.xlu0 %v2442, 8
      %v2519 = vpop.permute.xlu0 %2518
      %2520 = vrot.lane.b32.xlu0 %v2444, 8
      %v2521 = vpop.permute.xlu0 %2520
      %2522 = vrot.lane.b32.xlu0 %v2447, 8
      %v2523 = vpop.permute.xlu0 %2522
      %2524 = vrot.lane.b32.xlu0 %v2449, 8
      %v2525 = vpop.permute.xlu0 %2524
      %2526 = vrot.lane.b32.xlu0 %v2452, 8
      %v2527 = vpop.permute.xlu0 %2526
      %2528 = vrot.lane.b32.xlu0 %v2454, 8
      %v2529 = vpop.permute.xlu0 %2528
      %2530 = vrot.lane.b32.xlu0 %v2457, 8
      %v2531 = vpop.permute.xlu0 %2530
      %2532 = vrot.lane.b32.xlu0 %v2459, 8
      %v2533 = vpop.permute.xlu0 %2532
      %2534 = vrot.lane.b32.xlu0 %v2462, 8
      %v2535 = vpop.permute.xlu0 %2534
      %2536 = vrot.lane.b32.xlu0 %v2464, 8
      %v2537 = vpop.permute.xlu0 %2536
      %2538 = vrot.lane.b32.xlu0 %v2467, 8
      %v2539 = vpop.permute.xlu0 %2538
      %2540 = vrot.lane.b32.xlu0 %v2469, 8
      %v2541 = vpop.permute.xlu0 %2540
      %2542 = vrot.lane.b32.xlu0 %v2472, 8
      %v2543 = vpop.permute.xlu0 %2542
      %2544 = vrot.lane.b32.xlu0 %v2474, 8
      %v2545 = vpop.permute.xlu0 %2544
      %2546 = vrot.lane.b32.xlu0 %v2477, 8
      %v2547 = vpop.permute.xlu0 %2546
      %2548 = vrot.lane.b32.xlu0 %v2479, 8
      %v2549 = vpop.permute.xlu0 %2548
      %2550 = vrot.lane.b32.xlu0 %v2482, 8
      %v2551 = vpop.permute.xlu0 %2550
      %2552 = vrot.lane.b32.xlu0 %v2484, 8
      %v2553 = vpop.permute.xlu0 %2552
      %2554 = vrot.lane.b32.xlu0 %v2487, 8
      %v2555 = vpop.permute.xlu0 %2554
      %2556 = vrot.lane.b32.xlu0 %v2489, 8
      %v2557 = vpop.permute.xlu0 %2556
      %2558 = vrot.lane.b32.xlu0 %v2492, 8
      %v2559 = vpop.permute.xlu0 %2558
      %2560 = vrot.lane.b32.xlu0 %v2494, 8
      %v2561 = vpop.permute.xlu0 %2560
      %2562 = vrot.lane.b32.xlu0 %v2497, 8
      %v2563 = vpop.permute.xlu0 %2562
      %2564 = vrot.lane.b32.xlu0 %v2499, 8
      %v2565 = vpop.permute.xlu0 %2564
      %2566 = vrot.lane.b32.xlu0 %v2502, 8
      %v2567 = vpop.permute.xlu0 %2566
      %2568 = vrot.lane.b32.xlu0 %v2504, 8
      %v2569 = vpop.permute.xlu0 %2568
      %2570 = vrot.lane.b32.xlu0 %v2507, 8
      %v2571 = vpop.permute.xlu0 %2570
      %2572 = vrot.lane.b32.xlu0 %v2509, 8
      %v2573 = vpop.permute.xlu0 %2572
      %v2606 = vrot.slane %v2362, 2
      %v2607 = vrot.slane %v2258, 2
      %v2608 = vsel %vm621, %v2606, %v2607
      %v2609 = vrot.slane %v2380, 2
      %v2610 = vsel %vm621, %v2607, %v2609
      %v2611 = vrot.slane %v2363, 2
      %v2612 = vrot.slane %v2261, 2
      %v2613 = vsel %vm621, %v2611, %v2612
      %v2614 = vrot.slane %v2381, 2
      %v2615 = vsel %vm621, %v2612, %v2614
      %v2616 = vrot.slane %v2364, 2
      %v2617 = vrot.slane %v2264, 2
      %v2618 = vsel %vm621, %v2616, %v2617
      %v2619 = vrot.slane %v2382, 2
      %v2620 = vsel %vm621, %v2617, %v2619
      %v2621 = vrot.slane %v2365, 2
      %v2622 = vrot.slane %v2267, 2
      %v2623 = vsel %vm621, %v2621, %v2622
      %v2624 = vrot.slane %v2383, 2
      %v2625 = vsel %vm621, %v2622, %v2624
      %v2626 = vrot.slane %v2366, 2
      %v2627 = vrot.slane %v2270, 2
      %v2628 = vsel %vm621, %v2626, %v2627
      %v2629 = vrot.slane %v2384, 2
      %v2630 = vsel %vm621, %v2627, %v2629
      %v2631 = vrot.slane %v2367, 2
      %v2632 = vrot.slane %v2273, 2
      %v2633 = vsel %vm621, %v2631, %v2632
      %v2634 = vrot.slane %v2385, 2
      %v2635 = vsel %vm621, %v2632, %v2634
      %v2636 = vrot.slane %v2368, 2
      %v2637 = vrot.slane %v2276, 2
      %v2638 = vsel %vm621, %v2636, %v2637
      %v2639 = vrot.slane %v2386, 2
      %v2640 = vsel %vm621, %v2637, %v2639
      %v2641 = vrot.slane %v2369, 2
      %v2642 = vrot.slane %v2279, 2
      %v2643 = vsel %vm621, %v2641, %v2642
      %v2644 = vrot.slane %v2387, 2
      %v2645 = vsel %vm621, %v2642, %v2644
      %v2646 = vrot.slane %v2370, 2
      %v2647 = vrot.slane %v2282, 2
      %v2648 = vsel %vm621, %v2646, %v2647
      %v2649 = vrot.slane %v2388, 2
      %v2650 = vsel %vm621, %v2647, %v2649
      %v2651 = vrot.slane %v2371, 2
      %v2652 = vrot.slane %v2285, 2
      %v2653 = vsel %vm621, %v2651, %v2652
      %v2654 = vrot.slane %v2389, 2
      %v2655 = vsel %vm621, %v2652, %v2654
      %v2656 = vrot.slane %v2372, 2
      %v2657 = vrot.slane %v2288, 2
      %v2658 = vsel %vm621, %v2656, %v2657
      %v2659 = vrot.slane %v2390, 2
      %v2660 = vsel %vm621, %v2657, %v2659
      %v2661 = vrot.slane %v2373, 2
      %v2662 = vrot.slane %v2291, 2
      %v2663 = vsel %vm621, %v2661, %v2662
      %v2664 = vrot.slane %v2391, 2
      %v2665 = vsel %vm621, %v2662, %v2664
      %v2666 = vrot.slane %v2374, 2
      %v2667 = vrot.slane %v2294, 2
      %v2668 = vsel %vm621, %v2666, %v2667
      %v2669 = vrot.slane %v2392, 2
      %v2670 = vsel %vm621, %v2667, %v2669
      %v2671 = vrot.slane %v2375, 2
      %v2672 = vrot.slane %v2297, 2
      %v2673 = vsel %vm621, %v2671, %v2672
      %v2674 = vrot.slane %v2393, 2
      %v2675 = vsel %vm621, %v2672, %v2674
      %v2676 = vrot.slane %v2376, 2
      %v2677 = vrot.slane %v2300, 2
      %v2678 = vsel %vm621, %v2676, %v2677
      %v2679 = vrot.slane %v2394, 2
      %v2680 = vsel %vm621, %v2677, %v2679
      %v2681 = vrot.slane %v2377, 2
      %v2682 = vrot.slane %v2303, 2
      %v2683 = vsel %vm621, %v2681, %v2682
      %v2684 = vrot.slane %v2395, 2
      %v2685 = vsel %vm621, %v2682, %v2684
      %2686 = vrot.lane.b32.xlu0 %v2608, 16
      %v2687 = vpop.permute.xlu0 %2686
      %2688 = vrot.lane.b32.xlu0 %v2610, 16
      %v2689 = vpop.permute.xlu0 %2688
      %2690 = vrot.lane.b32.xlu0 %v2613, 16
      %v2691 = vpop.permute.xlu0 %2690
      %2692 = vrot.lane.b32.xlu0 %v2615, 16
      %v2693 = vpop.permute.xlu0 %2692
      %2694 = vrot.lane.b32.xlu0 %v2618, 16
      %v2695 = vpop.permute.xlu0 %2694
      %2696 = vrot.lane.b32.xlu0 %v2620, 16
      %v2697 = vpop.permute.xlu0 %2696
      %2698 = vrot.lane.b32.xlu0 %v2623, 16
      %v2699 = vpop.permute.xlu0 %2698
      %2700 = vrot.lane.b32.xlu0 %v2625, 16
      %v2701 = vpop.permute.xlu0 %2700
      %2702 = vrot.lane.b32.xlu0 %v2628, 16
      %v2703 = vpop.permute.xlu0 %2702
      %2704 = vrot.lane.b32.xlu0 %v2630, 16
      %v2705 = vpop.permute.xlu0 %2704
      %2706 = vrot.lane.b32.xlu0 %v2633, 16
      %v2707 = vpop.permute.xlu0 %2706
      %2708 = vrot.lane.b32.xlu0 %v2635, 16
      %v2709 = vpop.permute.xlu0 %2708
      %2710 = vrot.lane.b32.xlu0 %v2638, 16
      %v2711 = vpop.permute.xlu0 %2710
      %2712 = vrot.lane.b32.xlu0 %v2640, 16
      %v2713 = vpop.permute.xlu0 %2712
      %2714 = vrot.lane.b32.xlu0 %v2643, 16
      %v2715 = vpop.permute.xlu0 %2714
      %2716 = vrot.lane.b32.xlu0 %v2645, 16
      %v2717 = vpop.permute.xlu0 %2716
      %2718 = vrot.lane.b32.xlu0 %v2648, 16
      %v2719 = vpop.permute.xlu0 %2718
      %2720 = vrot.lane.b32.xlu0 %v2650, 16
      %v2721 = vpop.permute.xlu0 %2720
      %2722 = vrot.lane.b32.xlu0 %v2653, 16
      %v2723 = vpop.permute.xlu0 %2722
      %2724 = vrot.lane.b32.xlu0 %v2655, 16
      %v2725 = vpop.permute.xlu0 %2724
      %2726 = vrot.lane.b32.xlu0 %v2658, 16
      %v2727 = vpop.permute.xlu0 %2726
      %2728 = vrot.lane.b32.xlu0 %v2660, 16
      %v2729 = vpop.permute.xlu0 %2728
      %2730 = vrot.lane.b32.xlu0 %v2663, 16
      %v2731 = vpop.permute.xlu0 %2730
      %2732 = vrot.lane.b32.xlu0 %v2665, 16
      %v2733 = vpop.permute.xlu0 %2732
      %2734 = vrot.lane.b32.xlu0 %v2668, 16
      %v2735 = vpop.permute.xlu0 %2734
      %2736 = vrot.lane.b32.xlu0 %v2670, 16
      %v2737 = vpop.permute.xlu0 %2736
      %2738 = vrot.lane.b32.xlu0 %v2673, 16
      %v2739 = vpop.permute.xlu0 %2738
      %2740 = vrot.lane.b32.xlu0 %v2675, 16
      %v2741 = vpop.permute.xlu0 %2740
      %2742 = vrot.lane.b32.xlu0 %v2678, 16
      %v2743 = vpop.permute.xlu0 %2742
      %2744 = vrot.lane.b32.xlu0 %v2680, 16
      %v2745 = vpop.permute.xlu0 %2744
      %2746 = vrot.lane.b32.xlu0 %v2683, 16
      %v2747 = vpop.permute.xlu0 %2746
      %2748 = vrot.lane.b32.xlu0 %v2685, 16
      %v2749 = vpop.permute.xlu0 %2748
      %2783 = vrot.lane.b32.xlu0 %v2363, 24
      %v2784 = vpop.permute.xlu0 %2783
      %2785 = vrot.lane.b32.xlu0 %v2261, 24
      %v2786 = vpop.permute.xlu0 %2785
      %2787 = vrot.lane.b32.xlu0 %v2364, 24
      %v2788 = vpop.permute.xlu0 %2787
      %2789 = vrot.lane.b32.xlu0 %v2264, 24
      %v2790 = vpop.permute.xlu0 %2789
      %2791 = vrot.lane.b32.xlu0 %v2365, 24
      %v2792 = vpop.permute.xlu0 %2791
      %2793 = vrot.lane.b32.xlu0 %v2267, 24
      %v2794 = vpop.permute.xlu0 %2793
      %2795 = vrot.lane.b32.xlu0 %v2366, 24
      %v2796 = vpop.permute.xlu0 %2795
      %2797 = vrot.lane.b32.xlu0 %v2270, 24
      %v2798 = vpop.permute.xlu0 %2797
      %2799 = vrot.lane.b32.xlu0 %v2367, 24
      %v2800 = vpop.permute.xlu0 %2799
      %2801 = vrot.lane.b32.xlu0 %v2273, 24
      %v2802 = vpop.permute.xlu0 %2801
      %2803 = vrot.lane.b32.xlu0 %v2368, 24
      %v2804 = vpop.permute.xlu0 %2803
      %2805 = vrot.lane.b32.xlu0 %v2276, 24
      %v2806 = vpop.permute.xlu0 %2805
      %2807 = vrot.lane.b32.xlu0 %v2369, 24
      %v2808 = vpop.permute.xlu0 %2807
      %2809 = vrot.lane.b32.xlu0 %v2279, 24
      %v2810 = vpop.permute.xlu0 %2809
      %2811 = vrot.lane.b32.xlu0 %v2370, 24
      %v2812 = vpop.permute.xlu0 %2811
      %2813 = vrot.lane.b32.xlu0 %v2282, 24
      %v2814 = vpop.permute.xlu0 %2813
      %2815 = vrot.lane.b32.xlu0 %v2371, 24
      %v2816 = vpop.permute.xlu0 %2815
      %2817 = vrot.lane.b32.xlu0 %v2285, 24
      %v2818 = vpop.permute.xlu0 %2817
      %2819 = vrot.lane.b32.xlu0 %v2372, 24
      %v2820 = vpop.permute.xlu0 %2819
      %2821 = vrot.lane.b32.xlu0 %v2288, 24
      %v2822 = vpop.permute.xlu0 %2821
      %2823 = vrot.lane.b32.xlu0 %v2373, 24
      %v2824 = vpop.permute.xlu0 %2823
      %2825 = vrot.lane.b32.xlu0 %v2291, 24
      %v2826 = vpop.permute.xlu0 %2825
      %2827 = vrot.lane.b32.xlu0 %v2374, 24
      %v2828 = vpop.permute.xlu0 %2827
      %2829 = vrot.lane.b32.xlu0 %v2294, 24
      %v2830 = vpop.permute.xlu0 %2829
      %2831 = vrot.lane.b32.xlu0 %v2375, 24
      %v2832 = vpop.permute.xlu0 %2831
      %2833 = vrot.lane.b32.xlu0 %v2297, 24
      %v2834 = vpop.permute.xlu0 %2833
      %2835 = vrot.lane.b32.xlu0 %v2376, 24
      %v2836 = vpop.permute.xlu0 %2835
      %2837 = vrot.lane.b32.xlu0 %v2300, 24
      %v2838 = vpop.permute.xlu0 %2837
      %2839 = vrot.lane.b32.xlu0 %v2377, 24
      %v2840 = vpop.permute.xlu0 %2839
      %2841 = vrot.lane.b32.xlu0 %v2303, 24
      %v2842 = vpop.permute.xlu0 %2841
      %2843 = vrot.lane.b32.xlu0 %v2378, 24
      %v2844 = vpop.permute.xlu0 %2843
      %2845 = vrot.lane.b32.xlu0 %v2306, 24
      %v2846 = vpop.permute.xlu0 %2845
      %v2880 = vrot.slane %v2378, 1
      %v2881 = vrot.slane %v2306, 1
      %v2882 = vsel %vm422, %v2880, %v2881
      %v2883 = vrot.slane %v2396, 1
      %v2884 = vsel %vm422, %v2881, %v2883
      %2885 = vrot.lane.b32.xlu0 %v2437, 32
      %v2886 = vpop.permute.xlu0 %2885
      %2887 = vrot.lane.b32.xlu0 %v2439, 32
      %v2888 = vpop.permute.xlu0 %2887
      %2889 = vrot.lane.b32.xlu0 %v2442, 32
      %v2890 = vpop.permute.xlu0 %2889
      %2891 = vrot.lane.b32.xlu0 %v2444, 32
      %v2892 = vpop.permute.xlu0 %2891
      %2893 = vrot.lane.b32.xlu0 %v2447, 32
      %v2894 = vpop.permute.xlu0 %2893
      %2895 = vrot.lane.b32.xlu0 %v2449, 32
      %v2896 = vpop.permute.xlu0 %2895
      %2897 = vrot.lane.b32.xlu0 %v2452, 32
      %v2898 = vpop.permute.xlu0 %2897
      %2899 = vrot.lane.b32.xlu0 %v2454, 32
      %v2900 = vpop.permute.xlu0 %2899
      %2901 = vrot.lane.b32.xlu0 %v2457, 32
      %v2902 = vpop.permute.xlu0 %2901
      %2903 = vrot.lane.b32.xlu0 %v2459, 32
      %v2904 = vpop.permute.xlu0 %2903
      %2905 = vrot.lane.b32.xlu0 %v2462, 32
      %v2906 = vpop.permute.xlu0 %2905
      %2907 = vrot.lane.b32.xlu0 %v2464, 32
      %v2908 = vpop.permute.xlu0 %2907
      %2909 = vrot.lane.b32.xlu0 %v2467, 32
      %v2910 = vpop.permute.xlu0 %2909
      %2911 = vrot.lane.b32.xlu0 %v2469, 32
      %v2912 = vpop.permute.xlu0 %2911
      %2913 = vrot.lane.b32.xlu0 %v2472, 32
      %v2914 = vpop.permute.xlu0 %2913
      %2915 = vrot.lane.b32.xlu0 %v2474, 32
      %v2916 = vpop.permute.xlu0 %2915
      %2917 = vrot.lane.b32.xlu0 %v2477, 32
      %v2918 = vpop.permute.xlu0 %2917
      %2919 = vrot.lane.b32.xlu0 %v2479, 32
      %v2920 = vpop.permute.xlu0 %2919
      %2921 = vrot.lane.b32.xlu0 %v2482, 32
      %v2922 = vpop.permute.xlu0 %2921
      %2923 = vrot.lane.b32.xlu0 %v2484, 32
      %v2924 = vpop.permute.xlu0 %2923
      %2925 = vrot.lane.b32.xlu0 %v2487, 32
      %v2926 = vpop.permute.xlu0 %2925
      %2927 = vrot.lane.b32.xlu0 %v2489, 32
      %v2928 = vpop.permute.xlu0 %2927
      %2929 = vrot.lane.b32.xlu0 %v2492, 32
      %v2930 = vpop.permute.xlu0 %2929
      %2931 = vrot.lane.b32.xlu0 %v2494, 32
      %v2932 = vpop.permute.xlu0 %2931
      %2933 = vrot.lane.b32.xlu0 %v2497, 32
      %v2934 = vpop.permute.xlu0 %2933
      %2935 = vrot.lane.b32.xlu0 %v2499, 32
      %v2936 = vpop.permute.xlu0 %2935
      %2937 = vrot.lane.b32.xlu0 %v2502, 32
      %v2938 = vpop.permute.xlu0 %2937
      %2939 = vrot.lane.b32.xlu0 %v2504, 32
      %v2940 = vpop.permute.xlu0 %2939
      %2941 = vrot.lane.b32.xlu0 %v2507, 32
      %v2942 = vpop.permute.xlu0 %2941
      %2943 = vrot.lane.b32.xlu0 %v2509, 32
      %v2944 = vpop.permute.xlu0 %2943
      %2945 = vrot.lane.b32.xlu0 %v2882, 32
      %v2946 = vpop.permute.xlu0 %2945
      %2947 = vrot.lane.b32.xlu0 %v2884, 32
      %v2948 = vpop.permute.xlu0 %2947
      %v2981 = vrot.slane %v2378, 2
      %v2982 = vrot.slane %v2306, 2
      %v2983 = vsel %vm621, %v2981, %v2982
      %v2984 = vrot.slane %v2396, 2
      %v2985 = vsel %vm621, %v2982, %v2984
      %2986 = vrot.lane.b32.xlu0 %v2613, 40
      %v2987 = vpop.permute.xlu0 %2986
      %2988 = vrot.lane.b32.xlu0 %v2615, 40
      %v2989 = vpop.permute.xlu0 %2988
      %2990 = vrot.lane.b32.xlu0 %v2618, 40
      %v2991 = vpop.permute.xlu0 %2990
      %2992 = vrot.lane.b32.xlu0 %v2620, 40
      %v2993 = vpop.permute.xlu0 %2992
      %2994 = vrot.lane.b32.xlu0 %v2623, 40
      %v2995 = vpop.permute.xlu0 %2994
      %2996 = vrot.lane.b32.xlu0 %v2625, 40
      %v2997 = vpop.permute.xlu0 %2996
      %2998 = vrot.lane.b32.xlu0 %v2628, 40
      %v2999 = vpop.permute.xlu0 %2998
      %3000 = vrot.lane.b32.xlu0 %v2630, 40
      %v3001 = vpop.permute.xlu0 %3000
      %3002 = vrot.lane.b32.xlu0 %v2633, 40
      %v3003 = vpop.permute.xlu0 %3002
      %3004 = vrot.lane.b32.xlu0 %v2635, 40
      %v3005 = vpop.permute.xlu0 %3004
      %3006 = vrot.lane.b32.xlu0 %v2638, 40
      %v3007 = vpop.permute.xlu0 %3006
      %3008 = vrot.lane.b32.xlu0 %v2640, 40
      %v3009 = vpop.permute.xlu0 %3008
      %3010 = vrot.lane.b32.xlu0 %v2643, 40
      %v3011 = vpop.permute.xlu0 %3010
      %3012 = vrot.lane.b32.xlu0 %v2645, 40
      %v3013 = vpop.permute.xlu0 %3012
      %3014 = vrot.lane.b32.xlu0 %v2648, 40
      %v3015 = vpop.permute.xlu0 %3014
      %3016 = vrot.lane.b32.xlu0 %v2650, 40
      %v3017 = vpop.permute.xlu0 %3016
      %3018 = vrot.lane.b32.xlu0 %v2653, 40
      %v3019 = vpop.permute.xlu0 %3018
      %3020 = vrot.lane.b32.xlu0 %v2655, 40
      %v3021 = vpop.permute.xlu0 %3020
      %3022 = vrot.lane.b32.xlu0 %v2658, 40
      %v3023 = vpop.permute.xlu0 %3022
      %3024 = vrot.lane.b32.xlu0 %v2660, 40
      %v3025 = vpop.permute.xlu0 %3024
      %3026 = vrot.lane.b32.xlu0 %v2663, 40
      %v3027 = vpop.permute.xlu0 %3026
      %3028 = vrot.lane.b32.xlu0 %v2665, 40
      %v3029 = vpop.permute.xlu0 %3028
      %3030 = vrot.lane.b32.xlu0 %v2668, 40
      %v3031 = vpop.permute.xlu0 %3030
      %3032 = vrot.lane.b32.xlu0 %v2670, 40
      %v3033 = vpop.permute.xlu0 %3032
      %3034 = vrot.lane.b32.xlu0 %v2673, 40
      %v3035 = vpop.permute.xlu0 %3034
      %3036 = vrot.lane.b32.xlu0 %v2675, 40
      %v3037 = vpop.permute.xlu0 %3036
      %3038 = vrot.lane.b32.xlu0 %v2678, 40
      %v3039 = vpop.permute.xlu0 %3038
      %3040 = vrot.lane.b32.xlu0 %v2680, 40
      %v3041 = vpop.permute.xlu0 %3040
      %3042 = vrot.lane.b32.xlu0 %v2683, 40
      %v3043 = vpop.permute.xlu0 %3042
      %3044 = vrot.lane.b32.xlu0 %v2685, 40
      %v3045 = vpop.permute.xlu0 %3044
      %3046 = vrot.lane.b32.xlu0 %v2983, 40
      %v3047 = vpop.permute.xlu0 %3046
      %3048 = vrot.lane.b32.xlu0 %v2985, 40
      %v3049 = vpop.permute.xlu0 %3048
      %3083 = vrot.lane.b32.xlu0 %v2364, 48
      %v3084 = vpop.permute.xlu0 %3083
      %3085 = vrot.lane.b32.xlu0 %v2264, 48
      %v3086 = vpop.permute.xlu0 %3085
      %3087 = vrot.lane.b32.xlu0 %v2365, 48
      %v3088 = vpop.permute.xlu0 %3087
      %3089 = vrot.lane.b32.xlu0 %v2267, 48
      %v3090 = vpop.permute.xlu0 %3089
      %3091 = vrot.lane.b32.xlu0 %v2366, 48
      %v3092 = vpop.permute.xlu0 %3091
      %3093 = vrot.lane.b32.xlu0 %v2270, 48
      %v3094 = vpop.permute.xlu0 %3093
      %3095 = vrot.lane.b32.xlu0 %v2367, 48
      %v3096 = vpop.permute.xlu0 %3095
      %3097 = vrot.lane.b32.xlu0 %v2273, 48
      %v3098 = vpop.permute.xlu0 %3097
      %3099 = vrot.lane.b32.xlu0 %v2368, 48
      %v3100 = vpop.permute.xlu0 %3099
      %3101 = vrot.lane.b32.xlu0 %v2276, 48
      %v3102 = vpop.permute.xlu0 %3101
      %3103 = vrot.lane.b32.xlu0 %v2369, 48
      %v3104 = vpop.permute.xlu0 %3103
      %3105 = vrot.lane.b32.xlu0 %v2279, 48
      %v3106 = vpop.permute.xlu0 %3105
      %3107 = vrot.lane.b32.xlu0 %v2370, 48
      %v3108 = vpop.permute.xlu0 %3107
      %3109 = vrot.lane.b32.xlu0 %v2282, 48
      %v3110 = vpop.permute.xlu0 %3109
      %3111 = vrot.lane.b32.xlu0 %v2371, 48
      %v3112 = vpop.permute.xlu0 %3111
      %3113 = vrot.lane.b32.xlu0 %v2285, 48
      %v3114 = vpop.permute.xlu0 %3113
      %3115 = vrot.lane.b32.xlu0 %v2372, 48
      %v3116 = vpop.permute.xlu0 %3115
      %3117 = vrot.lane.b32.xlu0 %v2288, 48
      %v3118 = vpop.permute.xlu0 %3117
      %3119 = vrot.lane.b32.xlu0 %v2373, 48
      %v3120 = vpop.permute.xlu0 %3119
      %3121 = vrot.lane.b32.xlu0 %v2291, 48
      %v3122 = vpop.permute.xlu0 %3121
      %3123 = vrot.lane.b32.xlu0 %v2374, 48
      %v3124 = vpop.permute.xlu0 %3123
      %3125 = vrot.lane.b32.xlu0 %v2294, 48
      %v3126 = vpop.permute.xlu0 %3125
      %3127 = vrot.lane.b32.xlu0 %v2375, 48
      %v3128 = vpop.permute.xlu0 %3127
      %3129 = vrot.lane.b32.xlu0 %v2297, 48
      %v3130 = vpop.permute.xlu0 %3129
      %3131 = vrot.lane.b32.xlu0 %v2376, 48
      %v3132 = vpop.permute.xlu0 %3131
      %3133 = vrot.lane.b32.xlu0 %v2300, 48
      %v3134 = vpop.permute.xlu0 %3133
      %3135 = vrot.lane.b32.xlu0 %v2377, 48
      %v3136 = vpop.permute.xlu0 %3135
      %3137 = vrot.lane.b32.xlu0 %v2303, 48
      %v3138 = vpop.permute.xlu0 %3137
      %3139 = vrot.lane.b32.xlu0 %v2378, 48
      %v3140 = vpop.permute.xlu0 %3139
      %3141 = vrot.lane.b32.xlu0 %v2306, 48
      %v3142 = vpop.permute.xlu0 %3141
      %3143 = vrot.lane.b32.xlu0 %v2379, 48
      %v3144 = vpop.permute.xlu0 %3143
      %3145 = vrot.lane.b32.xlu0 %v2309, 48
      %v3146 = vpop.permute.xlu0 %3145
      %v3180 = vrot.slane %v2379, 1
      %v3181 = vrot.slane %v2309, 1
      %v3182 = vsel %vm422, %v3180, %v3181
      %v3183 = vrot.slane %v2397, 1
      %v3184 = vsel %vm422, %v3181, %v3183
      %3185 = vrot.lane.b32.xlu0 %v2442, 56
      %v3186 = vpop.permute.xlu0 %3185
      %3187 = vrot.lane.b32.xlu0 %v2444, 56
      %v3188 = vpop.permute.xlu0 %3187
      %3189 = vrot.lane.b32.xlu0 %v2447, 56
      %v3190 = vpop.permute.xlu0 %3189
      %3191 = vrot.lane.b32.xlu0 %v2449, 56
      %v3192 = vpop.permute.xlu0 %3191
      %3193 = vrot.lane.b32.xlu0 %v2452, 56
      %v3194 = vpop.permute.xlu0 %3193
      %3195 = vrot.lane.b32.xlu0 %v2454, 56
      %v3196 = vpop.permute.xlu0 %3195
      %3197 = vrot.lane.b32.xlu0 %v2457, 56
      %v3198 = vpop.permute.xlu0 %3197
      %3199 = vrot.lane.b32.xlu0 %v2459, 56
      %v3200 = vpop.permute.xlu0 %3199
      %3201 = vrot.lane.b32.xlu0 %v2462, 56
      %v3202 = vpop.permute.xlu0 %3201
      %3203 = vrot.lane.b32.xlu0 %v2464, 56
      %v3204 = vpop.permute.xlu0 %3203
      %3205 = vrot.lane.b32.xlu0 %v2467, 56
      %v3206 = vpop.permute.xlu0 %3205
      %3207 = vrot.lane.b32.xlu0 %v2469, 56
      %v3208 = vpop.permute.xlu0 %3207
      %3209 = vrot.lane.b32.xlu0 %v2472, 56
      %v3210 = vpop.permute.xlu0 %3209
      %3211 = vrot.lane.b32.xlu0 %v2474, 56
      %v3212 = vpop.permute.xlu0 %3211
      %3213 = vrot.lane.b32.xlu0 %v2477, 56
      %v3214 = vpop.permute.xlu0 %3213
      %3215 = vrot.lane.b32.xlu0 %v2479, 56
      %v3216 = vpop.permute.xlu0 %3215
      %3217 = vrot.lane.b32.xlu0 %v2482, 56
      %v3218 = vpop.permute.xlu0 %3217
      %3219 = vrot.lane.b32.xlu0 %v2484, 56
      %v3220 = vpop.permute.xlu0 %3219
      %3221 = vrot.lane.b32.xlu0 %v2487, 56
      %v3222 = vpop.permute.xlu0 %3221
      %3223 = vrot.lane.b32.xlu0 %v2489, 56
      %v3224 = vpop.permute.xlu0 %3223
      %3225 = vrot.lane.b32.xlu0 %v2492, 56
      %v3226 = vpop.permute.xlu0 %3225
      %3227 = vrot.lane.b32.xlu0 %v2494, 56
      %v3228 = vpop.permute.xlu0 %3227
      %3229 = vrot.lane.b32.xlu0 %v2497, 56
      %v3230 = vpop.permute.xlu0 %3229
      %3231 = vrot.lane.b32.xlu0 %v2499, 56
      %v3232 = vpop.permute.xlu0 %3231
      %3233 = vrot.lane.b32.xlu0 %v2502, 56
      %v3234 = vpop.permute.xlu0 %3233
      %3235 = vrot.lane.b32.xlu0 %v2504, 56
      %v3236 = vpop.permute.xlu0 %3235
      %3237 = vrot.lane.b32.xlu0 %v2507, 56
      %v3238 = vpop.permute.xlu0 %3237
      %3239 = vrot.lane.b32.xlu0 %v2509, 56
      %v3240 = vpop.permute.xlu0 %3239
      %3241 = vrot.lane.b32.xlu0 %v2882, 56
      %v3242 = vpop.permute.xlu0 %3241
      %3243 = vrot.lane.b32.xlu0 %v2884, 56
      %v3244 = vpop.permute.xlu0 %3243
      %3245 = vrot.lane.b32.xlu0 %v3182, 56
      %v3246 = vpop.permute.xlu0 %3245
      %3247 = vrot.lane.b32.xlu0 %v3184, 56
      %v3248 = vpop.permute.xlu0 %3247
      %v3281 = vrot.slane %v2379, 2
      %v3282 = vrot.slane %v2309, 2
      %v3283 = vsel %vm621, %v3281, %v3282
      %v3284 = vrot.slane %v2397, 2
      %v3285 = vsel %vm621, %v3282, %v3284
      %3286 = vrot.lane.b32.xlu0 %v2618, 64
      %v3287 = vpop.permute.xlu0 %3286
      %3288 = vrot.lane.b32.xlu0 %v2620, 64
      %v3289 = vpop.permute.xlu0 %3288
      %3290 = vrot.lane.b32.xlu0 %v2623, 64
      %v3291 = vpop.permute.xlu0 %3290
      %3292 = vrot.lane.b32.xlu0 %v2625, 64
      %v3293 = vpop.permute.xlu0 %3292
      %3294 = vrot.lane.b32.xlu0 %v2628, 64
      %v3295 = vpop.permute.xlu0 %3294
      %3296 = vrot.lane.b32.xlu0 %v2630, 64
      %v3297 = vpop.permute.xlu0 %3296
      %3298 = vrot.lane.b32.xlu0 %v2633, 64
      %v3299 = vpop.permute.xlu0 %3298
      %3300 = vrot.lane.b32.xlu0 %v2635, 64
      %v3301 = vpop.permute.xlu0 %3300
      %3302 = vrot.lane.b32.xlu0 %v2638, 64
      %v3303 = vpop.permute.xlu0 %3302
      %3304 = vrot.lane.b32.xlu0 %v2640, 64
      %v3305 = vpop.permute.xlu0 %3304
      %3306 = vrot.lane.b32.xlu0 %v2643, 64
      %v3307 = vpop.permute.xlu0 %3306
      %3308 = vrot.lane.b32.xlu0 %v2645, 64
      %v3309 = vpop.permute.xlu0 %3308
      %3310 = vrot.lane.b32.xlu0 %v2648, 64
      %v3311 = vpop.permute.xlu0 %3310
      %3312 = vrot.lane.b32.xlu0 %v2650, 64
      %v3313 = vpop.permute.xlu0 %3312
      %3314 = vrot.lane.b32.xlu0 %v2653, 64
      %v3315 = vpop.permute.xlu0 %3314
      %3316 = vrot.lane.b32.xlu0 %v2655, 64
      %v3317 = vpop.permute.xlu0 %3316
      %3318 = vrot.lane.b32.xlu0 %v2658, 64
      %v3319 = vpop.permute.xlu0 %3318
      %3320 = vrot.lane.b32.xlu0 %v2660, 64
      %v3321 = vpop.permute.xlu0 %3320
      %3322 = vrot.lane.b32.xlu0 %v2663, 64
      %v3323 = vpop.permute.xlu0 %3322
      %3324 = vrot.lane.b32.xlu0 %v2665, 64
      %v3325 = vpop.permute.xlu0 %3324
      %3326 = vrot.lane.b32.xlu0 %v2668, 64
      %v3327 = vpop.permute.xlu0 %3326
      %3328 = vrot.lane.b32.xlu0 %v2670, 64
      %v3329 = vpop.permute.xlu0 %3328
      %3330 = vrot.lane.b32.xlu0 %v2673, 64
      %v3331 = vpop.permute.xlu0 %3330
      %3332 = vrot.lane.b32.xlu0 %v2675, 64
      %v3333 = vpop.permute.xlu0 %3332
      %3334 = vrot.lane.b32.xlu0 %v2678, 64
      %v3335 = vpop.permute.xlu0 %3334
      %3336 = vrot.lane.b32.xlu0 %v2680, 64
      %v3337 = vpop.permute.xlu0 %3336
      %3338 = vrot.lane.b32.xlu0 %v2683, 64
      %v3339 = vpop.permute.xlu0 %3338
      %3340 = vrot.lane.b32.xlu0 %v2685, 64
      %v3341 = vpop.permute.xlu0 %3340
      %3342 = vrot.lane.b32.xlu0 %v2983, 64
      %v3343 = vpop.permute.xlu0 %3342
      %3344 = vrot.lane.b32.xlu0 %v2985, 64
      %v3345 = vpop.permute.xlu0 %3344
      %3346 = vrot.lane.b32.xlu0 %v3283, 64
      %v3347 = vpop.permute.xlu0 %3346
      %3348 = vrot.lane.b32.xlu0 %v3285, 64
      %v3349 = vpop.permute.xlu0 %3348
      %v3382 = vsel %vm1531, %v2362, %v2511
      %v3383 = vsel %vm1531, %v2258, %v2513
      %v3384 = vsel %vm1531, %v2363, %v2515
      %v3385 = vsel %vm1531, %v2261, %v2517
      %v3386 = vsel %vm1531, %v2364, %v2519
      %v3387 = vsel %vm1531, %v2264, %v2521
      %v3388 = vsel %vm1531, %v2365, %v2523
      %v3389 = vsel %vm1531, %v2267, %v2525
      %v3390 = vsel %vm1531, %v2366, %v2527
      %v3391 = vsel %vm1531, %v2270, %v2529
      %v3392 = vsel %vm1531, %v2367, %v2531
      %v3393 = vsel %vm1531, %v2273, %v2533
      %v3394 = vsel %vm1531, %v2368, %v2535
      %v3395 = vsel %vm1531, %v2276, %v2537
      %v3396 = vsel %vm1531, %v2369, %v2539
      %v3397 = vsel %vm1531, %v2279, %v2541
      %v3398 = vsel %vm1531, %v2370, %v2543
      %v3399 = vsel %vm1531, %v2282, %v2545
      %v3400 = vsel %vm1531, %v2371, %v2547
      %v3401 = vsel %vm1531, %v2285, %v2549
      %v3402 = vsel %vm1531, %v2372, %v2551
      %v3403 = vsel %vm1531, %v2288, %v2553
      %v3404 = vsel %vm1531, %v2373, %v2555
      %v3405 = vsel %vm1531, %v2291, %v2557
      %v3406 = vsel %vm1531, %v2374, %v2559
      %v3407 = vsel %vm1531, %v2294, %v2561
      %v3408 = vsel %vm1531, %v2375, %v2563
      %v3409 = vsel %vm1531, %v2297, %v2565
      %v3410 = vsel %vm1531, %v2376, %v2567
      %v3411 = vsel %vm1531, %v2300, %v2569
      %v3412 = vsel %vm1531, %v2377, %v2571
      %v3413 = vsel %vm1531, %v2303, %v2573
      %v3414 = vsel %vm1605, %v3382, %v2687
      %v3415 = vsel %vm1605, %v3383, %v2689
      %v3416 = vsel %vm1605, %v3384, %v2691
      %v3417 = vsel %vm1605, %v3385, %v2693
      %v3418 = vsel %vm1605, %v3386, %v2695
      %v3419 = vsel %vm1605, %v3387, %v2697
      %v3420 = vsel %vm1605, %v3388, %v2699
      %v3421 = vsel %vm1605, %v3389, %v2701
      %v3422 = vsel %vm1605, %v3390, %v2703
      %v3423 = vsel %vm1605, %v3391, %v2705
      %v3424 = vsel %vm1605, %v3392, %v2707
      %v3425 = vsel %vm1605, %v3393, %v2709
      %v3426 = vsel %vm1605, %v3394, %v2711
      %v3427 = vsel %vm1605, %v3395, %v2713
      %v3428 = vsel %vm1605, %v3396, %v2715
      %v3429 = vsel %vm1605, %v3397, %v2717
      %v3430 = vsel %vm1605, %v3398, %v2719
      %v3431 = vsel %vm1605, %v3399, %v2721
      %v3432 = vsel %vm1605, %v3400, %v2723
      %v3433 = vsel %vm1605, %v3401, %v2725
      %v3434 = vsel %vm1605, %v3402, %v2727
      %v3435 = vsel %vm1605, %v3403, %v2729
      %v3436 = vsel %vm1605, %v3404, %v2731
      %v3437 = vsel %vm1605, %v3405, %v2733
      %v3438 = vsel %vm1605, %v3406, %v2735
      %v3439 = vsel %vm1605, %v3407, %v2737
      %v3440 = vsel %vm1605, %v3408, %v2739
      %v3441 = vsel %vm1605, %v3409, %v2741
      %v3442 = vsel %vm1605, %v3410, %v2743
      %v3443 = vsel %vm1605, %v3411, %v2745
      %v3444 = vsel %vm1605, %v3412, %v2747
      %v3445 = vsel %vm1605, %v3413, %v2749
      %v3446 = vsel %vm1679, %v3414, %v2784
      %v3447 = vsel %vm1679, %v3415, %v2786
      %v3448 = vsel %vm1679, %v3416, %v2788
      %v3449 = vsel %vm1679, %v3417, %v2790
      %v3450 = vsel %vm1679, %v3418, %v2792
      %v3451 = vsel %vm1679, %v3419, %v2794
      %v3452 = vsel %vm1679, %v3420, %v2796
      %v3453 = vsel %vm1679, %v3421, %v2798
      %v3454 = vsel %vm1679, %v3422, %v2800
      %v3455 = vsel %vm1679, %v3423, %v2802
      %v3456 = vsel %vm1679, %v3424, %v2804
      %v3457 = vsel %vm1679, %v3425, %v2806
      %v3458 = vsel %vm1679, %v3426, %v2808
      %v3459 = vsel %vm1679, %v3427, %v2810
      %v3460 = vsel %vm1679, %v3428, %v2812
      %v3461 = vsel %vm1679, %v3429, %v2814
      %v3462 = vsel %vm1679, %v3430, %v2816
      %v3463 = vsel %vm1679, %v3431, %v2818
      %v3464 = vsel %vm1679, %v3432, %v2820
      %v3465 = vsel %vm1679, %v3433, %v2822
      %v3466 = vsel %vm1679, %v3434, %v2824
      %v3467 = vsel %vm1679, %v3435, %v2826
      %v3468 = vsel %vm1679, %v3436, %v2828
      %v3469 = vsel %vm1679, %v3437, %v2830
      %v3470 = vsel %vm1679, %v3438, %v2832
      %v3471 = vsel %vm1679, %v3439, %v2834
      %v3472 = vsel %vm1679, %v3440, %v2836
      %v3473 = vsel %vm1679, %v3441, %v2838
      %v3474 = vsel %vm1679, %v3442, %v2840
      %v3475 = vsel %vm1679, %v3443, %v2842
      %v3476 = vsel %vm1679, %v3444, %v2844
      %v3477 = vsel %vm1679, %v3445, %v2846
      %v3478 = vsel %vm1753, %v3446, %v2886
      %v3479 = vsel %vm1753, %v3447, %v2888
      %v3480 = vsel %vm1753, %v3448, %v2890
      %v3481 = vsel %vm1753, %v3449, %v2892
      %v3482 = vsel %vm1753, %v3450, %v2894
      %v3483 = vsel %vm1753, %v3451, %v2896
      %v3484 = vsel %vm1753, %v3452, %v2898
      %v3485 = vsel %vm1753, %v3453, %v2900
      %v3486 = vsel %vm1753, %v3454, %v2902
      %v3487 = vsel %vm1753, %v3455, %v2904
      %v3488 = vsel %vm1753, %v3456, %v2906
      %v3489 = vsel %vm1753, %v3457, %v2908
      %v3490 = vsel %vm1753, %v3458, %v2910
      %v3491 = vsel %vm1753, %v3459, %v2912
      %v3492 = vsel %vm1753, %v3460, %v2914
      %v3493 = vsel %vm1753, %v3461, %v2916
      %v3494 = vsel %vm1753, %v3462, %v2918
      %v3495 = vsel %vm1753, %v3463, %v2920
      %v3496 = vsel %vm1753, %v3464, %v2922
      %v3497 = vsel %vm1753, %v3465, %v2924
      %v3498 = vsel %vm1753, %v3466, %v2926
      %v3499 = vsel %vm1753, %v3467, %v2928
      %v3500 = vsel %vm1753, %v3468, %v2930
      %v3501 = vsel %vm1753, %v3469, %v2932
      %v3502 = vsel %vm1753, %v3470, %v2934
      %v3503 = vsel %vm1753, %v3471, %v2936
      %v3504 = vsel %vm1753, %v3472, %v2938
      %v3505 = vsel %vm1753, %v3473, %v2940
      %v3506 = vsel %vm1753, %v3474, %v2942
      %v3507 = vsel %vm1753, %v3475, %v2944
      %v3508 = vsel %vm1753, %v3476, %v2946
      %v3509 = vsel %vm1753, %v3477, %v2948
      %vm3510 = vcmask 326656
      %v3511 = vsel %vm3510, %v3478, %v2987
      %v3512 = vsel %vm3510, %v3479, %v2989
      %v3513 = vsel %vm3510, %v3480, %v2991
      %v3514 = vsel %vm3510, %v3481, %v2993
      %v3515 = vsel %vm3510, %v3482, %v2995
      %v3516 = vsel %vm3510, %v3483, %v2997
      %v3517 = vsel %vm3510, %v3484, %v2999
      %v3518 = vsel %vm3510, %v3485, %v3001
      %v3519 = vsel %vm3510, %v3486, %v3003
      %v3520 = vsel %vm3510, %v3487, %v3005
      %v3521 = vsel %vm3510, %v3488, %v3007
      %v3522 = vsel %vm3510, %v3489, %v3009
      %v3523 = vsel %vm3510, %v3490, %v3011
      %v3524 = vsel %vm3510, %v3491, %v3013
      %v3525 = vsel %vm3510, %v3492, %v3015
      %v3526 = vsel %vm3510, %v3493, %v3017
      %v3527 = vsel %vm3510, %v3494, %v3019
      %v3528 = vsel %vm3510, %v3495, %v3021
      %v3529 = vsel %vm3510, %v3496, %v3023
      %v3530 = vsel %vm3510, %v3497, %v3025
      %v3531 = vsel %vm3510, %v3498, %v3027
      %v3532 = vsel %vm3510, %v3499, %v3029
      %v3533 = vsel %vm3510, %v3500, %v3031
      %v3534 = vsel %vm3510, %v3501, %v3033
      %v3535 = vsel %vm3510, %v3502, %v3035
      %v3536 = vsel %vm3510, %v3503, %v3037
      %v3537 = vsel %vm3510, %v3504, %v3039
      %v3538 = vsel %vm3510, %v3505, %v3041
      %v3539 = vsel %vm3510, %v3506, %v3043
      %v3540 = vsel %vm3510, %v3507, %v3045
      %v3541 = vsel %vm3510, %v3508, %v3047
      %v3542 = vsel %vm3510, %v3509, %v3049
      %vm3543 = vcmask 392192
      %v3544 = vsel %vm3543, %v3511, %v3084
      %v3545 = vsel %vm3543, %v3512, %v3086
      %v3546 = vsel %vm3543, %v3513, %v3088
      %v3547 = vsel %vm3543, %v3514, %v3090
      %v3548 = vsel %vm3543, %v3515, %v3092
      %v3549 = vsel %vm3543, %v3516, %v3094
      %v3550 = vsel %vm3543, %v3517, %v3096
      %v3551 = vsel %vm3543, %v3518, %v3098
      %v3552 = vsel %vm3543, %v3519, %v3100
      %v3553 = vsel %vm3543, %v3520, %v3102
      %v3554 = vsel %vm3543, %v3521, %v3104
      %v3555 = vsel %vm3543, %v3522, %v3106
      %v3556 = vsel %vm3543, %v3523, %v3108
      %v3557 = vsel %vm3543, %v3524, %v3110
      %v3558 = vsel %vm3543, %v3525, %v3112
      %v3559 = vsel %vm3543, %v3526, %v3114
      %v3560 = vsel %vm3543, %v3527, %v3116
      %v3561 = vsel %vm3543, %v3528, %v3118
      %v3562 = vsel %vm3543, %v3529, %v3120
      %v3563 = vsel %vm3543, %v3530, %v3122
      %v3564 = vsel %vm3543, %v3531, %v3124
      %v3565 = vsel %vm3543, %v3532, %v3126
      %v3566 = vsel %vm3543, %v3533, %v3128
      %v3567 = vsel %vm3543, %v3534, %v3130
      %v3568 = vsel %vm3543, %v3535, %v3132
      %v3569 = vsel %vm3543, %v3536, %v3134
      %v3570 = vsel %vm3543, %v3537, %v3136
      %v3571 = vsel %vm3543, %v3538, %v3138
      %v3572 = vsel %vm3543, %v3539, %v3140
      %v3573 = vsel %vm3543, %v3540, %v3142
      %v3574 = vsel %vm3543, %v3541, %v3144
      %v3575 = vsel %vm3543, %v3542, %v3146
      %vm3576 = vcmask 457728
      %v3577 = vsel %vm3576, %v3544, %v3186
      %v3578 = vsel %vm3576, %v3545, %v3188
      %v3579 = vsel %vm3576, %v3546, %v3190
      %v3580 = vsel %vm3576, %v3547, %v3192
      %v3581 = vsel %vm3576, %v3548, %v3194
      %v3582 = vsel %vm3576, %v3549, %v3196
      %v3583 = vsel %vm3576, %v3550, %v3198
      %v3584 = vsel %vm3576, %v3551, %v3200
      %v3585 = vsel %vm3576, %v3552, %v3202
      %v3586 = vsel %vm3576, %v3553, %v3204
      %v3587 = vsel %vm3576, %v3554, %v3206
      %v3588 = vsel %vm3576, %v3555, %v3208
      %v3589 = vsel %vm3576, %v3556, %v3210
      %v3590 = vsel %vm3576, %v3557, %v3212
      %v3591 = vsel %vm3576, %v3558, %v3214
      %v3592 = vsel %vm3576, %v3559, %v3216
      %v3593 = vsel %vm3576, %v3560, %v3218
      %v3594 = vsel %vm3576, %v3561, %v3220
      %v3595 = vsel %vm3576, %v3562, %v3222
      %v3596 = vsel %vm3576, %v3563, %v3224
      %v3597 = vsel %vm3576, %v3564, %v3226
      %v3598 = vsel %vm3576, %v3565, %v3228
      %v3599 = vsel %vm3576, %v3566, %v3230
      %v3600 = vsel %vm3576, %v3567, %v3232
      %v3601 = vsel %vm3576, %v3568, %v3234
      %v3602 = vsel %vm3576, %v3569, %v3236
      %v3603 = vsel %vm3576, %v3570, %v3238
      %v3604 = vsel %vm3576, %v3571, %v3240
      %v3605 = vsel %vm3576, %v3572, %v3242
      %v3606 = vsel %vm3576, %v3573, %v3244
      %v3607 = vsel %vm3576, %v3574, %v3246
      %v3608 = vsel %vm3576, %v3575, %v3248
      %vm3609 = vcmask 523264
      %v3610 = vsel %vm3609, %v3577, %v3287
      %v3611 = vsel %vm3609, %v3578, %v3289
      %v3612 = vsel %vm3609, %v3579, %v3291
      %v3613 = vsel %vm3609, %v3580, %v3293
      %v3614 = vsel %vm3609, %v3581, %v3295
      %v3615 = vsel %vm3609, %v3582, %v3297
      %v3616 = vsel %vm3609, %v3583, %v3299
      %v3617 = vsel %vm3609, %v3584, %v3301
      %v3618 = vsel %vm3609, %v3585, %v3303
      %v3619 = vsel %vm3609, %v3586, %v3305
      %v3620 = vsel %vm3609, %v3587, %v3307
      %v3621 = vsel %vm3609, %v3588, %v3309
      %v3622 = vsel %vm3609, %v3589, %v3311
      %v3623 = vsel %vm3609, %v3590, %v3313
      %v3624 = vsel %vm3609, %v3591, %v3315
      %v3625 = vsel %vm3609, %v3592, %v3317
      %v3626 = vsel %vm3609, %v3593, %v3319
      %v3627 = vsel %vm3609, %v3594, %v3321
      %v3628 = vsel %vm3609, %v3595, %v3323
      %v3629 = vsel %vm3609, %v3596, %v3325
      %v3630 = vsel %vm3609, %v3597, %v3327
      %v3631 = vsel %vm3609, %v3598, %v3329
      %v3632 = vsel %vm3609, %v3599, %v3331
      %v3633 = vsel %vm3609, %v3600, %v3333
      %v3634 = vsel %vm3609, %v3601, %v3335
      %v3635 = vsel %vm3609, %v3602, %v3337
      %v3636 = vsel %vm3609, %v3603, %v3339
      %v3637 = vsel %vm3609, %v3604, %v3341
      %v3638 = vsel %vm3609, %v3605, %v3343
      %v3639 = vsel %vm3609, %v3606, %v3345
      %v3640 = vsel %vm3609, %v3607, %v3347
      %v3641 = vsel %vm3609, %v3608, %v3349
      %v3642 = vld [vmem:[%s3] sm:$0xff]
      %v3643 = vld [vmem:[%s3 + $0x8] sm:$0xff]
      %v3644 = vld [vmem:[%s3 + $0x10] sm:$0xff]
      %v3645 = vld [vmem:[%s3 + $0x18] sm:$0xff]
      %v3646 = vld [vmem:[%s3 + $0x20] sm:$0xff]
      %v3647 = vld [vmem:[%s3 + $0x28] sm:$0xff]
      %v3648 = vld [vmem:[%s3 + $0x30] sm:$0xff]
      %v3649 = vld [vmem:[%s3 + $0x38] sm:$0xff]
      %v3650 = vld [vmem:[%s3 + $0x40] sm:$0xff]
      %v3651 = vld [vmem:[%s4] sm:$0x1]
      %v3653 = vperm.slane %v3651, 0
      %vm3655 = vcmask 588800
      %v3657 = vsel %vm3655, %v3610, 0
      %v3660 = vsel %vm3655, %v3611, 0
      %v3663 = vsel %vm3655, %v3612, 0
      %v3666 = vsel %vm3655, %v3613, 0
      %v3669 = vsel %vm3655, %v3614, 0
      %v3672 = vsel %vm3655, %v3615, 0
      %v3675 = vsel %vm3655, %v3616, 0
      %v3678 = vsel %vm3655, %v3617, 0
      %v3681 = vsel %vm3655, %v3618, 0
      %v3684 = vsel %vm3655, %v3619, 0
      %v3687 = vsel %vm3655, %v3620, 0
      %v3690 = vsel %vm3655, %v3621, 0
      %v3693 = vsel %vm3655, %v3622, 0
      %v3696 = vsel %vm3655, %v3623, 0
      %v3699 = vsel %vm3655, %v3624, 0
      %v3702 = vsel %vm3655, %v3625, 0
      %v3705 = vsel %vm3655, %v3626, 0
      %v3708 = vsel %vm3655, %v3627, 0
      %v3711 = vsel %vm3655, %v3628, 0
      %v3714 = vsel %vm3655, %v3629, 0
      %v3717 = vsel %vm3655, %v3630, 0
      %v3720 = vsel %vm3655, %v3631, 0
      %v3723 = vsel %vm3655, %v3632, 0
      %v3726 = vsel %vm3655, %v3633, 0
      %v3729 = vsel %vm3655, %v3634, 0
      %v3732 = vsel %vm3655, %v3635, 0
      %v3735 = vsel %vm3655, %v3636, 0
      %v3738 = vsel %vm3655, %v3637, 0
      %v3741 = vsel %vm3655, %v3638, 0
      %v3744 = vsel %vm3655, %v3639, 0
      %v3747 = vsel %vm3655, %v3640, 0
      %v3750 = vsel %vm3655, %v3641, 0
      %3752 = vmatpush.msra.mxu0 0.0
      %3753 = vmatpush.msra.mxu0 0.0
      %3754 = vmatpush.msra.mxu0 0.0
      %3755 = vmatpush.msra.mxu0 0.0
      %3756 = vmatpush.msra.mxu0 0.0
      %3757 = vmatpush.msra.mxu0 0.0
      %3758 = vmatpush.msra.mxu0 0.0
      %3759 = vmatpush.msra.mxu0 %v3650
      %3760 = vmatpush.msra.mxu0 %v3649
      %3761 = vmatpush.msra.mxu0 %v3648
      %3762 = vmatpush.msra.mxu0 %v3647
      %3763 = vmatpush.msra.mxu0 %v3646
      %3764 = vmatpush.msra.mxu0 %v3645
      %3765 = vmatpush.msra.mxu0 %v3644
      %3766 = vmatpush.msra.mxu0 %v3643
      %3767 = vmatpush.msra.mxu0 %v3642
      %3768 = vmatmul.f32.gmra.mxu0 %v3657
      %v3769 = vpop.f32.mrf.mxu0
      %v3770 = vadd.f32 %v3653, %v3769
      %3771 = vmatmul.f32.gmra.mxu0 %v3660
      %v3772 = vpop.f32.mrf.mxu0
      %v3773 = vadd.f32 %v3653, %v3772
      %3774 = vmatmul.f32.gmra.mxu0 %v3663
      %v3775 = vpop.f32.mrf.mxu0
      %v3776 = vadd.f32 %v3653, %v3775
      %3777 = vmatmul.f32.gmra.mxu0 %v3666
      %v3778 = vpop.f32.mrf.mxu0
      %v3779 = vadd.f32 %v3653, %v3778
      %3780 = vmatmul.f32.gmra.mxu0 %v3669
      %v3781 = vpop.f32.mrf.mxu0
      %v3782 = vadd.f32 %v3653, %v3781
      %3783 = vmatmul.f32.gmra.mxu0 %v3672
      %v3784 = vpop.f32.mrf.mxu0
      %v3785 = vadd.f32 %v3653, %v3784
      %3786 = vmatmul.f32.gmra.mxu0 %v3675
      %v3787 = vpop.f32.mrf.mxu0
      %v3788 = vadd.f32 %v3653, %v3787
      %3789 = vmatmul.f32.gmra.mxu0 %v3678
      %v3790 = vpop.f32.mrf.mxu0
      %v3791 = vadd.f32 %v3653, %v3790
      %3792 = vmatmul.f32.gmra.mxu0 %v3681
      %v3793 = vpop.f32.mrf.mxu0
      %v3794 = vadd.f32 %v3653, %v3793
      %3795 = vmatmul.f32.gmra.mxu0 %v3684
      %v3796 = vpop.f32.mrf.mxu0
      %v3797 = vadd.f32 %v3653, %v3796
      %3798 = vmatmul.f32.gmra.mxu0 %v3687
      %v3799 = vpop.f32.mrf.mxu0
      %v3800 = vadd.f32 %v3653, %v3799
      %3801 = vmatmul.f32.gmra.mxu0 %v3690
      %v3802 = vpop.f32.mrf.mxu0
      %v3803 = vadd.f32 %v3653, %v3802
      %3804 = vmatmul.f32.gmra.mxu0 %v3693
      %v3805 = vpop.f32.mrf.mxu0
      %v3806 = vadd.f32 %v3653, %v3805
      %3807 = vmatmul.f32.gmra.mxu0 %v3696
      %v3808 = vpop.f32.mrf.mxu0
      %v3809 = vadd.f32 %v3653, %v3808
      %3810 = vmatmul.f32.gmra.mxu0 %v3699
      %v3811 = vpop.f32.mrf.mxu0
      %v3812 = vadd.f32 %v3653, %v3811
      %3813 = vmatmul.f32.gmra.mxu0 %v3702
      %v3814 = vpop.f32.mrf.mxu0
      %v3815 = vadd.f32 %v3653, %v3814
      %3816 = vmatmul.f32.gmra.mxu0 %v3705
      %v3817 = vpop.f32.mrf.mxu0
      %v3818 = vadd.f32 %v3653, %v3817
      %3819 = vmatmul.f32.gmra.mxu0 %v3708
      %v3820 = vpop.f32.mrf.mxu0
      %v3821 = vadd.f32 %v3653, %v3820
      %3822 = vmatmul.f32.gmra.mxu0 %v3711
      %v3823 = vpop.f32.mrf.mxu0
      %v3824 = vadd.f32 %v3653, %v3823
      %3825 = vmatmul.f32.gmra.mxu0 %v3714
      %v3826 = vpop.f32.mrf.mxu0
      %v3827 = vadd.f32 %v3653, %v3826
      %3828 = vmatmul.f32.gmra.mxu0 %v3717
      %v3829 = vpop.f32.mrf.mxu0
      %v3830 = vadd.f32 %v3653, %v3829
      %3831 = vmatmul.f32.gmra.mxu0 %v3720
      %v3832 = vpop.f32.mrf.mxu0
      %v3833 = vadd.f32 %v3653, %v3832
      %3834 = vmatmul.f32.gmra.mxu0 %v3723
      %v3835 = vpop.f32.mrf.mxu0
      %v3836 = vadd.f32 %v3653, %v3835
      %3837 = vmatmul.f32.gmra.mxu0 %v3726
      %v3838 = vpop.f32.mrf.mxu0
      %v3839 = vadd.f32 %v3653, %v3838
      %3840 = vmatmul.f32.gmra.mxu0 %v3729
      %v3841 = vpop.f32.mrf.mxu0
      %v3842 = vadd.f32 %v3653, %v3841
      %3843 = vmatmul.f32.gmra.mxu0 %v3732
      %v3844 = vpop.f32.mrf.mxu0
      %v3845 = vadd.f32 %v3653, %v3844
      %3846 = vmatmul.f32.gmra.mxu0 %v3735
      %v3847 = vpop.f32.mrf.mxu0
      %v3848 = vadd.f32 %v3653, %v3847
      %3849 = vmatmul.f32.gmra.mxu0 %v3738
      %v3850 = vpop.f32.mrf.mxu0
      %v3851 = vadd.f32 %v3653, %v3850
      %3852 = vmatmul.f32.gmra.mxu0 %v3741
      %v3853 = vpop.f32.mrf.mxu0
      %v3854 = vadd.f32 %v3653, %v3853
      %3855 = vmatmul.f32.gmra.mxu0 %v3744
      %v3856 = vpop.f32.mrf.mxu0
      %v3857 = vadd.f32 %v3653, %v3856
      %3858 = vmatmul.f32.gmra.mxu0 %v3747
      %v3859 = vpop.f32.mrf.mxu0
      %v3860 = vadd.f32 %v3653, %v3859
      %3861 = vmatmul.f32.gmra.mxu0 %v3750
      %v3862 = vpop.f32.mrf.mxu0
      %v3863 = vadd.f32 %v3653, %v3862
      %3864 = vdwg.mxu0
      %v3865 = vmax.f32 %v3770, 0.0
      %v3866 = vmax.f32 %v3773, 0.0
      %v3867 = vmax.f32 %v3776, 0.0
      %v3868 = vmax.f32 %v3779, 0.0
      %v3869 = vmax.f32 %v3782, 0.0
      %v3870 = vmax.f32 %v3785, 0.0
      %v3871 = vmax.f32 %v3788, 0.0
      %v3872 = vmax.f32 %v3791, 0.0
      %v3873 = vmax.f32 %v3794, 0.0
      %v3874 = vmax.f32 %v3797, 0.0
      %v3875 = vmax.f32 %v3800, 0.0
      %v3876 = vmax.f32 %v3803, 0.0
      %v3877 = vmax.f32 %v3806, 0.0
      %v3878 = vmax.f32 %v3809, 0.0
      %v3879 = vmax.f32 %v3812, 0.0
      %v3880 = vmax.f32 %v3815, 0.0
      %v3881 = vmax.f32 %v3818, 0.0
      %v3882 = vmax.f32 %v3821, 0.0
      %v3883 = vmax.f32 %v3824, 0.0
      %v3884 = vmax.f32 %v3827, 0.0
      %v3885 = vmax.f32 %v3830, 0.0
      %v3886 = vmax.f32 %v3833, 0.0
      %v3887 = vmax.f32 %v3836, 0.0
      %v3888 = vmax.f32 %v3839, 0.0
      %v3889 = vmax.f32 %v3842, 0.0
      %v3890 = vmax.f32 %v3845, 0.0
      %v3891 = vmax.f32 %v3848, 0.0
      %v3892 = vmax.f32 %v3851, 0.0
      %v3893 = vmax.f32 %v3854, 0.0
      %v3894 = vmax.f32 %v3857, 0.0
      %v3895 = vmax.f32 %v3860, 0.0
      %v3896 = vmax.f32 %v3863, 0.0
      %3897 = vst.msk [vmem:[%s306] sm:$0xff] %vm1531, %v3865
      %3898 = vst.msk [vmem:[%s306 + $0x8] sm:$0xff] %vm1531, %v3866
      %3899 = vst.msk [vmem:[%s306 + $0x10] sm:$0xff] %vm1531, %v3867
      %3900 = vst.msk [vmem:[%s306 + $0x18] sm:$0xff] %vm1531, %v3868
      %3901 = vst.msk [vmem:[%s306 + $0x20] sm:$0xff] %vm1531, %v3869
      %3902 = vst.msk [vmem:[%s306 + $0x28] sm:$0xff] %vm1531, %v3870
      %3903 = vst.msk [vmem:[%s306 + $0x30] sm:$0xff] %vm1531, %v3871
      %3904 = vst.msk [vmem:[%s306 + $0x38] sm:$0xff] %vm1531, %v3872
      %3905 = vst.msk [vmem:[%s306 + $0x40] sm:$0xff] %vm1531, %v3873
      %3906 = vst.msk [vmem:[%s306 + $0x48] sm:$0xff] %vm1531, %v3874
      %3907 = vst.msk [vmem:[%s306 + $0x50] sm:$0xff] %vm1531, %v3875
      %3908 = vst.msk [vmem:[%s306 + $0x58] sm:$0xff] %vm1531, %v3876
      %3909 = vst.msk [vmem:[%s306 + $0x60] sm:$0xff] %vm1531, %v3877
      %3910 = vst.msk [vmem:[%s306 + $0x68] sm:$0xff] %vm1531, %v3878
      %3911 = vst.msk [vmem:[%s306 + $0x70] sm:$0xff] %vm1531, %v3879
      %3912 = vst.msk [vmem:[%s306 + $0x78] sm:$0xff] %vm1531, %v3880
      %3913 = vst.msk [vmem:[%s306 + $0x80] sm:$0xff] %vm1531, %v3881
      %3914 = vst.msk [vmem:[%s306 + $0x88] sm:$0xff] %vm1531, %v3882
      %3915 = vst.msk [vmem:[%s306 + $0x90] sm:$0xff] %vm1531, %v3883
      %3916 = vst.msk [vmem:[%s306 + $0x98] sm:$0xff] %vm1531, %v3884
      %3917 = vst.msk [vmem:[%s306 + $0xa0] sm:$0xff] %vm1531, %v3885
      %3918 = vst.msk [vmem:[%s306 + $0xa8] sm:$0xff] %vm1531, %v3886
      %3919 = vst.msk [vmem:[%s306 + $0xb0] sm:$0xff] %vm1531, %v3887
      %3920 = vst.msk [vmem:[%s306 + $0xb8] sm:$0xff] %vm1531, %v3888
      %3921 = vst.msk [vmem:[%s306 + $0xc0] sm:$0xff] %vm1531, %v3889
      %3922 = vst.msk [vmem:[%s306 + $0xc8] sm:$0xff] %vm1531, %v3890
      %3923 = vst.msk [vmem:[%s306 + $0xd0] sm:$0xff] %vm1531, %v3891
      %3924 = vst.msk [vmem:[%s306 + $0xd8] sm:$0xff] %vm1531, %v3892
      %3925 = vst.msk [vmem:[%s306 + $0xe0] sm:$0xff] %vm1531, %v3893
      %3926 = vst.msk [vmem:[%s306 + $0xe8] sm:$0xff] %vm1531, %v3894
      %3927 = vst.msk [vmem:[%s306 + $0xf0] sm:$0xff] %vm1531, %v3895
      %3928 = vst.msk [vmem:[%s306 + $0xf8] sm:$0xff] %vm1531, %v3896
      %v3929 = vsel %vm1531, %v3865, -inf
      %v3930 = vsel %vm1531, %v3867, -inf
      %v3931 = vmax.f32 %v3929, %v3930
      %v3932 = vsel %vm1531, %v3866, -inf
      %v3933 = vsel %vm1531, %v3868, -inf
      %v3934 = vmax.f32 %v3932, %v3933
      %v3935 = vsel %vm1531, %v3869, -inf
      %v3936 = vsel %vm1531, %v3871, -inf
      %v3937 = vmax.f32 %v3935, %v3936
      %v3938 = vsel %vm1531, %v3870, -inf
      %v3939 = vsel %vm1531, %v3872, -inf
      %v3940 = vmax.f32 %v3938, %v3939
      %v3941 = vsel %vm1531, %v3873, -inf
      %v3942 = vsel %vm1531, %v3875, -inf
      %v3943 = vmax.f32 %v3941, %v3942
      %v3944 = vsel %vm1531, %v3874, -inf
      %v3945 = vsel %vm1531, %v3876, -inf
      %v3946 = vmax.f32 %v3944, %v3945
      %v3947 = vsel %vm1531, %v3877, -inf
      %v3948 = vsel %vm1531, %v3879, -inf
      %v3949 = vmax.f32 %v3947, %v3948
      %v3950 = vsel %vm1531, %v3878, -inf
      %v3951 = vsel %vm1531, %v3880, -inf
      %v3952 = vmax.f32 %v3950, %v3951
      %v3953 = vsel %vm1531, %v3881, -inf
      %v3954 = vsel %vm1531, %v3883, -inf
      %v3955 = vmax.f32 %v3953, %v3954
      %v3956 = vsel %vm1531, %v3882, -inf
      %v3957 = vsel %vm1531, %v3884, -inf
      %v3958 = vmax.f32 %v3956, %v3957
      %v3959 = vsel %vm1531, %v3885, -inf
      %v3960 = vsel %vm1531, %v3887, -inf
      %v3961 = vmax.f32 %v3959, %v3960
      %v3962 = vsel %vm1531, %v3886, -inf
      %v3963 = vsel %vm1531, %v3888, -inf
      %v3964 = vmax.f32 %v3962, %v3963
      %v3965 = vsel %vm1531, %v3889, -inf
      %v3966 = vsel %vm1531, %v3891, -inf
      %v3967 = vmax.f32 %v3965, %v3966
      %v3968 = vsel %vm1531, %v3890, -inf
      %v3969 = vsel %vm1531, %v3892, -inf
      %v3970 = vmax.f32 %v3968, %v3969
      %v3971 = vsel %vm1531, %v3893, -inf
      %v3972 = vsel %vm1531, %v3895, -inf
      %v3973 = vmax.f32 %v3971, %v3972
      %v3974 = vsel %vm1531, %v3894, -inf
      %v3975 = vsel %vm1531, %v3896, -inf
      %v3976 = vmax.f32 %v3974, %v3975
      %v3993 = vrot.slane %v3931, 2
      %v3994 = vrot.slane %v3931, 4
      %v3995 = vrot.slane %v3931, 6
      %v3996 = vrot.slane %v3934, 2
      %v3997 = vrot.slane %v3934, 4
      %v3998 = vrot.slane %v3934, 6
      %v3999 = vrot.slane %v3937, 2
      %v4000 = vrot.slane %v3937, 4
      %v4001 = vrot.slane %v3937, 6
      %v4002 = vrot.slane %v3940, 2
      %v4003 = vrot.slane %v3940, 4
      %v4004 = vrot.slane %v3940, 6
      %v4005 = vrot.slane %v3943, 2
      %v4006 = vrot.slane %v3943, 4
      %v4007 = vrot.slane %v3943, 6
      %v4008 = vrot.slane %v3946, 2
      %v4009 = vrot.slane %v3946, 4
      %v4010 = vrot.slane %v3946, 6
      %v4011 = vrot.slane %v3949, 2
      %v4012 = vrot.slane %v3949, 4
      %v4013 = vrot.slane %v3949, 6
      %v4014 = vrot.slane %v3952, 2
      %v4015 = vrot.slane %v3952, 4
      %v4016 = vrot.slane %v3952, 6
      %v4017 = vrot.slane %v3955, 2
      %v4018 = vrot.slane %v3955, 4
      %v4019 = vrot.slane %v3955, 6
      %v4020 = vrot.slane %v3958, 2
      %v4021 = vrot.slane %v3958, 4
      %v4022 = vrot.slane %v3958, 6
      %v4023 = vrot.slane %v3961, 2
      %v4024 = vrot.slane %v3961, 4
      %v4025 = vrot.slane %v3961, 6
      %v4026 = vrot.slane %v3964, 2
      %v4027 = vrot.slane %v3964, 4
      %v4028 = vrot.slane %v3964, 6
      %v4029 = vrot.slane %v3967, 2
      %v4030 = vrot.slane %v3967, 4
      %v4031 = vrot.slane %v3967, 6
      %v4032 = vrot.slane %v3970, 2
      %v4033 = vrot.slane %v3970, 4
      %v4034 = vrot.slane %v3970, 6
      %v4035 = vrot.slane %v3973, 2
      %v4036 = vrot.slane %v3973, 4
      %v4037 = vrot.slane %v3973, 6
      %v4038 = vrot.slane %v3976, 2
      %v4039 = vrot.slane %v3976, 4
      %v4040 = vrot.slane %v3976, 6
      %vm4089 = vcmask 58368
      %v4090 = vsel %vm4089, %v3931, -inf
      %v4091 = vrot.slane %v4090, 4
      %v4092 = vmax.f32 %v4090, %v4091
      %v4093 = vrot.slane %v4092, 2
      %v4094 = vmax.f32 %v4092, %v4093
      %v4095 = vrot.slane %v4094, 1
      %v4096 = vmax.f32 %v4094, %v4095
      %v4097 = vsel %vm4089, %v3993, -inf
      %v4098 = vrot.slane %v4097, 4
      %v4099 = vmax.f32 %v4097, %v4098
      %v4100 = vrot.slane %v4099, 2
      %v4101 = vmax.f32 %v4099, %v4100
      %v4102 = vrot.slane %v4101, 1
      %v4103 = vmax.f32 %v4101, %v4102
      %v4104 = vsel %vm4089, %v3994, -inf
      %v4105 = vrot.slane %v4104, 4
      %v4106 = vmax.f32 %v4104, %v4105
      %v4107 = vrot.slane %v4106, 2
      %v4108 = vmax.f32 %v4106, %v4107
      %v4109 = vrot.slane %v4108, 1
      %v4110 = vmax.f32 %v4108, %v4109
      %v4111 = vsel %vm4089, %v3995, -inf
      %v4112 = vrot.slane %v4111, 4
      %v4113 = vmax.f32 %v4111, %v4112
      %v4114 = vrot.slane %v4113, 2
      %v4115 = vmax.f32 %v4113, %v4114
      %v4116 = vrot.slane %v4115, 1
      %v4117 = vmax.f32 %v4115, %v4116
      %v4118 = vsel %vm4089, %v3934, -inf
      %v4119 = vrot.slane %v4118, 4
      %v4120 = vmax.f32 %v4118, %v4119
      %v4121 = vrot.slane %v4120, 2
      %v4122 = vmax.f32 %v4120, %v4121
      %v4123 = vrot.slane %v4122, 1
      %v4124 = vmax.f32 %v4122, %v4123
      %v4125 = vsel %vm4089, %v3996, -inf
      %v4126 = vrot.slane %v4125, 4
      %v4127 = vmax.f32 %v4125, %v4126
      %v4128 = vrot.slane %v4127, 2
      %v4129 = vmax.f32 %v4127, %v4128
      %v4130 = vrot.slane %v4129, 1
      %v4131 = vmax.f32 %v4129, %v4130
      %v4132 = vsel %vm4089, %v3997, -inf
      %v4133 = vrot.slane %v4132, 4
      %v4134 = vmax.f32 %v4132, %v4133
      %v4135 = vrot.slane %v4134, 2
      %v4136 = vmax.f32 %v4134, %v4135
      %v4137 = vrot.slane %v4136, 1
      %v4138 = vmax.f32 %v4136, %v4137
      %v4139 = vsel %vm4089, %v3998, -inf
      %v4140 = vrot.slane %v4139, 4
      %v4141 = vmax.f32 %v4139, %v4140
      %v4142 = vrot.slane %v4141, 2
      %v4143 = vmax.f32 %v4141, %v4142
      %v4144 = vrot.slane %v4143, 1
      %v4145 = vmax.f32 %v4143, %v4144
      %v4146 = vsel %vm4089, %v3937, -inf
      %v4147 = vrot.slane %v4146, 4
      %v4148 = vmax.f32 %v4146, %v4147
      %v4149 = vrot.slane %v4148, 2
      %v4150 = vmax.f32 %v4148, %v4149
      %v4151 = vrot.slane %v4150, 1
      %v4152 = vmax.f32 %v4150, %v4151
      %v4153 = vsel %vm4089, %v3999, -inf
      %v4154 = vrot.slane %v4153, 4
      %v4155 = vmax.f32 %v4153, %v4154
      %v4156 = vrot.slane %v4155, 2
      %v4157 = vmax.f32 %v4155, %v4156
      %v4158 = vrot.slane %v4157, 1
      %v4159 = vmax.f32 %v4157, %v4158
      %v4160 = vsel %vm4089, %v4000, -inf
      %v4161 = vrot.slane %v4160, 4
      %v4162 = vmax.f32 %v4160, %v4161
      %v4163 = vrot.slane %v4162, 2
      %v4164 = vmax.f32 %v4162, %v4163
      %v4165 = vrot.slane %v4164, 1
      %v4166 = vmax.f32 %v4164, %v4165
      %v4167 = vsel %vm4089, %v4001, -inf
      %v4168 = vrot.slane %v4167, 4
      %v4169 = vmax.f32 %v4167, %v4168
      %v4170 = vrot.slane %v4169, 2
      %v4171 = vmax.f32 %v4169, %v4170
      %v4172 = vrot.slane %v4171, 1
      %v4173 = vmax.f32 %v4171, %v4172
      %v4174 = vsel %vm4089, %v3940, -inf
      %v4175 = vrot.slane %v4174, 4
      %v4176 = vmax.f32 %v4174, %v4175
      %v4177 = vrot.slane %v4176, 2
      %v4178 = vmax.f32 %v4176, %v4177
      %v4179 = vrot.slane %v4178, 1
      %v4180 = vmax.f32 %v4178, %v4179
      %v4181 = vsel %vm4089, %v4002, -inf
      %v4182 = vrot.slane %v4181, 4
      %v4183 = vmax.f32 %v4181, %v4182
      %v4184 = vrot.slane %v4183, 2
      %v4185 = vmax.f32 %v4183, %v4184
      %v4186 = vrot.slane %v4185, 1
      %v4187 = vmax.f32 %v4185, %v4186
      %v4188 = vsel %vm4089, %v4003, -inf
      %v4189 = vrot.slane %v4188, 4
      %v4190 = vmax.f32 %v4188, %v4189
      %v4191 = vrot.slane %v4190, 2
      %v4192 = vmax.f32 %v4190, %v4191
      %v4193 = vrot.slane %v4192, 1
      %v4194 = vmax.f32 %v4192, %v4193
      %v4195 = vsel %vm4089, %v4004, -inf
      %v4196 = vrot.slane %v4195, 4
      %v4197 = vmax.f32 %v4195, %v4196
      %v4198 = vrot.slane %v4197, 2
      %v4199 = vmax.f32 %v4197, %v4198
      %v4200 = vrot.slane %v4199, 1
      %v4201 = vmax.f32 %v4199, %v4200
      %v4202 = vsel %vm4089, %v3943, -inf
      %v4203 = vrot.slane %v4202, 4
      %v4204 = vmax.f32 %v4202, %v4203
      %v4205 = vrot.slane %v4204, 2
      %v4206 = vmax.f32 %v4204, %v4205
      %v4207 = vrot.slane %v4206, 1
      %v4208 = vmax.f32 %v4206, %v4207
      %v4209 = vsel %vm4089, %v4005, -inf
      %v4210 = vrot.slane %v4209, 4
      %v4211 = vmax.f32 %v4209, %v4210
      %v4212 = vrot.slane %v4211, 2
      %v4213 = vmax.f32 %v4211, %v4212
      %v4214 = vrot.slane %v4213, 1
      %v4215 = vmax.f32 %v4213, %v4214
      %v4216 = vsel %vm4089, %v4006, -inf
      %v4217 = vrot.slane %v4216, 4
      %v4218 = vmax.f32 %v4216, %v4217
      %v4219 = vrot.slane %v4218, 2
      %v4220 = vmax.f32 %v4218, %v4219
      %v4221 = vrot.slane %v4220, 1
      %v4222 = vmax.f32 %v4220, %v4221
      %v4223 = vsel %vm4089, %v4007, -inf
      %v4224 = vrot.slane %v4223, 4
      %v4225 = vmax.f32 %v4223, %v4224
      %v4226 = vrot.slane %v4225, 2
      %v4227 = vmax.f32 %v4225, %v4226
      %v4228 = vrot.slane %v4227, 1
      %v4229 = vmax.f32 %v4227, %v4228
      %v4230 = vsel %vm4089, %v3946, -inf
      %v4231 = vrot.slane %v4230, 4
      %v4232 = vmax.f32 %v4230, %v4231
      %v4233 = vrot.slane %v4232, 2
      %v4234 = vmax.f32 %v4232, %v4233
      %v4235 = vrot.slane %v4234, 1
      %v4236 = vmax.f32 %v4234, %v4235
      %v4237 = vsel %vm4089, %v4008, -inf
      %v4238 = vrot.slane %v4237, 4
      %v4239 = vmax.f32 %v4237, %v4238
      %v4240 = vrot.slane %v4239, 2
      %v4241 = vmax.f32 %v4239, %v4240
      %v4242 = vrot.slane %v4241, 1
      %v4243 = vmax.f32 %v4241, %v4242
      %v4244 = vsel %vm4089, %v4009, -inf
      %v4245 = vrot.slane %v4244, 4
      %v4246 = vmax.f32 %v4244, %v4245
      %v4247 = vrot.slane %v4246, 2
      %v4248 = vmax.f32 %v4246, %v4247
      %v4249 = vrot.slane %v4248, 1
      %v4250 = vmax.f32 %v4248, %v4249
      %v4251 = vsel %vm4089, %v4010, -inf
      %v4252 = vrot.slane %v4251, 4
      %v4253 = vmax.f32 %v4251, %v4252
      %v4254 = vrot.slane %v4253, 2
      %v4255 = vmax.f32 %v4253, %v4254
      %v4256 = vrot.slane %v4255, 1
      %v4257 = vmax.f32 %v4255, %v4256
      %v4258 = vsel %vm4089, %v3949, -inf
      %v4259 = vrot.slane %v4258, 4
      %v4260 = vmax.f32 %v4258, %v4259
      %v4261 = vrot.slane %v4260, 2
      %v4262 = vmax.f32 %v4260, %v4261
      %v4263 = vrot.slane %v4262, 1
      %v4264 = vmax.f32 %v4262, %v4263
      %v4265 = vsel %vm4089, %v4011, -inf
      %v4266 = vrot.slane %v4265, 4
      %v4267 = vmax.f32 %v4265, %v4266
      %v4268 = vrot.slane %v4267, 2
      %v4269 = vmax.f32 %v4267, %v4268
      %v4270 = vrot.slane %v4269, 1
      %v4271 = vmax.f32 %v4269, %v4270
      %v4272 = vsel %vm4089, %v4012, -inf
      %v4273 = vrot.slane %v4272, 4
      %v4274 = vmax.f32 %v4272, %v4273
      %v4275 = vrot.slane %v4274, 2
      %v4276 = vmax.f32 %v4274, %v4275
      %v4277 = vrot.slane %v4276, 1
      %v4278 = vmax.f32 %v4276, %v4277
      %v4279 = vsel %vm4089, %v4013, -inf
      %v4280 = vrot.slane %v4279, 4
      %v4281 = vmax.f32 %v4279, %v4280
      %v4282 = vrot.slane %v4281, 2
      %v4283 = vmax.f32 %v4281, %v4282
      %v4284 = vrot.slane %v4283, 1
      %v4285 = vmax.f32 %v4283, %v4284
      %v4286 = vsel %vm4089, %v3952, -inf
      %v4287 = vrot.slane %v4286, 4
      %v4288 = vmax.f32 %v4286, %v4287
      %v4289 = vrot.slane %v4288, 2
      %v4290 = vmax.f32 %v4288, %v4289
      %v4291 = vrot.slane %v4290, 1
      %v4292 = vmax.f32 %v4290, %v4291
      %v4293 = vsel %vm4089, %v4014, -inf
      %v4294 = vrot.slane %v4293, 4
      %v4295 = vmax.f32 %v4293, %v4294
      %v4296 = vrot.slane %v4295, 2
      %v4297 = vmax.f32 %v4295, %v4296
      %v4298 = vrot.slane %v4297, 1
      %v4299 = vmax.f32 %v4297, %v4298
      %v4300 = vsel %vm4089, %v4015, -inf
      %v4301 = vrot.slane %v4300, 4
      %v4302 = vmax.f32 %v4300, %v4301
      %v4303 = vrot.slane %v4302, 2
      %v4304 = vmax.f32 %v4302, %v4303
      %v4305 = vrot.slane %v4304, 1
      %v4306 = vmax.f32 %v4304, %v4305
      %v4307 = vsel %vm4089, %v4016, -inf
      %v4308 = vrot.slane %v4307, 4
      %v4309 = vmax.f32 %v4307, %v4308
      %v4310 = vrot.slane %v4309, 2
      %v4311 = vmax.f32 %v4309, %v4310
      %v4312 = vrot.slane %v4311, 1
      %v4313 = vmax.f32 %v4311, %v4312
      %v4314 = vsel %vm4089, %v3955, -inf
      %v4315 = vrot.slane %v4314, 4
      %v4316 = vmax.f32 %v4314, %v4315
      %v4317 = vrot.slane %v4316, 2
      %v4318 = vmax.f32 %v4316, %v4317
      %v4319 = vrot.slane %v4318, 1
      %v4320 = vmax.f32 %v4318, %v4319
      %v4321 = vsel %vm4089, %v4017, -inf
      %v4322 = vrot.slane %v4321, 4
      %v4323 = vmax.f32 %v4321, %v4322
      %v4324 = vrot.slane %v4323, 2
      %v4325 = vmax.f32 %v4323, %v4324
      %v4326 = vrot.slane %v4325, 1
      %v4327 = vmax.f32 %v4325, %v4326
      %v4328 = vsel %vm4089, %v4018, -inf
      %v4329 = vrot.slane %v4328, 4
      %v4330 = vmax.f32 %v4328, %v4329
      %v4331 = vrot.slane %v4330, 2
      %v4332 = vmax.f32 %v4330, %v4331
      %v4333 = vrot.slane %v4332, 1
      %v4334 = vmax.f32 %v4332, %v4333
      %v4335 = vsel %vm4089, %v4019, -inf
      %v4336 = vrot.slane %v4335, 4
      %v4337 = vmax.f32 %v4335, %v4336
      %v4338 = vrot.slane %v4337, 2
      %v4339 = vmax.f32 %v4337, %v4338
      %v4340 = vrot.slane %v4339, 1
      %v4341 = vmax.f32 %v4339, %v4340
      %v4342 = vsel %vm4089, %v3958, -inf
      %v4343 = vrot.slane %v4342, 4
      %v4344 = vmax.f32 %v4342, %v4343
      %v4345 = vrot.slane %v4344, 2
      %v4346 = vmax.f32 %v4344, %v4345
      %v4347 = vrot.slane %v4346, 1
      %v4348 = vmax.f32 %v4346, %v4347
      %v4349 = vsel %vm4089, %v4020, -inf
      %v4350 = vrot.slane %v4349, 4
      %v4351 = vmax.f32 %v4349, %v4350
      %v4352 = vrot.slane %v4351, 2
      %v4353 = vmax.f32 %v4351, %v4352
      %v4354 = vrot.slane %v4353, 1
      %v4355 = vmax.f32 %v4353, %v4354
      %v4356 = vsel %vm4089, %v4021, -inf
      %v4357 = vrot.slane %v4356, 4
      %v4358 = vmax.f32 %v4356, %v4357
      %v4359 = vrot.slane %v4358, 2
      %v4360 = vmax.f32 %v4358, %v4359
      %v4361 = vrot.slane %v4360, 1
      %v4362 = vmax.f32 %v4360, %v4361
      %v4363 = vsel %vm4089, %v4022, -inf
      %v4364 = vrot.slane %v4363, 4
      %v4365 = vmax.f32 %v4363, %v4364
      %v4366 = vrot.slane %v4365, 2
      %v4367 = vmax.f32 %v4365, %v4366
      %v4368 = vrot.slane %v4367, 1
      %v4369 = vmax.f32 %v4367, %v4368
      %v4370 = vsel %vm4089, %v3961, -inf
      %v4371 = vrot.slane %v4370, 4
      %v4372 = vmax.f32 %v4370, %v4371
      %v4373 = vrot.slane %v4372, 2
      %v4374 = vmax.f32 %v4372, %v4373
      %v4375 = vrot.slane %v4374, 1
      %v4376 = vmax.f32 %v4374, %v4375
      %v4377 = vsel %vm4089, %v4023, -inf
      %v4378 = vrot.slane %v4377, 4
      %v4379 = vmax.f32 %v4377, %v4378
      %v4380 = vrot.slane %v4379, 2
      %v4381 = vmax.f32 %v4379, %v4380
      %v4382 = vrot.slane %v4381, 1
      %v4383 = vmax.f32 %v4381, %v4382
      %v4384 = vsel %vm4089, %v4024, -inf
      %v4385 = vrot.slane %v4384, 4
      %v4386 = vmax.f32 %v4384, %v4385
      %v4387 = vrot.slane %v4386, 2
      %v4388 = vmax.f32 %v4386, %v4387
      %v4389 = vrot.slane %v4388, 1
      %v4390 = vmax.f32 %v4388, %v4389
      %v4391 = vsel %vm4089, %v4025, -inf
      %v4392 = vrot.slane %v4391, 4
      %v4393 = vmax.f32 %v4391, %v4392
      %v4394 = vrot.slane %v4393, 2
      %v4395 = vmax.f32 %v4393, %v4394
      %v4396 = vrot.slane %v4395, 1
      %v4397 = vmax.f32 %v4395, %v4396
      %v4398 = vsel %vm4089, %v3964, -inf
      %v4399 = vrot.slane %v4398, 4
      %v4400 = vmax.f32 %v4398, %v4399
      %v4401 = vrot.slane %v4400, 2
      %v4402 = vmax.f32 %v4400, %v4401
      %v4403 = vrot.slane %v4402, 1
      %v4404 = vmax.f32 %v4402, %v4403
      %v4405 = vsel %vm4089, %v4026, -inf
      %v4406 = vrot.slane %v4405, 4
      %v4407 = vmax.f32 %v4405, %v4406
      %v4408 = vrot.slane %v4407, 2
      %v4409 = vmax.f32 %v4407, %v4408
      %v4410 = vrot.slane %v4409, 1
      %v4411 = vmax.f32 %v4409, %v4410
      %v4412 = vsel %vm4089, %v4027, -inf
      %v4413 = vrot.slane %v4412, 4
      %v4414 = vmax.f32 %v4412, %v4413
      %v4415 = vrot.slane %v4414, 2
      %v4416 = vmax.f32 %v4414, %v4415
      %v4417 = vrot.slane %v4416, 1
      %v4418 = vmax.f32 %v4416, %v4417
      %v4419 = vsel %vm4089, %v4028, -inf
      %v4420 = vrot.slane %v4419, 4
      %v4421 = vmax.f32 %v4419, %v4420
      %v4422 = vrot.slane %v4421, 2
      %v4423 = vmax.f32 %v4421, %v4422
      %v4424 = vrot.slane %v4423, 1
      %v4425 = vmax.f32 %v4423, %v4424
      %v4426 = vsel %vm4089, %v3967, -inf
      %v4427 = vrot.slane %v4426, 4
      %v4428 = vmax.f32 %v4426, %v4427
      %v4429 = vrot.slane %v4428, 2
      %v4430 = vmax.f32 %v4428, %v4429
      %v4431 = vrot.slane %v4430, 1
      %v4432 = vmax.f32 %v4430, %v4431
      %v4433 = vsel %vm4089, %v4029, -inf
      %v4434 = vrot.slane %v4433, 4
      %v4435 = vmax.f32 %v4433, %v4434
      %v4436 = vrot.slane %v4435, 2
      %v4437 = vmax.f32 %v4435, %v4436
      %v4438 = vrot.slane %v4437, 1
      %v4439 = vmax.f32 %v4437, %v4438
      %v4440 = vsel %vm4089, %v4030, -inf
      %v4441 = vrot.slane %v4440, 4
      %v4442 = vmax.f32 %v4440, %v4441
      %v4443 = vrot.slane %v4442, 2
      %v4444 = vmax.f32 %v4442, %v4443
      %v4445 = vrot.slane %v4444, 1
      %v4446 = vmax.f32 %v4444, %v4445
      %v4447 = vsel %vm4089, %v4031, -inf
      %v4448 = vrot.slane %v4447, 4
      %v4449 = vmax.f32 %v4447, %v4448
      %v4450 = vrot.slane %v4449, 2
      %v4451 = vmax.f32 %v4449, %v4450
      %v4452 = vrot.slane %v4451, 1
      %v4453 = vmax.f32 %v4451, %v4452
      %v4454 = vsel %vm4089, %v3970, -inf
      %v4455 = vrot.slane %v4454, 4
      %v4456 = vmax.f32 %v4454, %v4455
      %v4457 = vrot.slane %v4456, 2
      %v4458 = vmax.f32 %v4456, %v4457
      %v4459 = vrot.slane %v4458, 1
      %v4460 = vmax.f32 %v4458, %v4459
      %v4461 = vsel %vm4089, %v4032, -inf
      %v4462 = vrot.slane %v4461, 4
      %v4463 = vmax.f32 %v4461, %v4462
      %v4464 = vrot.slane %v4463, 2
      %v4465 = vmax.f32 %v4463, %v4464
      %v4466 = vrot.slane %v4465, 1
      %v4467 = vmax.f32 %v4465, %v4466
      %v4468 = vsel %vm4089, %v4033, -inf
      %v4469 = vrot.slane %v4468, 4
      %v4470 = vmax.f32 %v4468, %v4469
      %v4471 = vrot.slane %v4470, 2
      %v4472 = vmax.f32 %v4470, %v4471
      %v4473 = vrot.slane %v4472, 1
      %v4474 = vmax.f32 %v4472, %v4473
      %v4475 = vsel %vm4089, %v4034, -inf
      %v4476 = vrot.slane %v4475, 4
      %v4477 = vmax.f32 %v4475, %v4476
      %v4478 = vrot.slane %v4477, 2
      %v4479 = vmax.f32 %v4477, %v4478
      %v4480 = vrot.slane %v4479, 1
      %v4481 = vmax.f32 %v4479, %v4480
      %v4482 = vsel %vm4089, %v3973, -inf
      %v4483 = vrot.slane %v4482, 4
      %v4484 = vmax.f32 %v4482, %v4483
      %v4485 = vrot.slane %v4484, 2
      %v4486 = vmax.f32 %v4484, %v4485
      %v4487 = vrot.slane %v4486, 1
      %v4488 = vmax.f32 %v4486, %v4487
      %v4489 = vsel %vm4089, %v4035, -inf
      %v4490 = vrot.slane %v4489, 4
      %v4491 = vmax.f32 %v4489, %v4490
      %v4492 = vrot.slane %v4491, 2
      %v4493 = vmax.f32 %v4491, %v4492
      %v4494 = vrot.slane %v4493, 1
      %v4495 = vmax.f32 %v4493, %v4494
      %v4496 = vsel %vm4089, %v4036, -inf
      %v4497 = vrot.slane %v4496, 4
      %v4498 = vmax.f32 %v4496, %v4497
      %v4499 = vrot.slane %v4498, 2
      %v4500 = vmax.f32 %v4498, %v4499
      %v4501 = vrot.slane %v4500, 1
      %v4502 = vmax.f32 %v4500, %v4501
      %v4503 = vsel %vm4089, %v4037, -inf
      %v4504 = vrot.slane %v4503, 4
      %v4505 = vmax.f32 %v4503, %v4504
      %v4506 = vrot.slane %v4505, 2
      %v4507 = vmax.f32 %v4505, %v4506
      %v4508 = vrot.slane %v4507, 1
      %v4509 = vmax.f32 %v4507, %v4508
      %v4510 = vsel %vm4089, %v3976, -inf
      %v4511 = vrot.slane %v4510, 4
      %v4512 = vmax.f32 %v4510, %v4511
      %v4513 = vrot.slane %v4512, 2
      %v4514 = vmax.f32 %v4512, %v4513
      %v4515 = vrot.slane %v4514, 1
      %v4516 = vmax.f32 %v4514, %v4515
      %v4517 = vsel %vm4089, %v4038, -inf
      %v4518 = vrot.slane %v4517, 4
      %v4519 = vmax.f32 %v4517, %v4518
      %v4520 = vrot.slane %v4519, 2
      %v4521 = vmax.f32 %v4519, %v4520
      %v4522 = vrot.slane %v4521, 1
      %v4523 = vmax.f32 %v4521, %v4522
      %v4524 = vsel %vm4089, %v4039, -inf
      %v4525 = vrot.slane %v4524, 4
      %v4526 = vmax.f32 %v4524, %v4525
      %v4527 = vrot.slane %v4526, 2
      %v4528 = vmax.f32 %v4526, %v4527
      %v4529 = vrot.slane %v4528, 1
      %v4530 = vmax.f32 %v4528, %v4529
      %v4531 = vsel %vm4089, %v4040, -inf
      %v4532 = vrot.slane %v4531, 4
      %v4533 = vmax.f32 %v4531, %v4532
      %v4534 = vrot.slane %v4533, 2
      %v4535 = vmax.f32 %v4533, %v4534
      %v4536 = vrot.slane %v4535, 1
      %v4537 = vmax.f32 %v4535, %v4536
      %vm4602 = vcmask 1041409
      %v4603 = vsel %vm4602, %v4103, %v4096
      %vm4604 = vcmask 1042434
      %v4605 = vsel %vm4604, %v4110, %v4603
      %vm4606 = vcmask 1043459
      %v4607 = vsel %vm4606, %v4117, %v4605
      %vm4608 = vcmask 1044484
      %v4609 = vsel %vm4608, %v4124, %v4607
      %vm4610 = vcmask 1045509
      %v4611 = vsel %vm4610, %v4131, %v4609
      %vm4612 = vcmask 1046534
      %v4613 = vsel %vm4612, %v4138, %v4611
      %vm4614 = vcmask 1047559
      %v4615 = vsel %vm4614, %v4145, %v4613
      %v4616 = vsel %vm4602, %v4159, %v4152
      %v4617 = vsel %vm4604, %v4166, %v4616
      %v4618 = vsel %vm4606, %v4173, %v4617
      %v4619 = vsel %vm4608, %v4180, %v4618
      %v4620 = vsel %vm4610, %v4187, %v4619
      %v4621 = vsel %vm4612, %v4194, %v4620
      %v4622 = vsel %vm4614, %v4201, %v4621
      %v4623 = vsel %vm4602, %v4215, %v4208
      %v4624 = vsel %vm4604, %v4222, %v4623
      %v4625 = vsel %vm4606, %v4229, %v4624
      %v4626 = vsel %vm4608, %v4236, %v4625
      %v4627 = vsel %vm4610, %v4243, %v4626
      %v4628 = vsel %vm4612, %v4250, %v4627
      %v4629 = vsel %vm4614, %v4257, %v4628
      %v4630 = vsel %vm4602, %v4271, %v4264
      %v4631 = vsel %vm4604, %v4278, %v4630
      %v4632 = vsel %vm4606, %v4285, %v4631
      %v4633 = vsel %vm4608, %v4292, %v4632
      %v4634 = vsel %vm4610, %v4299, %v4633
      %v4635 = vsel %vm4612, %v4306, %v4634
      %v4636 = vsel %vm4614, %v4313, %v4635
      %v4637 = vsel %vm4602, %v4327, %v4320
      %v4638 = vsel %vm4604, %v4334, %v4637
      %v4639 = vsel %vm4606, %v4341, %v4638
      %v4640 = vsel %vm4608, %v4348, %v4639
      %v4641 = vsel %vm4610, %v4355, %v4640
      %v4642 = vsel %vm4612, %v4362, %v4641
      %v4643 = vsel %vm4614, %v4369, %v4642
      %v4644 = vsel %vm4602, %v4383, %v4376
      %v4645 = vsel %vm4604, %v4390, %v4644
      %v4646 = vsel %vm4606, %v4397, %v4645
      %v4647 = vsel %vm4608, %v4404, %v4646
      %v4648 = vsel %vm4610, %v4411, %v4647
      %v4649 = vsel %vm4612, %v4418, %v4648
      %v4650 = vsel %vm4614, %v4425, %v4649
      %v4651 = vsel %vm4602, %v4439, %v4432
      %v4652 = vsel %vm4604, %v4446, %v4651
      %v4653 = vsel %vm4606, %v4453, %v4652
      %v4654 = vsel %vm4608, %v4460, %v4653
      %v4655 = vsel %vm4610, %v4467, %v4654
      %v4656 = vsel %vm4612, %v4474, %v4655
      %v4657 = vsel %vm4614, %v4481, %v4656
      %v4658 = vsel %vm4602, %v4495, %v4488
      %v4659 = vsel %vm4604, %v4502, %v4658
      %v4660 = vsel %vm4606, %v4509, %v4659
      %v4661 = vsel %vm4608, %v4516, %v4660
      %v4662 = vsel %vm4610, %v4523, %v4661
      %v4663 = vsel %vm4612, %v4530, %v4662
      %v4664 = vsel %vm4614, %v4537, %v4663
      %4673 = vst.msk [vmem:[%s295] sm:$0xff] %vm1531, %v4615
      %4674 = vst.msk [vmem:[%s295 + $0x8] sm:$0xff] %vm1531, %v4622
      %4675 = vst.msk [vmem:[%s295 + $0x10] sm:$0xff] %vm1531, %v4629
      %4676 = vst.msk [vmem:[%s295 + $0x18] sm:$0xff] %vm1531, %v4636
      %4677 = vst.msk [vmem:[%s295 + $0x20] sm:$0xff] %vm1531, %v4643
      %4678 = vst.msk [vmem:[%s295 + $0x28] sm:$0xff] %vm1531, %v4650
      %4679 = vst.msk [vmem:[%s295 + $0x30] sm:$0xff] %vm1531, %v4657
      %4680 = vst.msk [vmem:[%s295 + $0x38] sm:$0xff] %vm1531, %v4664
      %s4681 = smul.u32 8, %s23
      %p4682 = scmp.lt.s32.totalorder %s22, 1
      %s4683 = scalar_select %p4682, %s22, 1
      %p4684 = scmp.lt.s32.totalorder %s4681, 7
      %s4685 = scalar_select %p4684, %s4681, 7
      %s4686 = smul.addr %s4683, 8
      %s4687 = sadd.s32 %s4685, %s4686
      %s4688 = smul.addr %s4687, 8
      %s4689 = scalar_lea.vmem %s5, %s4688
      %s4690 = smul.u32 16, %s23
      %p4691 = scmp.lt.s32.totalorder %s22, 1
      %s4692 = scalar_select %p4691, %s22, 1
      %p4693 = scmp.lt.s32.totalorder %s4690, 15
      %s4694 = scalar_select %p4693, %s4690, 15
      %s4695 = smul.addr %s4694, 2
      %s4696 = smul.addr %s4692, 32
      %s4697 = sadd.s32 %s4695, %s4696
      %s4698 = smul.addr %s4697, 8
      %s4699 = scalar_lea.vmem %s6, %s4698
      // Predicated region
      $region41: #{unet_down_conv.1} parent=39 // pred_check
        %p4700 = pneg %p162
      $region42: #{unet_down_conv.1} parent=39 // pred_check_branch
        %4702 = sbr.rel (%p4700) target = $region44
      $region43: #{unet_down_conv.1} parent=39 // pred_region
        %s4703 = smul.u32 8, %s23
      $region44: #{unet_down_conv.1} parent=39 // pred_fallthru
        _
      // Predicated region
      $region45: #{unet_down_conv.1} parent=39 // pred_check
        %p4704 = pneg %p190
      $region46: #{unet_down_conv.1} parent=39 // pred_check_branch
        %4706 = sbr.rel (%p4704) target = $region48
      $region47: #{unet_down_conv.1} parent=39 // pred_region
        %s4707 = smul.u32 16, %s23
      $region48: #{unet_down_conv.1} parent=39 // pred_fallthru
        _
    $region40: #{unet_down_conv.1} parent=5 // pred_fallthru
      _
    %p4708 = scmp.le.s32.totalorder 2, %s13
    // Predicated region
    $region49: #{unet_down_conv.1} parent=5 // pred_check
      %p4709 = pneg %p4708
    $region50: #{unet_down_conv.1} parent=5 // pred_check_branch
      %4711 = sbr.rel (%p4709) target = $region52
    $region51: #{unet_down_conv.1} parent=5 // pred_region
      %s4712 = ssub.s32 %s13, 2
      // Predicated region
      $region53: #{unet_down_conv.1} parent=51 // pred_check
        %p4713 = pneg %p168
      $region54: #{unet_down_conv.1} parent=51 // pred_check_branch
        %4715 = sbr.rel (%p4713) target = $region56
      $region55: #{unet_down_conv.1} parent=51 // pred_region
        %s4716 = smul.u32 8, %s25
        %p4717 = scmp.lt.s32.totalorder %s24, 1
        %s4718 = scalar_select %p4717, %s24, 1
        %p4719 = scmp.lt.s32.totalorder %s4716, 7
        %s4720 = scalar_select %p4719, %s4716, 7
        %s4721 = smul.addr %s4718, 8
        %s4722 = sadd.s32 %s4720, %s4721
        %s4723 = smul.addr %s4722, 8
        %s4724 = scalar_lea.vmem %s5, %s4723
      $region56: #{unet_down_conv.1} parent=51 // pred_fallthru
        _
      // Predicated region
      $region57: #{unet_down_conv.1} parent=51 // pred_check
        %p4725 = pneg %p196
      $region58: #{unet_down_conv.1} parent=51 // pred_check_branch
        %4727 = sbr.rel (%p4725) target = $region60
      $region59: #{unet_down_conv.1} parent=51 // pred_region
        %s4728 = smul.u32 16, %s25
        %p4729 = scmp.lt.s32.totalorder %s24, 1
        %s4730 = scalar_select %p4729, %s24, 1
        %p4731 = scmp.lt.s32.totalorder %s4728, 15
        %s4732 = scalar_select %p4731, %s4728, 15
        %s4733 = smul.addr %s4732, 2
        %s4734 = smul.addr %s4730, 32
        %s4735 = sadd.s32 %s4733, %s4734
        %s4736 = smul.addr %s4735, 8
        %s4737 = scalar_lea.vmem %s6, %s4736
      $region60: #{unet_down_conv.1} parent=51 // pred_fallthru
        _
    $region52: #{unet_down_conv.1} parent=5 // pred_fallthru
      _
  $region6: #{unet_down_conv.1} parent=0 // loop_footer
    %s17 = sadd.s32 1, %s13
  $region7: #{unet_down_conv.1} parent=0 // loop_footer_branch
    %12 = sbr.rel target = $region3
  $region8: #{unet_down_conv.1} parent=0 // loop_exit
    _

</llo_original>
